<compile_context>
chip_gen: v7x
topology: tpu7x:2x2x1
jax: 0.10.0
libtpu: 0.0.40
codegen_flags: <defaults>
</compile_context>

<pallas_src>
import math

import jax
import jax.numpy as jnp
import numpy as np
from jax import lax
from jax.experimental import pallas as pl
from jax.experimental.pallas import tpu as pltpu

NUM_HEADS = 8
LN_EPS = 1e-5


def _layernorm(z, gamma, beta):
    mu = jnp.mean(z, axis=-1, keepdims=True)
    var = jnp.mean((z - mu) ** 2, axis=-1, keepdims=True)
    return (z - mu) * lax.rsqrt(var + LN_EPS) * gamma + beta


def _mm_kernel(img_ref, tab_ref, mmt_ref,
               wq_ref, wkv_ref, bq_ref, bkv_ref,
               wo_ref, bo_ref, ga_ref, ba_ref,
               w1_ref, b1_ref, w2_ref, b2_ref, gf_ref, bf_ref,
               o_ref):
    E = o_ref.shape[-1]
    C = tab_ref.shape[1]
    L = wq_ref.shape[0]
    f32 = jnp.float32
    bf16 = jnp.bfloat16

    x0 = img_ref[0]                           # [1, E] f32 (this batch row)
    tab_b = tab_ref[0].astype(bf16)           # [C, E] bf16, layer-invariant (hoisted cast)
    mmt = mmt_ref[...]                        # [E, E] f32 block-diagonal head mask

    def layer(i, x):
        xb = x.astype(bf16)

        # --- projections: native bf16 x bf16 MXU, f32 accumulation ----------
        # (1/sqrt(head_dim) is folded into wq/bq at prep time.)
        q = jnp.dot(xb, wq_ref[i], preferred_element_type=f32) + bq_ref[i]        # [1, E]
        kv = jnp.dot(tab_b, wkv_ref[i], preferred_element_type=f32) + bkv_ref[i]  # [C, 2E]
        k = kv[:, :E]                                                              # [C, E]
        v = kv[:, E:]                                                              # [C, E]

        # --- cross attention, lane-dense per-head scores ---------------------
        p = k * q                                                                  # [C, E]
        s = jnp.dot(p, mmt, preferred_element_type=f32)                            # [C, E]
        m = jnp.max(s, axis=0, keepdims=True)                                      # [1, E]
        e = jnp.exp(s - m)
        denom = jnp.sum(e, axis=0, keepdims=True)                                  # [1, E]
        w = e * pl.reciprocal(denom, approx=True)                                  # softmax over C
        attn = jnp.sum(w * v, axis=0, keepdims=True)                               # [1, E]

        attn = jnp.dot(attn.astype(bf16), wo_ref[i],
                       preferred_element_type=f32) + bo_ref[i]
        y = _layernorm(x + attn, ga_ref[i], ba_ref[i])

        # --- feed-forward -----------------------------------------------------
        h1 = jnp.maximum(jnp.dot(y.astype(bf16), w1_ref[i],
                                 preferred_element_type=f32) + b1_ref[i], 0.0)
        ff = jnp.dot(h1.astype(bf16), w2_ref[i],
                     preferred_element_type=f32) + b2_ref[i]
        return _layernorm(y + ff, gf_ref[i], bf_ref[i])

    # Unroll only while the layer count is small (code size / compile time).
    o_ref[0] = lax.fori_loop(0, L, layer, x0, unroll=(L <= 4))


def prepare_params(params, embedding_dim):
    """One-time weight preparation (NOT part of the steady-state call path)."""
    E = embedding_dim
    H = NUM_HEADS
    d = E // H
    scale = 1.0 / math.sqrt(d)
    bf16 = jnp.bfloat16
    f32 = jnp.float32

    w_in = params["w_in"]                         # [L, 3E, E]  PyTorch (out, in)
    b_in = params["b_in"]                         # [L, 3, E]

    def t(w):                                     # (out, in) -> (in, out)
        return jnp.swapaxes(w, -1, -2)

    wq = (t(w_in[:, :E, :]) * scale).astype(bf16)                         # [L, E, E]
    wkv = jnp.concatenate([t(w_in[:, E:2 * E, :]),
                           t(w_in[:, 2 * E:, :])], axis=-1).astype(bf16)  # [L, E, 2E]
    bq = (b_in[:, 0:1, :] * scale).astype(f32)                            # [L, 1, E]
    bkv = jnp.concatenate([b_in[:, 1:2, :], b_in[:, 2:3, :]],
                          axis=-1).astype(f32)                            # [L, 1, 2E]

    # Block-diagonal head-membership mask MMT[e, e'] = 1 iff e, e' share a head.
    rows = np.arange(E)[:, None] // d
    cols = np.arange(E)[None, :] // d
    mmt = jnp.asarray(rows == cols, dtype=f32)                            # [E, E]

    return {
        "mmt": mmt,
        "wq": wq, "wkv": wkv, "bq": bq, "bkv": bkv,
        "wo": t(params["w_out"]).astype(bf16),
        "bo": params["b_out"].astype(f32),
        "g_a": params["g_a"].astype(f32), "be_a": params["be_a"].astype(f32),
        "w1": t(params["w1"]).astype(bf16), "b1": params["b1"].astype(f32),
        "w2": t(params["w2"]).astype(bf16), "b2": params["b2"].astype(f32),
        "g_f": params["g_f"].astype(f32), "be_f": params["be_f"].astype(f32),
    }


def _vmem_limit_bytes():
    """Generation-aware scoped-VMEM limit (64 MiB v7x vs 128 MiB v5e/v6e)."""
    cap = 64 * 1024 * 1024          # safe lower bound (v7x per-TC physical)
    try:
        cap = int(pltpu.get_tpu_info().vmem_capacity_bytes)
    except Exception:
        pass
    return max(32 * 1024 * 1024, min(cap - 4 * 1024 * 1024, 100 * 1024 * 1024))


@jax.jit
def multimodal_interaction(img, tab, prepped):
    B, E = img.shape
    _, C, _ = tab.shape
    assert E % NUM_HEADS == 0, "embedding_dim must be divisible by num_heads"

    img3 = img.astype(jnp.float32).reshape(B, 1, E)   # keep last-two block dims full
    tab = tab.astype(jnp.float32)

    weight_args = (
        prepped["mmt"],
        prepped["wq"], prepped["wkv"], prepped["bq"], prepped["bkv"],
        prepped["wo"], prepped["bo"], prepped["g_a"], prepped["be_a"],
        prepped["w1"], prepped["b1"], prepped["w2"], prepped["b2"],
        prepped["g_f"], prepped["be_f"],
    )

    vmem_limit = _vmem_limit_bytes()
    param_bytes = sum(int(np.prod(a.shape)) * a.dtype.itemsize for a in weight_args)
    # x3 headroom: double-buffering + activations + compiler scratch.
    assert param_bytes * 3 < vmem_limit, (
        "parameter set too large for the resident-weights kernel; switch to "
        "the per-layer streaming variant (see TODO at top of file)")

    def const_spec(shape):
        n = len(shape)
        return pl.BlockSpec(shape, lambda b, _n=n: (0,) * _n)

    in_specs = (
        [pl.BlockSpec((1, 1, E), lambda b: (b, 0, 0)),      # img  (one batch row)
         pl.BlockSpec((1, C, E), lambda b: (b, 0, 0))]      # tab  (one batch row)
        + [const_spec(a.shape) for a in weight_args]        # weights: resident
    )
    out_spec = pl.BlockSpec((1, 1, E), lambda b: (b, 0, 0))

    fn = pl.pallas_call(
        _mm_kernel,
        out_shape=jax.ShapeDtypeStruct((B, 1, E), jnp.float32),
        grid=(B,),
        in_specs=in_specs,
        out_specs=out_spec,
        compiler_params=pltpu.CompilerParams(
            dimension_semantics=("parallel",),     # second TC on v7x; harmless on v5e/v6e
            vmem_limit_bytes=vmem_limit),
    )
    out = fn(img3, tab, *weight_args)
    return out.reshape(B, E)


def init_params(key, E, L):
    ks = jax.random.split(key, 8)

    def w(k, shape, s=0.05):
        return jax.random.normal(k, shape, jnp.float32) * s

    return {
        "w_in": w(ks[0], (L, 3 * E, E)),
        "b_in": w(ks[1], (L, 3, E), 0.02),
        "w_out": w(ks[2], (L, E, E)),
        "b_out": w(ks[3], (L, 1, E), 0.02),
        "g_a": jnp.ones((L, 1, E), jnp.float32),
        "be_a": jnp.zeros((L, 1, E), jnp.float32),
        "w1": w(ks[4], (L, 4 * E, E)),
        "b1": w(ks[5], (L, 1, 4 * E), 0.02),
        "w2": w(ks[6], (L, E, 4 * E)),
        "b2": w(ks[7], (L, 1, E), 0.02),
        "g_f": jnp.ones((L, 1, E), jnp.float32),
        "be_f": jnp.zeros((L, 1, E), jnp.float32),
    }


def _bmm(a, b):
    """Matmul with bf16 operands, f32 accumulation (mirrors the kernel's MXU mode)."""
    return jnp.dot(a.astype(jnp.bfloat16), b.astype(jnp.bfloat16),
                   preferred_element_type=jnp.float32)


def reference(img, tab, params):
    """Pure-JAX reference mirroring torch.nn.MultiheadAttention semantics
    (matmuls at the kernel's bf16-operand / f32-accumulate precision)."""
    B, E = img.shape
    _, C, _ = tab.shape
    H = NUM_HEADS
    d = E // H
    L = params["w_in"].shape[0]
    x = img.astype(jnp.float32)
    tab = tab.astype(jnp.float32)
    for i in range(L):
        w_in = params["w_in"][i]
        b_in = params["b_in"][i]
        wq, wk, wv = w_in[:E], w_in[E:2 * E], w_in[2 * E:]
        bq, bk, bv = b_in[0], b_in[1], b_in[2]
        q = _bmm(x, wq.T) + bq                                        # [B, E]
        k = _bmm(tab.reshape(B * C, E), wk.T).reshape(B, C, E) + bk   # [B, C, E]
        v = _bmm(tab.reshape(B * C, E), wv.T).reshape(B, C, E) + bv
        qh = q.reshape(B, H, d)
        kh = k.reshape(B, C, H, d)
        vh = v.reshape(B, C, H, d)
        s = jnp.einsum("bhd,bchd->bhc", qh, kh) / math.sqrt(d)
        a = jax.nn.softmax(s, axis=-1)
        ah = jnp.einsum("bhc,bchd->bhd", a, vh).reshape(B, E)
        attn = _bmm(ah, params["w_out"][i].T) + params["b_out"][i][0]
        y = _layernorm(x + attn, params["g_a"][i][0], params["be_a"][i][0])
        h1 = jax.nn.relu(_bmm(y, params["w1"][i].T) + params["b1"][i][0])
        ff = _bmm(h1, params["w2"][i].T) + params["b2"][i][0]
        x = _layernorm(y + ff, params["g_f"][i][0], params["be_f"][i][0])
    return x


if __name__ == "__main__":
    # batch, num_columns, embedding_dim (lane-dense, multiple of 128), num_blocks
    B, C, E, L = 2, 8, 128, 2
    key = jax.random.PRNGKey(0)
    k_img, k_tab, k_par = jax.random.split(key, 3)
    img = jax.random.normal(k_img, (B, E), jnp.float32)
    tab = jax.random.normal(k_tab, (B, C, E), jnp.float32)
    params = init_params(k_par, E, L)

    prepped = prepare_params(params, E)           # one-time weight prep (hoisted)

    out = multimodal_interaction(img, tab, prepped)
    out = jax.block_until_ready(out)

    with jax.default_matmul_precision("float32"):
        ref = reference(img, tab, params)

    assert out.shape == (B, E)
    np.testing.assert_allclose(np.asarray(out), np.asarray(ref), rtol=3e-3, atol=3e-3)
    print("KERNEL_OK")
</pallas_src>

<mosaic_0001>
module attributes {stable_mosaic.version = 11 : i64} {
  func.func @_mm_kernel(%arg0: i32, %arg1: memref<1x1x128xf32, #tpu.memory_space<vmem>>, %arg2: memref<1x8x128xf32, #tpu.memory_space<vmem>>, %arg3: memref<128x128xf32, #tpu.memory_space<vmem>>, %arg4: memref<2x128x128xbf16, #tpu.memory_space<vmem>>, %arg5: memref<2x128x256xbf16, #tpu.memory_space<vmem>>, %arg6: memref<2x1x128xf32, #tpu.memory_space<vmem>>, %arg7: memref<2x1x256xf32, #tpu.memory_space<vmem>>, %arg8: memref<2x128x128xbf16, #tpu.memory_space<vmem>>, %arg9: memref<2x1x128xf32, #tpu.memory_space<vmem>>, %arg10: memref<2x1x128xf32, #tpu.memory_space<vmem>>, %arg11: memref<2x1x128xf32, #tpu.memory_space<vmem>>, %arg12: memref<2x128x512xbf16, #tpu.memory_space<vmem>>, %arg13: memref<2x1x512xf32, #tpu.memory_space<vmem>>, %arg14: memref<2x512x128xbf16, #tpu.memory_space<vmem>>, %arg15: memref<2x1x128xf32, #tpu.memory_space<vmem>>, %arg16: memref<2x1x128xf32, #tpu.memory_space<vmem>>, %arg17: memref<2x1x128xf32, #tpu.memory_space<vmem>>, %arg18: memref<1x1x128xf32, #tpu.memory_space<vmem>>) attributes {dimension_semantics = [#tpu.dimension_semantics<parallel>], iteration_bounds = array<i64: 2>, scalar_prefetch = 0 : i64, scratch_operands = 0 : i64, tpu.core_type = #tpu.core_type<tc>, window_params = [{transform_indices = @transform_0, window_bounds = array<i64: 1, 1, 128>}, {transform_indices = @transform_1, window_bounds = array<i64: 1, 8, 128>}, {pipeline_mode = #tpu.pipeline_mode<synchronous>, transform_indices = @transform_2, window_bounds = array<i64: 128, 128>}, {pipeline_mode = #tpu.pipeline_mode<synchronous>, transform_indices = @transform_3, window_bounds = array<i64: 2, 128, 128>}, {pipeline_mode = #tpu.pipeline_mode<synchronous>, transform_indices = @transform_4, window_bounds = array<i64: 2, 128, 256>}, {pipeline_mode = #tpu.pipeline_mode<synchronous>, transform_indices = @transform_5, window_bounds = array<i64: 2, 1, 128>}, {pipeline_mode = #tpu.pipeline_mode<synchronous>, transform_indices = @transform_6, window_bounds = array<i64: 2, 1, 256>}, {pipeline_mode = #tpu.pipeline_mode<synchronous>, transform_indices = @transform_7, window_bounds = array<i64: 2, 128, 128>}, {pipeline_mode = #tpu.pipeline_mode<synchronous>, transform_indices = @transform_8, window_bounds = array<i64: 2, 1, 128>}, {pipeline_mode = #tpu.pipeline_mode<synchronous>, transform_indices = @transform_9, window_bounds = array<i64: 2, 1, 128>}, {pipeline_mode = #tpu.pipeline_mode<synchronous>, transform_indices = @transform_10, window_bounds = array<i64: 2, 1, 128>}, {pipeline_mode = #tpu.pipeline_mode<synchronous>, transform_indices = @transform_11, window_bounds = array<i64: 2, 128, 512>}, {pipeline_mode = #tpu.pipeline_mode<synchronous>, transform_indices = @transform_12, window_bounds = array<i64: 2, 1, 512>}, {pipeline_mode = #tpu.pipeline_mode<synchronous>, transform_indices = @transform_13, window_bounds = array<i64: 2, 512, 128>}, {pipeline_mode = #tpu.pipeline_mode<synchronous>, transform_indices = @transform_14, window_bounds = array<i64: 2, 1, 128>}, {pipeline_mode = #tpu.pipeline_mode<synchronous>, transform_indices = @transform_15, window_bounds = array<i64: 2, 1, 128>}, {pipeline_mode = #tpu.pipeline_mode<synchronous>, transform_indices = @transform_16, window_bounds = array<i64: 2, 1, 128>}, {transform_indices = @transform_17, window_bounds = array<i64: 1, 1, 128>}]} {
    %c0 = arith.constant 0 : index
    %c0_0 = arith.constant 0 : index
    %c0_1 = arith.constant 0 : index
    %0 = vector.load %arg1[%c0, %c0_0, %c0_1] : memref<1x1x128xf32, #tpu.memory_space<vmem>>, vector<1x1x128xf32>
    %1 = vector.shape_cast %0 : vector<1x1x128xf32> to vector<1x128xf32>
    %c0_2 = arith.constant 0 : index
    %c0_3 = arith.constant 0 : index
    %c0_4 = arith.constant 0 : index
    %2 = vector.load %arg2[%c0_2, %c0_3, %c0_4] : memref<1x8x128xf32, #tpu.memory_space<vmem>>, vector<1x8x128xf32>
    %3 = vector.shape_cast %2 : vector<1x8x128xf32> to vector<8x128xf32>
    %4 = arith.truncf %3 : vector<8x128xf32> to vector<8x128xbf16>
    %c0_5 = arith.constant 0 : index
    %c0_6 = arith.constant 0 : index
    %5 = vector.load %arg3[%c0_5, %c0_6] : memref<128x128xf32, #tpu.memory_space<vmem>>, vector<128x128xf32>
    %c0_i32 = arith.constant 0 : i32
    %6 = arith.truncf %1 : vector<1x128xf32> to vector<1x128xbf16>
    %7 = arith.index_cast %c0_i32 : i32 to index
    %c0_7 = arith.constant 0 : index
    %c0_8 = arith.constant 0 : index
    %8 = vector.load %arg4[%7, %c0_7, %c0_8] : memref<2x128x128xbf16, #tpu.memory_space<vmem>>, vector<1x128x128xbf16>
    %9 = vector.shape_cast %8 : vector<1x128x128xbf16> to vector<128x128xbf16>
    %cst = arith.constant dense<0.000000e+00> : vector<1x128xf32>
    %10 = tpu.matmul %6, %9, %cst {dimension_numbers = #tpu.dot_dimension_numbers<[1], [0], [0], [1], [0, 0, 1, 1], [], []>} : vector<1x128xbf16>, vector<128x128xbf16>, vector<1x128xf32> -> vector<1x128xf32>
    %11 = arith.index_cast %c0_i32 : i32 to index
    %c0_9 = arith.constant 0 : index
    %c0_10 = arith.constant 0 : index
    %12 = vector.load %arg6[%11, %c0_9, %c0_10] : memref<2x1x128xf32, #tpu.memory_space<vmem>>, vector<1x1x128xf32>
    %13 = vector.shape_cast %12 : vector<1x1x128xf32> to vector<1x128xf32>
    %14 = arith.addf %10, %13 : vector<1x128xf32>
    %15 = arith.index_cast %c0_i32 : i32 to index
    %c0_11 = arith.constant 0 : index
    %c0_12 = arith.constant 0 : index
    %16 = vector.load %arg5[%15, %c0_11, %c0_12] : memref<2x128x256xbf16, #tpu.memory_space<vmem>>, vector<1x128x256xbf16>
    %17 = vector.shape_cast %16 : vector<1x128x256xbf16> to vector<128x256xbf16>
    %cst_13 = arith.constant dense<0.000000e+00> : vector<8x256xf32>
    %18 = tpu.matmul %4, %17, %cst_13 {dimension_numbers = #tpu.dot_dimension_numbers<[1], [0], [0], [1], [0, 0, 1, 1], [], []>} : vector<8x128xbf16>, vector<128x256xbf16>, vector<8x256xf32> -> vector<8x256xf32>
    %19 = arith.index_cast %c0_i32 : i32 to index
    %c0_14 = arith.constant 0 : index
    %c0_15 = arith.constant 0 : index
    %20 = vector.load %arg7[%19, %c0_14, %c0_15] : memref<2x1x256xf32, #tpu.memory_space<vmem>>, vector<1x1x256xf32>
    %21 = vector.shape_cast %20 : vector<1x1x256xf32> to vector<1x256xf32>
    %22 = vector.broadcast %21 : vector<1x256xf32> to vector<8x256xf32>
    %23 = arith.addf %18, %22 : vector<8x256xf32>
    %24 = vector.extract_strided_slice %23 {offsets = [0, 0], sizes = [8, 128], strides = [1, 1]} : vector<8x256xf32> to vector<8x128xf32>
    %25 = vector.extract_strided_slice %23 {offsets = [0, 128], sizes = [8, 128], strides = [1, 1]} : vector<8x256xf32> to vector<8x128xf32>
    %26 = vector.broadcast %14 : vector<1x128xf32> to vector<8x128xf32>
    %27 = arith.mulf %24, %26 : vector<8x128xf32>
    %cst_16 = arith.constant dense<0.000000e+00> : vector<8x128xf32>
    %28 = tpu.matmul %27, %5, %cst_16 {dimension_numbers = #tpu.dot_dimension_numbers<[1], [0], [0], [1], [0, 0, 1, 1], [], []>} : vector<8x128xf32>, vector<128x128xf32>, vector<8x128xf32> -> vector<8x128xf32>
    %cst_17 = arith.constant dense<0xFF800000> : vector<128xf32>
    %29 = vector.multi_reduction <maximumf>, %28, %cst_17 [0] : vector<8x128xf32> to vector<128xf32>
    %30 = vector.shape_cast %29 : vector<128xf32> to vector<1x128xf32>
    %31 = vector.broadcast %30 : vector<1x128xf32> to vector<8x128xf32>
    %32 = arith.subf %28, %31 : vector<8x128xf32>
    %33 = math.exp %32 : vector<8x128xf32>
    %cst_18 = arith.constant dense<0.000000e+00> : vector<128xf32>
    %34 = vector.multi_reduction <add>, %33, %cst_18 [0] : vector<8x128xf32> to vector<128xf32>
    %35 = vector.shape_cast %34 : vector<128xf32> to vector<1x128xf32>
    %36 = tpu.reciprocal %35 {approx = true} : vector<1x128xf32> -> vector<1x128xf32>
    %37 = vector.broadcast %36 : vector<1x128xf32> to vector<8x128xf32>
    %38 = arith.mulf %33, %37 : vector<8x128xf32>
    %39 = arith.mulf %38, %25 : vector<8x128xf32>
    %cst_19 = arith.constant dense<0.000000e+00> : vector<128xf32>
    %40 = vector.multi_reduction <add>, %39, %cst_19 [0] : vector<8x128xf32> to vector<128xf32>
    %41 = vector.shape_cast %40 : vector<128xf32> to vector<1x128xf32>
    %42 = arith.truncf %41 : vector<1x128xf32> to vector<1x128xbf16>
    %43 = arith.index_cast %c0_i32 : i32 to index
    %c0_20 = arith.constant 0 : index
    %c0_21 = arith.constant 0 : index
    %44 = vector.load %arg8[%43, %c0_20, %c0_21] : memref<2x128x128xbf16, #tpu.memory_space<vmem>>, vector<1x128x128xbf16>
    %45 = vector.shape_cast %44 : vector<1x128x128xbf16> to vector<128x128xbf16>
    %cst_22 = arith.constant dense<0.000000e+00> : vector<1x128xf32>
    %46 = tpu.matmul %42, %45, %cst_22 {dimension_numbers = #tpu.dot_dimension_numbers<[1], [0], [0], [1], [0, 0, 1, 1], [], []>} : vector<1x128xbf16>, vector<128x128xbf16>, vector<1x128xf32> -> vector<1x128xf32>
    %47 = arith.index_cast %c0_i32 : i32 to index
    %c0_23 = arith.constant 0 : index
    %c0_24 = arith.constant 0 : index
    %48 = vector.load %arg9[%47, %c0_23, %c0_24] : memref<2x1x128xf32, #tpu.memory_space<vmem>>, vector<1x1x128xf32>
    %49 = vector.shape_cast %48 : vector<1x1x128xf32> to vector<1x128xf32>
    %50 = arith.addf %46, %49 : vector<1x128xf32>
    %51 = arith.addf %1, %50 : vector<1x128xf32>
    %52 = arith.index_cast %c0_i32 : i32 to index
    %c0_25 = arith.constant 0 : index
    %c0_26 = arith.constant 0 : index
    %53 = vector.load %arg10[%52, %c0_25, %c0_26] : memref<2x1x128xf32, #tpu.memory_space<vmem>>, vector<1x1x128xf32>
    %54 = vector.shape_cast %53 : vector<1x1x128xf32> to vector<1x128xf32>
    %55 = arith.index_cast %c0_i32 : i32 to index
    %c0_27 = arith.constant 0 : index
    %c0_28 = arith.constant 0 : index
    %56 = vector.load %arg11[%55, %c0_27, %c0_28] : memref<2x1x128xf32, #tpu.memory_space<vmem>>, vector<1x1x128xf32>
    %57 = vector.shape_cast %56 : vector<1x1x128xf32> to vector<1x128xf32>
    %cst_29 = arith.constant dense<0.000000e+00> : vector<1xf32>
    %58 = vector.multi_reduction <add>, %51, %cst_29 [1] : vector<1x128xf32> to vector<1xf32>
    %59 = vector.shape_cast %58 : vector<1xf32> to vector<1x1xf32>
    %cst_30 = arith.constant 1.280000e+02 : f32
    %60 = vector.broadcast %cst_30 : f32 to vector<1x1xf32>
    %61 = arith.divf %59, %60 : vector<1x1xf32>
    %62 = vector.broadcast %61 : vector<1x1xf32> to vector<1x128xf32>
    %63 = arith.subf %51, %62 : vector<1x128xf32>
    %64 = arith.mulf %63, %63 : vector<1x128xf32>
    %cst_31 = arith.constant dense<0.000000e+00> : vector<1xf32>
    %65 = vector.multi_reduction <add>, %64, %cst_31 [1] : vector<1x128xf32> to vector<1xf32>
    %66 = vector.shape_cast %65 : vector<1xf32> to vector<1x1xf32>
    %cst_32 = arith.constant 1.280000e+02 : f32
    %67 = vector.broadcast %cst_32 : f32 to vector<1x1xf32>
    %68 = arith.divf %66, %67 : vector<1x1xf32>
    %69 = vector.broadcast %61 : vector<1x1xf32> to vector<1x128xf32>
    %70 = arith.subf %51, %69 : vector<1x128xf32>
    %cst_33 = arith.constant 9.99999974E-6 : f32
    %71 = vector.broadcast %cst_33 : f32 to vector<1x1xf32>
    %72 = arith.addf %68, %71 : vector<1x1xf32>
    %73 = math.rsqrt %72 : vector<1x1xf32>
    %74 = vector.broadcast %73 : vector<1x1xf32> to vector<1x128xf32>
    %75 = arith.mulf %70, %74 : vector<1x128xf32>
    %76 = arith.mulf %75, %54 : vector<1x128xf32>
    %77 = arith.addf %76, %57 : vector<1x128xf32>
    %78 = arith.truncf %77 : vector<1x128xf32> to vector<1x128xbf16>
    %79 = arith.index_cast %c0_i32 : i32 to index
    %c0_34 = arith.constant 0 : index
    %c0_35 = arith.constant 0 : index
    %80 = vector.load %arg12[%79, %c0_34, %c0_35] : memref<2x128x512xbf16, #tpu.memory_space<vmem>>, vector<1x128x512xbf16>
    %81 = vector.shape_cast %80 : vector<1x128x512xbf16> to vector<128x512xbf16>
    %cst_36 = arith.constant dense<0.000000e+00> : vector<1x512xf32>
    %82 = tpu.matmul %78, %81, %cst_36 {dimension_numbers = #tpu.dot_dimension_numbers<[1], [0], [0], [1], [0, 0, 1, 1], [], []>} : vector<1x128xbf16>, vector<128x512xbf16>, vector<1x512xf32> -> vector<1x512xf32>
    %83 = arith.index_cast %c0_i32 : i32 to index
    %c0_37 = arith.constant 0 : index
    %c0_38 = arith.constant 0 : index
    %84 = vector.load %arg13[%83, %c0_37, %c0_38] : memref<2x1x512xf32, #tpu.memory_space<vmem>>, vector<1x1x512xf32>
    %85 = vector.shape_cast %84 : vector<1x1x512xf32> to vector<1x512xf32>
    %86 = arith.addf %82, %85 : vector<1x512xf32>
    %cst_39 = arith.constant 0.000000e+00 : f32
    %87 = vector.broadcast %cst_39 : f32 to vector<1x512xf32>
    %88 = arith.maximumf %86, %87 : vector<1x512xf32>
    %89 = arith.truncf %88 : vector<1x512xf32> to vector<1x512xbf16>
    %90 = arith.index_cast %c0_i32 : i32 to index
    %c0_40 = arith.constant 0 : index
    %c0_41 = arith.constant 0 : index
    %91 = vector.load %arg14[%90, %c0_40, %c0_41] : memref<2x512x128xbf16, #tpu.memory_space<vmem>>, vector<1x512x128xbf16>
    %92 = vector.shape_cast %91 : vector<1x512x128xbf16> to vector<512x128xbf16>
    %cst_42 = arith.constant dense<0.000000e+00> : vector<1x128xf32>
    %93 = tpu.matmul %89, %92, %cst_42 {dimension_numbers = #tpu.dot_dimension_numbers<[1], [0], [0], [1], [0, 0, 1, 1], [], []>} : vector<1x512xbf16>, vector<512x128xbf16>, vector<1x128xf32> -> vector<1x128xf32>
    %94 = arith.index_cast %c0_i32 : i32 to index
    %c0_43 = arith.constant 0 : index
    %c0_44 = arith.constant 0 : index
    %95 = vector.load %arg15[%94, %c0_43, %c0_44] : memref<2x1x128xf32, #tpu.memory_space<vmem>>, vector<1x1x128xf32>
    %96 = vector.shape_cast %95 : vector<1x1x128xf32> to vector<1x128xf32>
    %97 = arith.addf %93, %96 : vector<1x128xf32>
    %98 = arith.addf %77, %97 : vector<1x128xf32>
    %99 = arith.index_cast %c0_i32 : i32 to index
    %c0_45 = arith.constant 0 : index
    %c0_46 = arith.constant 0 : index
    %100 = vector.load %arg16[%99, %c0_45, %c0_46] : memref<2x1x128xf32, #tpu.memory_space<vmem>>, vector<1x1x128xf32>
    %101 = vector.shape_cast %100 : vector<1x1x128xf32> to vector<1x128xf32>
    %102 = arith.index_cast %c0_i32 : i32 to index
    %c0_47 = arith.constant 0 : index
    %c0_48 = arith.constant 0 : index
    %103 = vector.load %arg17[%102, %c0_47, %c0_48] : memref<2x1x128xf32, #tpu.memory_space<vmem>>, vector<1x1x128xf32>
    %104 = vector.shape_cast %103 : vector<1x1x128xf32> to vector<1x128xf32>
    %cst_49 = arith.constant dense<0.000000e+00> : vector<1xf32>
    %105 = vector.multi_reduction <add>, %98, %cst_49 [1] : vector<1x128xf32> to vector<1xf32>
    %106 = vector.shape_cast %105 : vector<1xf32> to vector<1x1xf32>
    %cst_50 = arith.constant 1.280000e+02 : f32
    %107 = vector.broadcast %cst_50 : f32 to vector<1x1xf32>
    %108 = arith.divf %106, %107 : vector<1x1xf32>
    %109 = vector.broadcast %108 : vector<1x1xf32> to vector<1x128xf32>
    %110 = arith.subf %98, %109 : vector<1x128xf32>
    %111 = arith.mulf %110, %110 : vector<1x128xf32>
    %cst_51 = arith.constant dense<0.000000e+00> : vector<1xf32>
    %112 = vector.multi_reduction <add>, %111, %cst_51 [1] : vector<1x128xf32> to vector<1xf32>
    %113 = vector.shape_cast %112 : vector<1xf32> to vector<1x1xf32>
    %cst_52 = arith.constant 1.280000e+02 : f32
    %114 = vector.broadcast %cst_52 : f32 to vector<1x1xf32>
    %115 = arith.divf %113, %114 : vector<1x1xf32>
    %116 = vector.broadcast %108 : vector<1x1xf32> to vector<1x128xf32>
    %117 = arith.subf %98, %116 : vector<1x128xf32>
    %cst_53 = arith.constant 9.99999974E-6 : f32
    %118 = vector.broadcast %cst_53 : f32 to vector<1x1xf32>
    %119 = arith.addf %115, %118 : vector<1x1xf32>
    %120 = math.rsqrt %119 : vector<1x1xf32>
    %121 = vector.broadcast %120 : vector<1x1xf32> to vector<1x128xf32>
    %122 = arith.mulf %117, %121 : vector<1x128xf32>
    %123 = arith.mulf %122, %101 : vector<1x128xf32>
    %124 = arith.addf %123, %104 : vector<1x128xf32>
    %c1_i32 = arith.constant 1 : i32
    %125 = arith.truncf %124 : vector<1x128xf32> to vector<1x128xbf16>
    %126 = arith.index_cast %c1_i32 : i32 to index
    %c0_54 = arith.constant 0 : index
    %c0_55 = arith.constant 0 : index
    %127 = vector.load %arg4[%126, %c0_54, %c0_55] : memref<2x128x128xbf16, #tpu.memory_space<vmem>>, vector<1x128x128xbf16>
    %128 = vector.shape_cast %127 : vector<1x128x128xbf16> to vector<128x128xbf16>
    %cst_56 = arith.constant dense<0.000000e+00> : vector<1x128xf32>
    %129 = tpu.matmul %125, %128, %cst_56 {dimension_numbers = #tpu.dot_dimension_numbers<[1], [0], [0], [1], [0, 0, 1, 1], [], []>} : vector<1x128xbf16>, vector<128x128xbf16>, vector<1x128xf32> -> vector<1x128xf32>
    %130 = arith.index_cast %c1_i32 : i32 to index
    %c0_57 = arith.constant 0 : index
    %c0_58 = arith.constant 0 : index
    %131 = vector.load %arg6[%130, %c0_57, %c0_58] : memref<2x1x128xf32, #tpu.memory_space<vmem>>, vector<1x1x128xf32>
    %132 = vector.shape_cast %131 : vector<1x1x128xf32> to vector<1x128xf32>
    %133 = arith.addf %129, %132 : vector<1x128xf32>
    %134 = arith.index_cast %c1_i32 : i32 to index
    %c0_59 = arith.constant 0 : index
    %c0_60 = arith.constant 0 : index
    %135 = vector.load %arg5[%134, %c0_59, %c0_60] : memref<2x128x256xbf16, #tpu.memory_space<vmem>>, vector<1x128x256xbf16>
    %136 = vector.shape_cast %135 : vector<1x128x256xbf16> to vector<128x256xbf16>
    %cst_61 = arith.constant dense<0.000000e+00> : vector<8x256xf32>
    %137 = tpu.matmul %4, %136, %cst_61 {dimension_numbers = #tpu.dot_dimension_numbers<[1], [0], [0], [1], [0, 0, 1, 1], [], []>} : vector<8x128xbf16>, vector<128x256xbf16>, vector<8x256xf32> -> vector<8x256xf32>
    %138 = arith.index_cast %c1_i32 : i32 to index
    %c0_62 = arith.constant 0 : index
    %c0_63 = arith.constant 0 : index
    %139 = vector.load %arg7[%138, %c0_62, %c0_63] : memref<2x1x256xf32, #tpu.memory_space<vmem>>, vector<1x1x256xf32>
    %140 = vector.shape_cast %139 : vector<1x1x256xf32> to vector<1x256xf32>
    %141 = vector.broadcast %140 : vector<1x256xf32> to vector<8x256xf32>
    %142 = arith.addf %137, %141 : vector<8x256xf32>
    %143 = vector.extract_strided_slice %142 {offsets = [0, 0], sizes = [8, 128], strides = [1, 1]} : vector<8x256xf32> to vector<8x128xf32>
    %144 = vector.extract_strided_slice %142 {offsets = [0, 128], sizes = [8, 128], strides = [1, 1]} : vector<8x256xf32> to vector<8x128xf32>
    %145 = vector.broadcast %133 : vector<1x128xf32> to vector<8x128xf32>
    %146 = arith.mulf %143, %145 : vector<8x128xf32>
    %cst_64 = arith.constant dense<0.000000e+00> : vector<8x128xf32>
    %147 = tpu.matmul %146, %5, %cst_64 {dimension_numbers = #tpu.dot_dimension_numbers<[1], [0], [0], [1], [0, 0, 1, 1], [], []>} : vector<8x128xf32>, vector<128x128xf32>, vector<8x128xf32> -> vector<8x128xf32>
    %cst_65 = arith.constant dense<0xFF800000> : vector<128xf32>
    %148 = vector.multi_reduction <maximumf>, %147, %cst_65 [0] : vector<8x128xf32> to vector<128xf32>
    %149 = vector.shape_cast %148 : vector<128xf32> to vector<1x128xf32>
    %150 = vector.broadcast %149 : vector<1x128xf32> to vector<8x128xf32>
    %151 = arith.subf %147, %150 : vector<8x128xf32>
    %152 = math.exp %151 : vector<8x128xf32>
    %cst_66 = arith.constant dense<0.000000e+00> : vector<128xf32>
    %153 = vector.multi_reduction <add>, %152, %cst_66 [0] : vector<8x128xf32> to vector<128xf32>
    %154 = vector.shape_cast %153 : vector<128xf32> to vector<1x128xf32>
    %155 = tpu.reciprocal %154 {approx = true} : vector<1x128xf32> -> vector<1x128xf32>
    %156 = vector.broadcast %155 : vector<1x128xf32> to vector<8x128xf32>
    %157 = arith.mulf %152, %156 : vector<8x128xf32>
    %158 = arith.mulf %157, %144 : vector<8x128xf32>
    %cst_67 = arith.constant dense<0.000000e+00> : vector<128xf32>
    %159 = vector.multi_reduction <add>, %158, %cst_67 [0] : vector<8x128xf32> to vector<128xf32>
    %160 = vector.shape_cast %159 : vector<128xf32> to vector<1x128xf32>
    %161 = arith.truncf %160 : vector<1x128xf32> to vector<1x128xbf16>
    %162 = arith.index_cast %c1_i32 : i32 to index
    %c0_68 = arith.constant 0 : index
    %c0_69 = arith.constant 0 : index
    %163 = vector.load %arg8[%162, %c0_68, %c0_69] : memref<2x128x128xbf16, #tpu.memory_space<vmem>>, vector<1x128x128xbf16>
    %164 = vector.shape_cast %163 : vector<1x128x128xbf16> to vector<128x128xbf16>
    %cst_70 = arith.constant dense<0.000000e+00> : vector<1x128xf32>
    %165 = tpu.matmul %161, %164, %cst_70 {dimension_numbers = #tpu.dot_dimension_numbers<[1], [0], [0], [1], [0, 0, 1, 1], [], []>} : vector<1x128xbf16>, vector<128x128xbf16>, vector<1x128xf32> -> vector<1x128xf32>
    %166 = arith.index_cast %c1_i32 : i32 to index
    %c0_71 = arith.constant 0 : index
    %c0_72 = arith.constant 0 : index
    %167 = vector.load %arg9[%166, %c0_71, %c0_72] : memref<2x1x128xf32, #tpu.memory_space<vmem>>, vector<1x1x128xf32>
    %168 = vector.shape_cast %167 : vector<1x1x128xf32> to vector<1x128xf32>
    %169 = arith.addf %165, %168 : vector<1x128xf32>
    %170 = arith.addf %124, %169 : vector<1x128xf32>
    %171 = arith.index_cast %c1_i32 : i32 to index
    %c0_73 = arith.constant 0 : index
    %c0_74 = arith.constant 0 : index
    %172 = vector.load %arg10[%171, %c0_73, %c0_74] : memref<2x1x128xf32, #tpu.memory_space<vmem>>, vector<1x1x128xf32>
    %173 = vector.shape_cast %172 : vector<1x1x128xf32> to vector<1x128xf32>
    %174 = arith.index_cast %c1_i32 : i32 to index
    %c0_75 = arith.constant 0 : index
    %c0_76 = arith.constant 0 : index
    %175 = vector.load %arg11[%174, %c0_75, %c0_76] : memref<2x1x128xf32, #tpu.memory_space<vmem>>, vector<1x1x128xf32>
    %176 = vector.shape_cast %175 : vector<1x1x128xf32> to vector<1x128xf32>
    %cst_77 = arith.constant dense<0.000000e+00> : vector<1xf32>
    %177 = vector.multi_reduction <add>, %170, %cst_77 [1] : vector<1x128xf32> to vector<1xf32>
    %178 = vector.shape_cast %177 : vector<1xf32> to vector<1x1xf32>
    %cst_78 = arith.constant 1.280000e+02 : f32
    %179 = vector.broadcast %cst_78 : f32 to vector<1x1xf32>
    %180 = arith.divf %178, %179 : vector<1x1xf32>
    %181 = vector.broadcast %180 : vector<1x1xf32> to vector<1x128xf32>
    %182 = arith.subf %170, %181 : vector<1x128xf32>
    %183 = arith.mulf %182, %182 : vector<1x128xf32>
    %cst_79 = arith.constant dense<0.000000e+00> : vector<1xf32>
    %184 = vector.multi_reduction <add>, %183, %cst_79 [1] : vector<1x128xf32> to vector<1xf32>
    %185 = vector.shape_cast %184 : vector<1xf32> to vector<1x1xf32>
    %cst_80 = arith.constant 1.280000e+02 : f32
    %186 = vector.broadcast %cst_80 : f32 to vector<1x1xf32>
    %187 = arith.divf %185, %186 : vector<1x1xf32>
    %188 = vector.broadcast %180 : vector<1x1xf32> to vector<1x128xf32>
    %189 = arith.subf %170, %188 : vector<1x128xf32>
    %cst_81 = arith.constant 9.99999974E-6 : f32
    %190 = vector.broadcast %cst_81 : f32 to vector<1x1xf32>
    %191 = arith.addf %187, %190 : vector<1x1xf32>
    %192 = math.rsqrt %191 : vector<1x1xf32>
    %193 = vector.broadcast %192 : vector<1x1xf32> to vector<1x128xf32>
    %194 = arith.mulf %189, %193 : vector<1x128xf32>
    %195 = arith.mulf %194, %173 : vector<1x128xf32>
    %196 = arith.addf %195, %176 : vector<1x128xf32>
    %197 = arith.truncf %196 : vector<1x128xf32> to vector<1x128xbf16>
    %198 = arith.index_cast %c1_i32 : i32 to index
    %c0_82 = arith.constant 0 : index
    %c0_83 = arith.constant 0 : index
    %199 = vector.load %arg12[%198, %c0_82, %c0_83] : memref<2x128x512xbf16, #tpu.memory_space<vmem>>, vector<1x128x512xbf16>
    %200 = vector.shape_cast %199 : vector<1x128x512xbf16> to vector<128x512xbf16>
    %cst_84 = arith.constant dense<0.000000e+00> : vector<1x512xf32>
    %201 = tpu.matmul %197, %200, %cst_84 {dimension_numbers = #tpu.dot_dimension_numbers<[1], [0], [0], [1], [0, 0, 1, 1], [], []>} : vector<1x128xbf16>, vector<128x512xbf16>, vector<1x512xf32> -> vector<1x512xf32>
    %202 = arith.index_cast %c1_i32 : i32 to index
    %c0_85 = arith.constant 0 : index
    %c0_86 = arith.constant 0 : index
    %203 = vector.load %arg13[%202, %c0_85, %c0_86] : memref<2x1x512xf32, #tpu.memory_space<vmem>>, vector<1x1x512xf32>
    %204 = vector.shape_cast %203 : vector<1x1x512xf32> to vector<1x512xf32>
    %205 = arith.addf %201, %204 : vector<1x512xf32>
    %cst_87 = arith.constant 0.000000e+00 : f32
    %206 = vector.broadcast %cst_87 : f32 to vector<1x512xf32>
    %207 = arith.maximumf %205, %206 : vector<1x512xf32>
    %208 = arith.truncf %207 : vector<1x512xf32> to vector<1x512xbf16>
    %209 = arith.index_cast %c1_i32 : i32 to index
    %c0_88 = arith.constant 0 : index
    %c0_89 = arith.constant 0 : index
    %210 = vector.load %arg14[%209, %c0_88, %c0_89] : memref<2x512x128xbf16, #tpu.memory_space<vmem>>, vector<1x512x128xbf16>
    %211 = vector.shape_cast %210 : vector<1x512x128xbf16> to vector<512x128xbf16>
    %cst_90 = arith.constant dense<0.000000e+00> : vector<1x128xf32>
    %212 = tpu.matmul %208, %211, %cst_90 {dimension_numbers = #tpu.dot_dimension_numbers<[1], [0], [0], [1], [0, 0, 1, 1], [], []>} : vector<1x512xbf16>, vector<512x128xbf16>, vector<1x128xf32> -> vector<1x128xf32>
    %213 = arith.index_cast %c1_i32 : i32 to index
    %c0_91 = arith.constant 0 : index
    %c0_92 = arith.constant 0 : index
    %214 = vector.load %arg15[%213, %c0_91, %c0_92] : memref<2x1x128xf32, #tpu.memory_space<vmem>>, vector<1x1x128xf32>
    %215 = vector.shape_cast %214 : vector<1x1x128xf32> to vector<1x128xf32>
    %216 = arith.addf %212, %215 : vector<1x128xf32>
    %217 = arith.addf %196, %216 : vector<1x128xf32>
    %218 = arith.index_cast %c1_i32 : i32 to index
    %c0_93 = arith.constant 0 : index
    %c0_94 = arith.constant 0 : index
    %219 = vector.load %arg16[%218, %c0_93, %c0_94] : memref<2x1x128xf32, #tpu.memory_space<vmem>>, vector<1x1x128xf32>
    %220 = vector.shape_cast %219 : vector<1x1x128xf32> to vector<1x128xf32>
    %221 = arith.index_cast %c1_i32 : i32 to index
    %c0_95 = arith.constant 0 : index
    %c0_96 = arith.constant 0 : index
    %222 = vector.load %arg17[%221, %c0_95, %c0_96] : memref<2x1x128xf32, #tpu.memory_space<vmem>>, vector<1x1x128xf32>
    %223 = vector.shape_cast %222 : vector<1x1x128xf32> to vector<1x128xf32>
    %cst_97 = arith.constant dense<0.000000e+00> : vector<1xf32>
    %224 = vector.multi_reduction <add>, %217, %cst_97 [1] : vector<1x128xf32> to vector<1xf32>
    %225 = vector.shape_cast %224 : vector<1xf32> to vector<1x1xf32>
    %cst_98 = arith.constant 1.280000e+02 : f32
    %226 = vector.broadcast %cst_98 : f32 to vector<1x1xf32>
    %227 = arith.divf %225, %226 : vector<1x1xf32>
    %228 = vector.broadcast %227 : vector<1x1xf32> to vector<1x128xf32>
    %229 = arith.subf %217, %228 : vector<1x128xf32>
    %230 = arith.mulf %229, %229 : vector<1x128xf32>
    %cst_99 = arith.constant dense<0.000000e+00> : vector<1xf32>
    %231 = vector.multi_reduction <add>, %230, %cst_99 [1] : vector<1x128xf32> to vector<1xf32>
    %232 = vector.shape_cast %231 : vector<1xf32> to vector<1x1xf32>
    %cst_100 = arith.constant 1.280000e+02 : f32
    %233 = vector.broadcast %cst_100 : f32 to vector<1x1xf32>
    %234 = arith.divf %232, %233 : vector<1x1xf32>
    %235 = vector.broadcast %227 : vector<1x1xf32> to vector<1x128xf32>
    %236 = arith.subf %217, %235 : vector<1x128xf32>
    %cst_101 = arith.constant 9.99999974E-6 : f32
    %237 = vector.broadcast %cst_101 : f32 to vector<1x1xf32>
    %238 = arith.addf %234, %237 : vector<1x1xf32>
    %239 = math.rsqrt %238 : vector<1x1xf32>
    %240 = vector.broadcast %239 : vector<1x1xf32> to vector<1x128xf32>
    %241 = arith.mulf %236, %240 : vector<1x128xf32>
    %242 = arith.mulf %241, %220 : vector<1x128xf32>
    %243 = arith.addf %242, %223 : vector<1x128xf32>
    %c2_i32 = arith.constant 2 : i32
    %c0_102 = arith.constant 0 : index
    %c0_103 = arith.constant 0 : index
    %c0_104 = arith.constant 0 : index
    %244 = vector.load %arg18[%c0_102, %c0_103, %c0_104] : memref<1x1x128xf32, #tpu.memory_space<vmem>>, vector<1x1x128xf32>
    %245 = vector.shape_cast %244 : vector<1x1x128xf32> to vector<1x128xf32>
    %246 = vector.shape_cast %243 : vector<1x128xf32> to vector<1x1x128xf32>
    tpu.vector_store %arg18[%c0_102, %c0_103, %c0_104], %246 {strides = array<i32>} : memref<1x1x128xf32, #tpu.memory_space<vmem>>, vector<1x1x128xf32>,
    return
  }
  func.func @transform_0(%arg0: i32) -> (i32, i32, i32) {
    %c0_i32 = arith.constant 0 : i32
    %c0_i32_0 = arith.constant 0 : i32
    %c0_i32_1 = arith.constant 0 : i32
    return %arg0, %c0_i32, %c0_i32_0 : i32, i32, i32
  }
  func.func @transform_1(%arg0: i32) -> (i32, i32, i32) {
    %c0_i32 = arith.constant 0 : i32
    %c0_i32_0 = arith.constant 0 : i32
    %c0_i32_1 = arith.constant 0 : i32
    return %arg0, %c0_i32, %c0_i32_0 : i32, i32, i32
  }
  func.func @transform_2(%arg0: i32) -> (i32, i32) {
    %c0_i32 = arith.constant 0 : i32
    %c0_i32_0 = arith.constant 0 : i32
    %c0_i32_1 = arith.constant 0 : i32
    return %c0_i32, %c0_i32_0 : i32, i32
  }
  func.func @transform_3(%arg0: i32) -> (i32, i32, i32) {
    %c0_i32 = arith.constant 0 : i32
    %c0_i32_0 = arith.constant 0 : i32
    %c0_i32_1 = arith.constant 0 : i32
    %c0_i32_2 = arith.constant 0 : i32
    return %c0_i32, %c0_i32_0, %c0_i32_1 : i32, i32, i32
  }
  func.func @transform_4(%arg0: i32) -> (i32, i32, i32) {
    %c0_i32 = arith.constant 0 : i32
    %c0_i32_0 = arith.constant 0 : i32
    %c0_i32_1 = arith.constant 0 : i32
    %c0_i32_2 = arith.constant 0 : i32
    return %c0_i32, %c0_i32_0, %c0_i32_1 : i32, i32, i32
  }
  func.func @transform_5(%arg0: i32) -> (i32, i32, i32) {
    %c0_i32 = arith.constant 0 : i32
    %c0_i32_0 = arith.constant 0 : i32
    %c0_i32_1 = arith.constant 0 : i32
    %c0_i32_2 = arith.constant 0 : i32
    return %c0_i32, %c0_i32_0, %c0_i32_1 : i32, i32, i32
  }
  func.func @transform_6(%arg0: i32) -> (i32, i32, i32) {
    %c0_i32 = arith.constant 0 : i32
    %c0_i32_0 = arith.constant 0 : i32
    %c0_i32_1 = arith.constant 0 : i32
    %c0_i32_2 = arith.constant 0 : i32
    return %c0_i32, %c0_i32_0, %c0_i32_1 : i32, i32, i32
  }
  func.func @transform_7(%arg0: i32) -> (i32, i32, i32) {
    %c0_i32 = arith.constant 0 : i32
    %c0_i32_0 = arith.constant 0 : i32
    %c0_i32_1 = arith.constant 0 : i32
    %c0_i32_2 = arith.constant 0 : i32
    return %c0_i32, %c0_i32_0, %c0_i32_1 : i32, i32, i32
  }
  func.func @transform_8(%arg0: i32) -> (i32, i32, i32) {
    %c0_i32 = arith.constant 0 : i32
    %c0_i32_0 = arith.constant 0 : i32
    %c0_i32_1 = arith.constant 0 : i32
    %c0_i32_2 = arith.constant 0 : i32
    return %c0_i32, %c0_i32_0, %c0_i32_1 : i32, i32, i32
  }
  func.func @transform_9(%arg0: i32) -> (i32, i32, i32) {
    %c0_i32 = arith.constant 0 : i32
    %c0_i32_0 = arith.constant 0 : i32
    %c0_i32_1 = arith.constant 0 : i32
    %c0_i32_2 = arith.constant 0 : i32
    return %c0_i32, %c0_i32_0, %c0_i32_1 : i32, i32, i32
  }
  func.func @transform_10(%arg0: i32) -> (i32, i32, i32) {
    %c0_i32 = arith.constant 0 : i32
    %c0_i32_0 = arith.constant 0 : i32
    %c0_i32_1 = arith.constant 0 : i32
    %c0_i32_2 = arith.constant 0 : i32
    return %c0_i32, %c0_i32_0, %c0_i32_1 : i32, i32, i32
  }
  func.func @transform_11(%arg0: i32) -> (i32, i32, i32) {
    %c0_i32 = arith.constant 0 : i32
    %c0_i32_0 = arith.constant 0 : i32
    %c0_i32_1 = arith.constant 0 : i32
    %c0_i32_2 = arith.constant 0 : i32
    return %c0_i32, %c0_i32_0, %c0_i32_1 : i32, i32, i32
  }
  func.func @transform_12(%arg0: i32) -> (i32, i32, i32) {
    %c0_i32 = arith.constant 0 : i32
    %c0_i32_0 = arith.constant 0 : i32
    %c0_i32_1 = arith.constant 0 : i32
    %c0_i32_2 = arith.constant 0 : i32
    return %c0_i32, %c0_i32_0, %c0_i32_1 : i32, i32, i32
  }
  func.func @transform_13(%arg0: i32) -> (i32, i32, i32) {
    %c0_i32 = arith.constant 0 : i32
    %c0_i32_0 = arith.constant 0 : i32
    %c0_i32_1 = arith.constant 0 : i32
    %c0_i32_2 = arith.constant 0 : i32
    return %c0_i32, %c0_i32_0, %c0_i32_1 : i32, i32, i32
  }
  func.func @transform_14(%arg0: i32) -> (i32, i32, i32) {
    %c0_i32 = arith.constant 0 : i32
    %c0_i32_0 = arith.constant 0 : i32
    %c0_i32_1 = arith.constant 0 : i32
    %c0_i32_2 = arith.constant 0 : i32
    return %c0_i32, %c0_i32_0, %c0_i32_1 : i32, i32, i32
  }
  func.func @transform_15(%arg0: i32) -> (i32, i32, i32) {
    %c0_i32 = arith.constant 0 : i32
    %c0_i32_0 = arith.constant 0 : i32
    %c0_i32_1 = arith.constant 0 : i32
    %c0_i32_2 = arith.constant 0 : i32
    return %c0_i32, %c0_i32_0, %c0_i32_1 : i32, i32, i32
  }
  func.func @transform_16(%arg0: i32) -> (i32, i32, i32) {
    %c0_i32 = arith.constant 0 : i32
    %c0_i32_0 = arith.constant 0 : i32
    %c0_i32_1 = arith.constant 0 : i32
    %c0_i32_2 = arith.constant 0 : i32
    return %c0_i32, %c0_i32_0, %c0_i32_1 : i32, i32, i32
  }
  func.func @transform_17(%arg0: i32) -> (i32, i32, i32) {
    %c0_i32 = arith.constant 0 : i32
    %c0_i32_0 = arith.constant 0 : i32
    %c0_i32_1 = arith.constant 0 : i32
    return %arg0, %c0_i32, %c0_i32_0 : i32, i32, i32
  }
}

</mosaic_0001>

<llo_original>
// kernel: multimodal_interaction.1
$region0: #{multimodal_interaction.1}
  #allocation0 [shape = 'u32[]', space=smem, size = 0x4, offset = 0x4, fixed_abs, tag = 'smem constant byte address 0x4 - core index']
  #allocation1 [shape = 'u32[144,128]{1,0:T(1,128)}', space=vmem, size = 0x12000, scoped, tag = 'internal scratch']
  %s0 = inlined_call_operand.vmem [shape: f32[2,1,128], index: 0, kind: input, shape index: {}]
  %s1 = inlined_call_operand.hbm [shape: f32[2,8,128], index: 1, kind: input, shape index: {}]
  %s2 = inlined_call_operand.hbm [shape: f32[128,128], index: 2, kind: input, shape index: {}]
  %s3 = inlined_call_operand.hbm [shape: bf16[2,128,128], index: 3, kind: input, shape index: {}]
  %s4 = inlined_call_operand.hbm [shape: bf16[2,128,256], index: 4, kind: input, shape index: {}]
  %s5 = inlined_call_operand.vmem [shape: f32[2,1,128], index: 5, kind: input, shape index: {}]
  %s6 = inlined_call_operand.vmem [shape: f32[2,1,256], index: 6, kind: input, shape index: {}]
  %s7 = inlined_call_operand.hbm [shape: bf16[2,128,128], index: 7, kind: input, shape index: {}]
  %s8 = inlined_call_operand.vmem [shape: f32[2,1,128], index: 8, kind: input, shape index: {}]
  %s9 = inlined_call_operand.vmem [shape: f32[2,1,128], index: 9, kind: input, shape index: {}]
  %s10 = inlined_call_operand.hbm [shape: f32[2,1,128], index: 10, kind: input, shape index: {}]
  %s11 = inlined_call_operand.hbm [shape: bf16[2,128,512], index: 11, kind: input, shape index: {}]
  %s12 = inlined_call_operand.vmem [shape: f32[2,1,512], index: 12, kind: input, shape index: {}]
  %s13 = inlined_call_operand.hbm [shape: bf16[2,512,128], index: 13, kind: input, shape index: {}]
  %s14 = inlined_call_operand.hbm [shape: f32[2,1,128], index: 14, kind: input, shape index: {}]
  %s15 = inlined_call_operand.vmem [shape: f32[2,1,128], index: 15, kind: input, shape index: {}]
  %s16 = inlined_call_operand.hbm [shape: f32[2,1,128], index: 16, kind: input, shape index: {}]
  %s17 = inlined_call_operand.hbm [shape: f32[2,1,128], index: 17, kind: output, shape index: {}]
  %s18 = sld [smem:[#allocation0]]
  $region141: #{multimodal_interaction.1} parent=0
    _
  %s20 = ssub.s32 1, %s18
  %s21 = scalar_select 0, %s20, %s18
  $region1: #{multimodal_interaction.1} parent=0
    #allocation2 [shape = 'u8[8192]{0}', space=vmem, size = 0x2000, scoped, tag = 'input window, operand 1']
    #allocation3 [shape = 's32[2]{0}', space=sflag, size = 0x8, scoped, tag = 'scoped memory for multimodal_interaction.1']
    #allocation4 [shape = 's32[2]{0}', space=sflag, size = 0x8, scoped, tag = 'scoped memory for multimodal_interaction.1']
    #allocation5 [shape = 'u8[65536]{0}', space=vmem, size = 0x10000, scoped, tag = 'input window, operand 2, single buffered']
    #allocation6 [shape = 's32[1]{0}', space=sflag, size = 0x4, scoped, tag = 'scoped memory for multimodal_interaction.1']
    #allocation7 [shape = 'u8[65536]{0}', space=vmem, size = 0x10000, scoped, tag = 'input window, operand 3, single buffered']
    #allocation8 [shape = 'u8[131072]{0}', space=vmem, size = 0x20000, scoped, tag = 'input window, operand 4, single buffered']
    #allocation9 [shape = 's32[1]{0}', space=sflag, size = 0x4, scoped, tag = 'scoped memory for multimodal_interaction.1']
    #allocation10 [shape = 'u8[65536]{0}', space=vmem, size = 0x10000, scoped, tag = 'input window, operand 7, single buffered']
    #allocation11 [shape = 'u8[1024]{0}', space=vmem, size = 0x400, scoped, tag = 'input window, operand 10, single buffered']
    #allocation12 [shape = 's32[1]{0}', space=sflag, size = 0x4, scoped, tag = 'scoped memory for multimodal_interaction.1']
    #allocation13 [shape = 'u8[262144]{0}', space=vmem, size = 0x40000, scoped, tag = 'input window, operand 11, single buffered']
    #allocation14 [shape = 'u8[262144]{0}', space=vmem, size = 0x40000, scoped, tag = 'input window, operand 13, single buffered']
    #allocation15 [shape = 's32[1]{0}', space=sflag, size = 0x4, scoped, tag = 'scoped memory for multimodal_interaction.1']
    #allocation16 [shape = 'u8[1024]{0}', space=vmem, size = 0x400, scoped, tag = 'input window, operand 14, single buffered']
    #allocation17 [shape = 'u8[1024]{0}', space=vmem, size = 0x400, scoped, tag = 'input window, operand 16, single buffered']
    #allocation18 [shape = 's32[1]{0}', space=sflag, size = 0x4, scoped, tag = 'scoped memory for multimodal_interaction.1']
    #allocation19 [shape = 'u8[1024]{0}', space=vmem, size = 0x400, scoped, tag = 'output window, operand 0']
    %22 = vsyncpa [#allocation3], 0
    %s23 = scalar_lea.sflag [#allocation3], 1
    %24 = vsyncpa %s23, 0
    %25 = vsyncpa [#allocation6], 0
    %26 = vsyncpa [#allocation9], 0
    %27 = vsyncpa [#allocation12], 0
    %28 = vsyncpa [#allocation15], 0
    %29 = vsyncpa [#allocation18], 0
    %30 = vsyncpa [#allocation4], 0
    %s31 = scalar_lea.sflag [#allocation4], 1
    %32 = vsyncpa %s31, 0
    loop: start=0, step=1, limit=4
    $region2: #{multimodal_interaction.1} parent=1 // loop_pre_header
      _
    $region3: #{multimodal_interaction.1} parent=1 // loop_header
      %s34 = sphi 0, %s38
      %p35 = scmp.ge.s32.totalorder %s34, 4
      %s44 = sphi 0, %s46
      %s47 = sphi 0, %s44
      %s48 = sphi 0, %s47
      %s64 = sphi 0, %s48
      %s70 = sphi 0, %s72
      %s73 = sphi 0, %s70
      %s74 = sphi 0, %s73
      %s90 = sphi 0, %s74
      %s94 = sphi 0, %s94
      %s96 = sphi 0, %s94
      %s97 = sphi 0, %s96
      %s111 = sphi 0, %s97
      %s115 = sphi 0, %s115
      %s117 = sphi 0, %s115
      %s118 = sphi 0, %s117
      %s132 = sphi 0, %s118
      %s136 = sphi 0, %s136
      %s138 = sphi 0, %s136
      %s139 = sphi 0, %s138
      %s153 = sphi 0, %s139
      %s157 = sphi 0, %s157
      %s159 = sphi 0, %s157
      %s160 = sphi 0, %s159
      %s174 = sphi 0, %s160
      %s178 = sphi 0, %s178
      %s180 = sphi 0, %s178
      %s181 = sphi 0, %s180
      %s195 = sphi 0, %s181
      %s199 = sphi 0, %s199
      %s201 = sphi 0, %s199
      %s202 = sphi 0, %s201
      %s216 = sphi 0, %s202
      %s220 = sphi 0, %s220
      %s222 = sphi 0, %s220
      %s223 = sphi 0, %s222
      %s237 = sphi 0, %s223
      %s241 = sphi 0, %s241
      %s243 = sphi 0, %s241
      %s244 = sphi 0, %s243
      %s258 = sphi 0, %s244
      %s262 = sphi 0, %s262
      %s264 = sphi 0, %s262
      %s265 = sphi 0, %s264
      %s279 = sphi 0, %s265
      %s283 = sphi 0, %s283
      %s285 = sphi 0, %s283
      %s286 = sphi 0, %s285
      %s300 = sphi 0, %s286
      %s304 = sphi 0, %s304
      %s306 = sphi 0, %s304
      %s307 = sphi 0, %s306
      %s321 = sphi 0, %s307
      %s325 = sphi 0, %s325
      %s327 = sphi 0, %s325
      %s328 = sphi 0, %s327
      %s342 = sphi 0, %s328
      %s346 = sphi 0, %s346
      %s348 = sphi 0, %s346
      %s349 = sphi 0, %s348
      %s363 = sphi 0, %s349
      %s367 = sphi 0, %s367
      %s369 = sphi 0, %s367
      %s370 = sphi 0, %s369
      %s384 = sphi 0, %s370
      %s388 = sphi 0, %s388
      %s390 = sphi 0, %s388
      %s391 = sphi 0, %s390
      %s405 = sphi 0, %s391
      %s411 = sphi 0, %s413
      %s414 = sphi 0, %s411
      %s415 = sphi 0, %s414
      %s431 = sphi 0, %s415
    $region4: #{multimodal_interaction.1} parent=1 // loop_header_branch
      %37 = sbr.rel (%p35) target = $region8
    $region5: #{multimodal_interaction.1} parent=1 // loop_body
      %s39 = ssub.s32 %s34, 1
      %s40 = ssub.s32 %s34, 2
      %s41 = sadd.s32 %s34, 1
      %s42 = ssub.s32 %s34, %s41
      %p43 = scmp.eq.s32.totalorder %s42, 0
      %s45 = sadd.s32 %s44, 1
      %s46 = scalar_select %p43, %s44, %s45
      %p49 = pneg %p43
      %p50 = scmp.eq.s32.totalorder %s34, 1
      %p51 = por %p49, %p50
      %p52 = scmp.ne.s32.totalorder %s44, %s47
      %p53 = scmp.eq.s32.totalorder %s34, 0
      %p54 = por %p52, %p53
      %p55 = scmp.ne.s32.totalorder %s44, %s47
      %p56 = scmp.eq.s32.totalorder %s39, 1
      %p57 = por %p55, %p56
      %p58 = scmp.ne.s32.totalorder %s47, %s48
      %p59 = scmp.eq.s32.totalorder %s39, 0
      %p60 = por %p58, %p59
      %p61 = scmp.ne.s32.totalorder %s47, %s48
      %p62 = scmp.eq.s32.totalorder %s40, 1
      %p63 = por %p61, %p62
      %p65 = scmp.ne.s32.totalorder %s48, %s64
      %p66 = scmp.eq.s32.totalorder %s40, 0
      %p67 = por %p65, %p66
      %s68 = ssub.s32 %s34, %s41
      %p69 = scmp.eq.s32.totalorder %s68, 0
      %s71 = sadd.s32 %s70, 1
      %s72 = scalar_select %p69, %s70, %s71
      %p75 = pneg %p69
      %p76 = scmp.eq.s32.totalorder %s34, 1
      %p77 = por %p75, %p76
      %p78 = scmp.ne.s32.totalorder %s70, %s73
      %p79 = scmp.eq.s32.totalorder %s34, 0
      %p80 = por %p78, %p79
      %p81 = scmp.ne.s32.totalorder %s70, %s73
      %p82 = scmp.eq.s32.totalorder %s39, 1
      %p83 = por %p81, %p82
      %p84 = scmp.ne.s32.totalorder %s73, %s74
      %p85 = scmp.eq.s32.totalorder %s39, 0
      %p86 = por %p84, %p85
      %p87 = scmp.ne.s32.totalorder %s73, %s74
      %p88 = scmp.eq.s32.totalorder %s40, 1
      %p89 = por %p87, %p88
      %p91 = scmp.ne.s32.totalorder %s74, %s90
      %p92 = scmp.eq.s32.totalorder %s40, 0
      %p93 = por %p91, %p92
      %s95 = sadd.s32 %s94, 1
      %p98 = scmp.eq.s32.totalorder %s34, 1
      %p99 = scmp.ne.s32.totalorder %s94, %s96
      %p100 = scmp.eq.s32.totalorder %s34, 0
      %p101 = por %p99, %p100
      %p102 = scmp.ne.s32.totalorder %s94, %s96
      %p103 = scmp.eq.s32.totalorder %s39, 1
      %p104 = por %p102, %p103
      %p105 = scmp.ne.s32.totalorder %s96, %s97
      %p106 = scmp.eq.s32.totalorder %s39, 0
      %p107 = por %p105, %p106
      %p108 = scmp.ne.s32.totalorder %s96, %s97
      %p109 = scmp.eq.s32.totalorder %s40, 1
      %p110 = por %p108, %p109
      %p112 = scmp.ne.s32.totalorder %s97, %s111
      %p113 = scmp.eq.s32.totalorder %s40, 0
      %p114 = por %p112, %p113
      %s116 = sadd.s32 %s115, 1
      %p119 = scmp.eq.s32.totalorder %s34, 1
      %p120 = scmp.ne.s32.totalorder %s115, %s117
      %p121 = scmp.eq.s32.totalorder %s34, 0
      %p122 = por %p120, %p121
      %p123 = scmp.ne.s32.totalorder %s115, %s117
      %p124 = scmp.eq.s32.totalorder %s39, 1
      %p125 = por %p123, %p124
      %p126 = scmp.ne.s32.totalorder %s117, %s118
      %p127 = scmp.eq.s32.totalorder %s39, 0
      %p128 = por %p126, %p127
      %p129 = scmp.ne.s32.totalorder %s117, %s118
      %p130 = scmp.eq.s32.totalorder %s40, 1
      %p131 = por %p129, %p130
      %p133 = scmp.ne.s32.totalorder %s118, %s132
      %p134 = scmp.eq.s32.totalorder %s40, 0
      %p135 = por %p133, %p134
      %s137 = sadd.s32 %s136, 1
      %p140 = scmp.eq.s32.totalorder %s34, 1
      %p141 = scmp.ne.s32.totalorder %s136, %s138
      %p142 = scmp.eq.s32.totalorder %s34, 0
      %p143 = por %p141, %p142
      %p144 = scmp.ne.s32.totalorder %s136, %s138
      %p145 = scmp.eq.s32.totalorder %s39, 1
      %p146 = por %p144, %p145
      %p147 = scmp.ne.s32.totalorder %s138, %s139
      %p148 = scmp.eq.s32.totalorder %s39, 0
      %p149 = por %p147, %p148
      %p150 = scmp.ne.s32.totalorder %s138, %s139
      %p151 = scmp.eq.s32.totalorder %s40, 1
      %p152 = por %p150, %p151
      %p154 = scmp.ne.s32.totalorder %s139, %s153
      %p155 = scmp.eq.s32.totalorder %s40, 0
      %p156 = por %p154, %p155
      %s158 = sadd.s32 %s157, 1
      %p161 = scmp.eq.s32.totalorder %s34, 1
      %p162 = scmp.ne.s32.totalorder %s157, %s159
      %p163 = scmp.eq.s32.totalorder %s34, 0
      %p164 = por %p162, %p163
      %p165 = scmp.ne.s32.totalorder %s157, %s159
      %p166 = scmp.eq.s32.totalorder %s39, 1
      %p167 = por %p165, %p166
      %p168 = scmp.ne.s32.totalorder %s159, %s160
      %p169 = scmp.eq.s32.totalorder %s39, 0
      %p170 = por %p168, %p169
      %p171 = scmp.ne.s32.totalorder %s159, %s160
      %p172 = scmp.eq.s32.totalorder %s40, 1
      %p173 = por %p171, %p172
      %p175 = scmp.ne.s32.totalorder %s160, %s174
      %p176 = scmp.eq.s32.totalorder %s40, 0
      %p177 = por %p175, %p176
      %s179 = sadd.s32 %s178, 1
      %p182 = scmp.eq.s32.totalorder %s34, 1
      %p183 = scmp.ne.s32.totalorder %s178, %s180
      %p184 = scmp.eq.s32.totalorder %s34, 0
      %p185 = por %p183, %p184
      %p186 = scmp.ne.s32.totalorder %s178, %s180
      %p187 = scmp.eq.s32.totalorder %s39, 1
      %p188 = por %p186, %p187
      %p189 = scmp.ne.s32.totalorder %s180, %s181
      %p190 = scmp.eq.s32.totalorder %s39, 0
      %p191 = por %p189, %p190
      %p192 = scmp.ne.s32.totalorder %s180, %s181
      %p193 = scmp.eq.s32.totalorder %s40, 1
      %p194 = por %p192, %p193
      %p196 = scmp.ne.s32.totalorder %s181, %s195
      %p197 = scmp.eq.s32.totalorder %s40, 0
      %p198 = por %p196, %p197
      %s200 = sadd.s32 %s199, 1
      %p203 = scmp.eq.s32.totalorder %s34, 1
      %p204 = scmp.ne.s32.totalorder %s199, %s201
      %p205 = scmp.eq.s32.totalorder %s34, 0
      %p206 = por %p204, %p205
      %p207 = scmp.ne.s32.totalorder %s199, %s201
      %p208 = scmp.eq.s32.totalorder %s39, 1
      %p209 = por %p207, %p208
      %p210 = scmp.ne.s32.totalorder %s201, %s202
      %p211 = scmp.eq.s32.totalorder %s39, 0
      %p212 = por %p210, %p211
      %p213 = scmp.ne.s32.totalorder %s201, %s202
      %p214 = scmp.eq.s32.totalorder %s40, 1
      %p215 = por %p213, %p214
      %p217 = scmp.ne.s32.totalorder %s202, %s216
      %p218 = scmp.eq.s32.totalorder %s40, 0
      %p219 = por %p217, %p218
      %s221 = sadd.s32 %s220, 1
      %p224 = scmp.eq.s32.totalorder %s34, 1
      %p225 = scmp.ne.s32.totalorder %s220, %s222
      %p226 = scmp.eq.s32.totalorder %s34, 0
      %p227 = por %p225, %p226
      %p228 = scmp.ne.s32.totalorder %s220, %s222
      %p229 = scmp.eq.s32.totalorder %s39, 1
      %p230 = por %p228, %p229
      %p231 = scmp.ne.s32.totalorder %s222, %s223
      %p232 = scmp.eq.s32.totalorder %s39, 0
      %p233 = por %p231, %p232
      %p234 = scmp.ne.s32.totalorder %s222, %s223
      %p235 = scmp.eq.s32.totalorder %s40, 1
      %p236 = por %p234, %p235
      %p238 = scmp.ne.s32.totalorder %s223, %s237
      %p239 = scmp.eq.s32.totalorder %s40, 0
      %p240 = por %p238, %p239
      %s242 = sadd.s32 %s241, 1
      %p245 = scmp.eq.s32.totalorder %s34, 1
      %p246 = scmp.ne.s32.totalorder %s241, %s243
      %p247 = scmp.eq.s32.totalorder %s34, 0
      %p248 = por %p246, %p247
      %p249 = scmp.ne.s32.totalorder %s241, %s243
      %p250 = scmp.eq.s32.totalorder %s39, 1
      %p251 = por %p249, %p250
      %p252 = scmp.ne.s32.totalorder %s243, %s244
      %p253 = scmp.eq.s32.totalorder %s39, 0
      %p254 = por %p252, %p253
      %p255 = scmp.ne.s32.totalorder %s243, %s244
      %p256 = scmp.eq.s32.totalorder %s40, 1
      %p257 = por %p255, %p256
      %p259 = scmp.ne.s32.totalorder %s244, %s258
      %p260 = scmp.eq.s32.totalorder %s40, 0
      %p261 = por %p259, %p260
      %s263 = sadd.s32 %s262, 1
      %p266 = scmp.eq.s32.totalorder %s34, 1
      %p267 = scmp.ne.s32.totalorder %s262, %s264
      %p268 = scmp.eq.s32.totalorder %s34, 0
      %p269 = por %p267, %p268
      %p270 = scmp.ne.s32.totalorder %s262, %s264
      %p271 = scmp.eq.s32.totalorder %s39, 1
      %p272 = por %p270, %p271
      %p273 = scmp.ne.s32.totalorder %s264, %s265
      %p274 = scmp.eq.s32.totalorder %s39, 0
      %p275 = por %p273, %p274
      %p276 = scmp.ne.s32.totalorder %s264, %s265
      %p277 = scmp.eq.s32.totalorder %s40, 1
      %p278 = por %p276, %p277
      %p280 = scmp.ne.s32.totalorder %s265, %s279
      %p281 = scmp.eq.s32.totalorder %s40, 0
      %p282 = por %p280, %p281
      %s284 = sadd.s32 %s283, 1
      %p287 = scmp.eq.s32.totalorder %s34, 1
      %p288 = scmp.ne.s32.totalorder %s283, %s285
      %p289 = scmp.eq.s32.totalorder %s34, 0
      %p290 = por %p288, %p289
      %p291 = scmp.ne.s32.totalorder %s283, %s285
      %p292 = scmp.eq.s32.totalorder %s39, 1
      %p293 = por %p291, %p292
      %p294 = scmp.ne.s32.totalorder %s285, %s286
      %p295 = scmp.eq.s32.totalorder %s39, 0
      %p296 = por %p294, %p295
      %p297 = scmp.ne.s32.totalorder %s285, %s286
      %p298 = scmp.eq.s32.totalorder %s40, 1
      %p299 = por %p297, %p298
      %p301 = scmp.ne.s32.totalorder %s286, %s300
      %p302 = scmp.eq.s32.totalorder %s40, 0
      %p303 = por %p301, %p302
      %s305 = sadd.s32 %s304, 1
      %p308 = scmp.eq.s32.totalorder %s34, 1
      %p309 = scmp.ne.s32.totalorder %s304, %s306
      %p310 = scmp.eq.s32.totalorder %s34, 0
      %p311 = por %p309, %p310
      %p312 = scmp.ne.s32.totalorder %s304, %s306
      %p313 = scmp.eq.s32.totalorder %s39, 1
      %p314 = por %p312, %p313
      %p315 = scmp.ne.s32.totalorder %s306, %s307
      %p316 = scmp.eq.s32.totalorder %s39, 0
      %p317 = por %p315, %p316
      %p318 = scmp.ne.s32.totalorder %s306, %s307
      %p319 = scmp.eq.s32.totalorder %s40, 1
      %p320 = por %p318, %p319
      %p322 = scmp.ne.s32.totalorder %s307, %s321
      %p323 = scmp.eq.s32.totalorder %s40, 0
      %p324 = por %p322, %p323
      %s326 = sadd.s32 %s325, 1
      %p329 = scmp.eq.s32.totalorder %s34, 1
      %p330 = scmp.ne.s32.totalorder %s325, %s327
      %p331 = scmp.eq.s32.totalorder %s34, 0
      %p332 = por %p330, %p331
      %p333 = scmp.ne.s32.totalorder %s325, %s327
      %p334 = scmp.eq.s32.totalorder %s39, 1
      %p335 = por %p333, %p334
      %p336 = scmp.ne.s32.totalorder %s327, %s328
      %p337 = scmp.eq.s32.totalorder %s39, 0
      %p338 = por %p336, %p337
      %p339 = scmp.ne.s32.totalorder %s327, %s328
      %p340 = scmp.eq.s32.totalorder %s40, 1
      %p341 = por %p339, %p340
      %p343 = scmp.ne.s32.totalorder %s328, %s342
      %p344 = scmp.eq.s32.totalorder %s40, 0
      %p345 = por %p343, %p344
      %s347 = sadd.s32 %s346, 1
      %p350 = scmp.eq.s32.totalorder %s34, 1
      %p351 = scmp.ne.s32.totalorder %s346, %s348
      %p352 = scmp.eq.s32.totalorder %s34, 0
      %p353 = por %p351, %p352
      %p354 = scmp.ne.s32.totalorder %s346, %s348
      %p355 = scmp.eq.s32.totalorder %s39, 1
      %p356 = por %p354, %p355
      %p357 = scmp.ne.s32.totalorder %s348, %s349
      %p358 = scmp.eq.s32.totalorder %s39, 0
      %p359 = por %p357, %p358
      %p360 = scmp.ne.s32.totalorder %s348, %s349
      %p361 = scmp.eq.s32.totalorder %s40, 1
      %p362 = por %p360, %p361
      %p364 = scmp.ne.s32.totalorder %s349, %s363
      %p365 = scmp.eq.s32.totalorder %s40, 0
      %p366 = por %p364, %p365
      %s368 = sadd.s32 %s367, 1
      %p371 = scmp.eq.s32.totalorder %s34, 1
      %p372 = scmp.ne.s32.totalorder %s367, %s369
      %p373 = scmp.eq.s32.totalorder %s34, 0
      %p374 = por %p372, %p373
      %p375 = scmp.ne.s32.totalorder %s367, %s369
      %p376 = scmp.eq.s32.totalorder %s39, 1
      %p377 = por %p375, %p376
      %p378 = scmp.ne.s32.totalorder %s369, %s370
      %p379 = scmp.eq.s32.totalorder %s39, 0
      %p380 = por %p378, %p379
      %p381 = scmp.ne.s32.totalorder %s369, %s370
      %p382 = scmp.eq.s32.totalorder %s40, 1
      %p383 = por %p381, %p382
      %p385 = scmp.ne.s32.totalorder %s370, %s384
      %p386 = scmp.eq.s32.totalorder %s40, 0
      %p387 = por %p385, %p386
      %s389 = sadd.s32 %s388, 1
      %p392 = scmp.eq.s32.totalorder %s34, 1
      %p393 = scmp.ne.s32.totalorder %s388, %s390
      %p394 = scmp.eq.s32.totalorder %s34, 0
      %p395 = por %p393, %p394
      %p396 = scmp.ne.s32.totalorder %s388, %s390
      %p397 = scmp.eq.s32.totalorder %s39, 1
      %p398 = por %p396, %p397
      %p399 = scmp.ne.s32.totalorder %s390, %s391
      %p400 = scmp.eq.s32.totalorder %s39, 0
      %p401 = por %p399, %p400
      %p402 = scmp.ne.s32.totalorder %s390, %s391
      %p403 = scmp.eq.s32.totalorder %s40, 1
      %p404 = por %p402, %p403
      %p406 = scmp.ne.s32.totalorder %s391, %s405
      %p407 = scmp.eq.s32.totalorder %s40, 0
      %p408 = por %p406, %p407
      %s409 = ssub.s32 %s34, %s41
      %p410 = scmp.eq.s32.totalorder %s409, 0
      %s412 = sadd.s32 %s411, 1
      %s413 = scalar_select %p410, %s411, %s412
      %p416 = pneg %p410
      %p417 = scmp.eq.s32.totalorder %s34, 1
      %p418 = por %p416, %p417
      %p419 = scmp.ne.s32.totalorder %s411, %s414
      %p420 = scmp.eq.s32.totalorder %s34, 0
      %p421 = por %p419, %p420
      %p422 = scmp.ne.s32.totalorder %s411, %s414
      %p423 = scmp.eq.s32.totalorder %s39, 1
      %p424 = por %p422, %p423
      %p425 = scmp.ne.s32.totalorder %s414, %s415
      %p426 = scmp.eq.s32.totalorder %s39, 0
      %p427 = por %p425, %p426
      %p428 = scmp.ne.s32.totalorder %s414, %s415
      %p429 = scmp.eq.s32.totalorder %s40, 1
      %p430 = por %p428, %p429
      %p432 = scmp.ne.s32.totalorder %s415, %s431
      %p433 = scmp.eq.s32.totalorder %s40, 0
      %p434 = por %p432, %p433
      %p435 = scmp.le.s32.totalorder 1, %s34
      %p436 = scmp.lt.s32.totalorder %s34, 3
      %p437 = pnand %p435, %p436
      %p438 = pneg %p437
      // Predicated region
      $region9: #{multimodal_interaction.1} parent=5 // pred_check
        _
      $region10: #{multimodal_interaction.1} parent=5 // pred_check_branch
        %440 = sbr.rel (%p437) target = $region12
      $region11: #{multimodal_interaction.1} parent=5 // pred_region
        %s441 = ssub.s32 %s34, 1
        // Predicated region
        $region13: #{multimodal_interaction.1} parent=11 // pred_check
          %p442 = pneg %p107
        $region14: #{multimodal_interaction.1} parent=11 // pred_check_branch
          %444 = sbr.rel (%p442) target = $region16
        $region15: #{multimodal_interaction.1} parent=11 // pred_region
          %s446 = ssub.s32 2048, 2048
          %447 = vsyncadd [#allocation6], %s446
          %s448 = sshll.u32 [#allocation5], 4
          %s449 = int_to_ptr.vmem [resolvable:$true] %s448
          %454 = dma.hbm_to_vmem [thread:$0]  %s2, 2048, %s449, [#allocation6], 128, 128, 8
        $region16: #{multimodal_interaction.1} parent=11 // pred_fallthru
          _
        // Predicated region
        $region17: #{multimodal_interaction.1} parent=11 // pred_check
          %p455 = pneg %p128
        $region18: #{multimodal_interaction.1} parent=11 // pred_check_branch
          %457 = sbr.rel (%p455) target = $region20
        $region19: #{multimodal_interaction.1} parent=11 // pred_region
          %s459 = ssub.s32 2048, 2048
          %460 = vsyncadd [#allocation6], %s459
          %s461 = sshll.u32 [#allocation7], 4
          %s462 = int_to_ptr.vmem [resolvable:$true] %s461
          %467 = dma.hbm_to_vmem [thread:$0]  %s3, 2048, %s462, [#allocation6], 64, 64, 4
        $region20: #{multimodal_interaction.1} parent=11 // pred_fallthru
          _
        // Predicated region
        $region21: #{multimodal_interaction.1} parent=11 // pred_check
          %p468 = pneg %p149
        $region22: #{multimodal_interaction.1} parent=11 // pred_check_branch
          %470 = sbr.rel (%p468) target = $region24
        $region23: #{multimodal_interaction.1} parent=11 // pred_region
          %s472 = ssub.s32 4096, 4096
          %473 = vsyncadd [#allocation9], %s472
          %s474 = sshll.u32 [#allocation8], 4
          %s475 = int_to_ptr.vmem [resolvable:$true] %s474
          %480 = dma.hbm_to_vmem [thread:$0]  %s4, 4096, %s475, [#allocation9], 128, 128, 8
        $region24: #{multimodal_interaction.1} parent=11 // pred_fallthru
          _
        // Predicated region
        $region25: #{multimodal_interaction.1} parent=11 // pred_check
          %p481 = pneg %p170
        $region26: #{multimodal_interaction.1} parent=11 // pred_check_branch
          %483 = sbr.rel (%p481) target = $region28
        $region27: #{multimodal_interaction.1} parent=11 // pred_region
          _
        $region28: #{multimodal_interaction.1} parent=11 // pred_fallthru
          _
        // Predicated region
        $region29: #{multimodal_interaction.1} parent=11 // pred_check
          %p484 = pneg %p191
        $region30: #{multimodal_interaction.1} parent=11 // pred_check_branch
          %486 = sbr.rel (%p484) target = $region32
        $region31: #{multimodal_interaction.1} parent=11 // pred_region
          _
        $region32: #{multimodal_interaction.1} parent=11 // pred_fallthru
          _
        // Predicated region
        $region33: #{multimodal_interaction.1} parent=11 // pred_check
          %p487 = pneg %p212
        $region34: #{multimodal_interaction.1} parent=11 // pred_check_branch
          %489 = sbr.rel (%p487) target = $region36
        $region35: #{multimodal_interaction.1} parent=11 // pred_region
          %s491 = ssub.s32 2048, 2048
          %492 = vsyncadd [#allocation9], %s491
          %s493 = sshll.u32 [#allocation10], 4
          %s494 = int_to_ptr.vmem [resolvable:$true] %s493
          %499 = dma.hbm_to_vmem [thread:$0]  %s7, 2048, %s494, [#allocation9], 64, 64, 4
        $region36: #{multimodal_interaction.1} parent=11 // pred_fallthru
          _
        // Predicated region
        $region37: #{multimodal_interaction.1} parent=11 // pred_check
          %p500 = pneg %p233
        $region38: #{multimodal_interaction.1} parent=11 // pred_check_branch
          %502 = sbr.rel (%p500) target = $region40
        $region39: #{multimodal_interaction.1} parent=11 // pred_region
          _
        $region40: #{multimodal_interaction.1} parent=11 // pred_fallthru
          _
        // Predicated region
        $region41: #{multimodal_interaction.1} parent=11 // pred_check
          %p503 = pneg %p254
        $region42: #{multimodal_interaction.1} parent=11 // pred_check_branch
          %505 = sbr.rel (%p503) target = $region44
        $region43: #{multimodal_interaction.1} parent=11 // pred_region
          _
        $region44: #{multimodal_interaction.1} parent=11 // pred_fallthru
          _
        // Predicated region
        $region45: #{multimodal_interaction.1} parent=11 // pred_check
          %p506 = pneg %p275
        $region46: #{multimodal_interaction.1} parent=11 // pred_check_branch
          %508 = sbr.rel (%p506) target = $region48
        $region47: #{multimodal_interaction.1} parent=11 // pred_region
          %s510 = ssub.s32 32, 32
          %511 = vsyncadd [#allocation12], %s510
          %s512 = sshll.u32 [#allocation11], 4
          %s513 = int_to_ptr.vmem [resolvable:$true] %s512
          %518 = dma.hbm_to_vmem [thread:$0]  %s10, 32, %s513, [#allocation12], 16, 16, 1
        $region48: #{multimodal_interaction.1} parent=11 // pred_fallthru
          _
        // Predicated region
        $region49: #{multimodal_interaction.1} parent=11 // pred_check
          %p519 = pneg %p296
        $region50: #{multimodal_interaction.1} parent=11 // pred_check_branch
          %521 = sbr.rel (%p519) target = $region52
        $region51: #{multimodal_interaction.1} parent=11 // pred_region
          %s523 = ssub.s32 8192, 8192
          %524 = vsyncadd [#allocation12], %s523
          %s525 = sshll.u32 [#allocation13], 4
          %s526 = int_to_ptr.vmem [resolvable:$true] %s525
          %531 = dma.hbm_to_vmem [thread:$0]  %s11, 8192, %s526, [#allocation12], 256, 256, 16
        $region52: #{multimodal_interaction.1} parent=11 // pred_fallthru
          _
        // Predicated region
        $region53: #{multimodal_interaction.1} parent=11 // pred_check
          %p532 = pneg %p317
        $region54: #{multimodal_interaction.1} parent=11 // pred_check_branch
          %534 = sbr.rel (%p532) target = $region56
        $region55: #{multimodal_interaction.1} parent=11 // pred_region
          _
        $region56: #{multimodal_interaction.1} parent=11 // pred_fallthru
          _
        // Predicated region
        $region57: #{multimodal_interaction.1} parent=11 // pred_check
          %p535 = pneg %p338
        $region58: #{multimodal_interaction.1} parent=11 // pred_check_branch
          %537 = sbr.rel (%p535) target = $region60
        $region59: #{multimodal_interaction.1} parent=11 // pred_region
          %s539 = ssub.s32 8192, 8192
          %540 = vsyncadd [#allocation15], %s539
          %s541 = sshll.u32 [#allocation14], 4
          %s542 = int_to_ptr.vmem [resolvable:$true] %s541
          %547 = dma.hbm_to_vmem [thread:$0]  %s13, 8192, %s542, [#allocation15], 64, 64, 4
        $region60: #{multimodal_interaction.1} parent=11 // pred_fallthru
          _
        // Predicated region
        $region61: #{multimodal_interaction.1} parent=11 // pred_check
          %p548 = pneg %p359
        $region62: #{multimodal_interaction.1} parent=11 // pred_check_branch
          %550 = sbr.rel (%p548) target = $region64
        $region63: #{multimodal_interaction.1} parent=11 // pred_region
          %s552 = ssub.s32 32, 32
          %553 = vsyncadd [#allocation15], %s552
          %s554 = sshll.u32 [#allocation16], 4
          %s555 = int_to_ptr.vmem [resolvable:$true] %s554
          %560 = dma.hbm_to_vmem [thread:$0]  %s14, 32, %s555, [#allocation15], 16, 16, 1
        $region64: #{multimodal_interaction.1} parent=11 // pred_fallthru
          _
        // Predicated region
        $region65: #{multimodal_interaction.1} parent=11 // pred_check
          %p561 = pneg %p380
        $region66: #{multimodal_interaction.1} parent=11 // pred_check_branch
          %563 = sbr.rel (%p561) target = $region68
        $region67: #{multimodal_interaction.1} parent=11 // pred_region
          _
        $region68: #{multimodal_interaction.1} parent=11 // pred_fallthru
          _
        // Predicated region
        $region69: #{multimodal_interaction.1} parent=11 // pred_check
          %p564 = pneg %p401
        $region70: #{multimodal_interaction.1} parent=11 // pred_check_branch
          %566 = sbr.rel (%p564) target = $region72
        $region71: #{multimodal_interaction.1} parent=11 // pred_region
          %s568 = ssub.s32 32, 32
          %569 = vsyncadd [#allocation18], %s568
          %s570 = sshll.u32 [#allocation17], 4
          %s571 = int_to_ptr.vmem [resolvable:$true] %s570
          %576 = dma.hbm_to_vmem [thread:$0]  %s16, 32, %s571, [#allocation18], 16, 16, 1
        $region72: #{multimodal_interaction.1} parent=11 // pred_fallthru
          _
      $region12: #{multimodal_interaction.1} parent=5 // pred_fallthru
        _
      %p577 = scmp.lt.s32.totalorder %s34, 2
      // Predicated region
      $region73: #{multimodal_interaction.1} parent=5 // pred_check
        %p578 = pneg %p577
      $region74: #{multimodal_interaction.1} parent=5 // pred_check_branch
        %580 = sbr.rel (%p578) target = $region76
      $region75: #{multimodal_interaction.1} parent=5 // pred_region
        // Predicated region
        $region77: #{multimodal_interaction.1} parent=75 // pred_check
          %p581 = pneg %p54
        $region78: #{multimodal_interaction.1} parent=75 // pred_check_branch
          %583 = sbr.rel (%p581) target = $region80
        $region79: #{multimodal_interaction.1} parent=75 // pred_region
          %p584 = scmp.lt.s32.totalorder %s34, 1
          %s585 = scalar_select %p584, %s34, 1
          %s586 = scalar_lea.vmem %s0, %s585
        $region80: #{multimodal_interaction.1} parent=75 // pred_fallthru
          _
        // Predicated region
        $region81: #{multimodal_interaction.1} parent=75 // pred_check
          %p587 = pneg %p80
        $region82: #{multimodal_interaction.1} parent=75 // pred_check_branch
          %589 = sbr.rel (%p587) target = $region84
        $region83: #{multimodal_interaction.1} parent=75 // pred_region
          %s590 = sand.u32 %s70, 1
          %s591 = scalar_lea.sflag [#allocation3], %s590
          %s592 = sand.u32 %s70, 1
          %s593 = smul.addr %s592, 8
          %s594 = scalar_lea.vmem [#allocation2], %s593
          %s596 = ssub.s32 128, 128
          %597 = vsyncadd %s591, %s596
          %s598 = smul.addr %s34, 128
          %s599 = scalar_lea.hbm %s1, %s598
          %s601 = sshll.u32 %s594, 4
          %s602 = int_to_ptr.vmem [resolvable:$true] %s601
          %604 = dma.hbm_to_vmem [thread:$0]  %s599, 128, %s602, %s591
        $region84: #{multimodal_interaction.1} parent=75 // pred_fallthru
          _
      $region76: #{multimodal_interaction.1} parent=5 // pred_fallthru
        _
      %p605 = scmp.le.s32.totalorder 1, %s34
      %p606 = scmp.lt.s32.totalorder %s34, 3
      %p607 = pnand %p605, %p606
      %p608 = pneg %p607
      // Predicated region
      $region85: #{multimodal_interaction.1} parent=5 // pred_check
        _
      $region86: #{multimodal_interaction.1} parent=5 // pred_check_branch
        %610 = sbr.rel (%p607) target = $region88
      $region87: #{multimodal_interaction.1} parent=5 // pred_region
        %s611 = ssub.s32 %s34, 1
        %s612 = sand.u32 %s73, 1
        %s613 = scalar_lea.sflag [#allocation3], %s612
        %s614 = sand.u32 %s73, 1
        %s615 = smul.addr %s614, 8
        %s616 = scalar_lea.vmem [#allocation2], %s615
        // Predicated region
        $region89: #{multimodal_interaction.1} parent=87 // pred_check
          %p617 = pneg %p86
        $region90: #{multimodal_interaction.1} parent=87 // pred_check_branch
          %619 = sbr.rel (%p617) target = $region92
        $region91: #{multimodal_interaction.1} parent=87 // pred_region
          %620 = dma.done %s613, 128
        $region92: #{multimodal_interaction.1} parent=87 // pred_fallthru
          _
        // Predicated region
        $region93: #{multimodal_interaction.1} parent=87 // pred_check
          %p621 = pneg %p107
        $region94: #{multimodal_interaction.1} parent=87 // pred_check_branch
          %623 = sbr.rel (%p621) target = $region96
        $region95: #{multimodal_interaction.1} parent=87 // pred_region
          %624 = dma.done [#allocation6], 2048
        $region96: #{multimodal_interaction.1} parent=87 // pred_fallthru
          _
        // Predicated region
        $region97: #{multimodal_interaction.1} parent=87 // pred_check
          %p625 = pneg %p128
        $region98: #{multimodal_interaction.1} parent=87 // pred_check_branch
          %627 = sbr.rel (%p625) target = $region100
        $region99: #{multimodal_interaction.1} parent=87 // pred_region
          %628 = dma.done [#allocation6], 2048
        $region100: #{multimodal_interaction.1} parent=87 // pred_fallthru
          _
        // Predicated region
        $region101: #{multimodal_interaction.1} parent=87 // pred_check
          %p629 = pneg %p149
        $region102: #{multimodal_interaction.1} parent=87 // pred_check_branch
          %631 = sbr.rel (%p629) target = $region104
        $region103: #{multimodal_interaction.1} parent=87 // pred_region
          %632 = dma.done [#allocation9], 4096
        $region104: #{multimodal_interaction.1} parent=87 // pred_fallthru
          _
        // Predicated region
        $region105: #{multimodal_interaction.1} parent=87 // pred_check
          %p633 = pneg %p212
        $region106: #{multimodal_interaction.1} parent=87 // pred_check_branch
          %635 = sbr.rel (%p633) target = $region108
        $region107: #{multimodal_interaction.1} parent=87 // pred_region
          %636 = dma.done [#allocation9], 2048
        $region108: #{multimodal_interaction.1} parent=87 // pred_fallthru
          _
        // Predicated region
        $region109: #{multimodal_interaction.1} parent=87 // pred_check
          %p637 = pneg %p275
        $region110: #{multimodal_interaction.1} parent=87 // pred_check_branch
          %639 = sbr.rel (%p637) target = $region112
        $region111: #{multimodal_interaction.1} parent=87 // pred_region
          %640 = dma.done [#allocation12], 32
        $region112: #{multimodal_interaction.1} parent=87 // pred_fallthru
          _
        // Predicated region
        $region113: #{multimodal_interaction.1} parent=87 // pred_check
          %p641 = pneg %p296
        $region114: #{multimodal_interaction.1} parent=87 // pred_check_branch
          %643 = sbr.rel (%p641) target = $region116
        $region115: #{multimodal_interaction.1} parent=87 // pred_region
          %644 = dma.done [#allocation12], 8192
        $region116: #{multimodal_interaction.1} parent=87 // pred_fallthru
          _
        // Predicated region
        $region117: #{multimodal_interaction.1} parent=87 // pred_check
          %p645 = pneg %p338
        $region118: #{multimodal_interaction.1} parent=87 // pred_check_branch
          %647 = sbr.rel (%p645) target = $region120
        $region119: #{multimodal_interaction.1} parent=87 // pred_region
          %648 = dma.done [#allocation15], 8192
        $region120: #{multimodal_interaction.1} parent=87 // pred_fallthru
          _
        // Predicated region
        $region121: #{multimodal_interaction.1} parent=87 // pred_check
          %p649 = pneg %p359
        $region122: #{multimodal_interaction.1} parent=87 // pred_check_branch
          %651 = sbr.rel (%p649) target = $region124
        $region123: #{multimodal_interaction.1} parent=87 // pred_region
          %652 = dma.done [#allocation15], 32
        $region124: #{multimodal_interaction.1} parent=87 // pred_fallthru
          _
        // Predicated region
        $region125: #{multimodal_interaction.1} parent=87 // pred_check
          %p653 = pneg %p401
        $region126: #{multimodal_interaction.1} parent=87 // pred_check_branch
          %655 = sbr.rel (%p653) target = $region128
        $region127: #{multimodal_interaction.1} parent=87 // pred_region
          %656 = dma.done [#allocation18], 32
        $region128: #{multimodal_interaction.1} parent=87 // pred_fallthru
          _
        %p657 = scmp.lt.s32.totalorder %s39, 1
        %s658 = scalar_select %p657, %s39, 1
        %s659 = scalar_lea.vmem %s0, %s658
        %p660 = pneg %p60
        %p661 = pneg %p57
        %s662 = sand.u32 %s73, 1
        %s663 = scalar_lea.sflag [#allocation3], %s662
        %s664 = sand.u32 %s73, 1
        %s665 = smul.addr %s664, 8
        %s666 = scalar_lea.vmem [#allocation2], %s665
        %p667 = pneg %p86
        %p668 = pneg %p83
        %p669 = pneg %p107
        %p670 = pneg %p104
        %p671 = pneg %p128
        %p672 = pneg %p125
        %p673 = pneg %p149
        %p674 = pneg %p146
        %p675 = pneg %p170
        %p676 = pneg %p167
        %p677 = pneg %p191
        %p678 = pneg %p188
        %p679 = pneg %p212
        %p680 = pneg %p209
        %p681 = pneg %p233
        %p682 = pneg %p230
        %p683 = pneg %p254
        %p684 = pneg %p251
        %p685 = pneg %p275
        %p686 = pneg %p272
        %p687 = pneg %p296
        %p688 = pneg %p293
        %p689 = pneg %p317
        %p690 = pneg %p314
        %p691 = pneg %p338
        %p692 = pneg %p335
        %p693 = pneg %p359
        %p694 = pneg %p356
        %p695 = pneg %p380
        %p696 = pneg %p377
        %p697 = pneg %p401
        %p698 = pneg %p398
        %p699 = pneg %p427
        %p700 = pneg %p424
        %s701 = sand.u32 %s414, 1
        %s702 = scalar_lea.sflag [#allocation4], %s701
        %s703 = sand.u32 %s414, 1
        %s704 = scalar_lea.vmem [#allocation19], %s703
        %p705 = scmp.lt.s32.totalorder %s39, 1
        %s706 = scalar_select %p705, %s39, 1
        %s707 = scalar_lea.vmem %s0, %s706
        %v709 = vld [vmem:[%s707] sm:$0x1]
        %v710 = vld [vmem:[%s616] sm:$0xff]
        %v711 = vpack.c.bf16 %v710, %v710
        %v712 = vld [vmem:[#allocation5] sm:$0xff]
        %v713 = vld [vmem:[#allocation5 + $0x8] sm:$0xff]
        %v714 = vld [vmem:[#allocation5 + $0x10] sm:$0xff]
        %v715 = vld [vmem:[#allocation5 + $0x18] sm:$0xff]
        %v716 = vld [vmem:[#allocation5 + $0x20] sm:$0xff]
        %v717 = vld [vmem:[#allocation5 + $0x28] sm:$0xff]
        %v718 = vld [vmem:[#allocation5 + $0x30] sm:$0xff]
        %v719 = vld [vmem:[#allocation5 + $0x38] sm:$0xff]
        %v720 = vld [vmem:[#allocation5 + $0x40] sm:$0xff]
        %v721 = vld [vmem:[#allocation5 + $0x48] sm:$0xff]
        %v722 = vld [vmem:[#allocation5 + $0x50] sm:$0xff]
        %v723 = vld [vmem:[#allocation5 + $0x58] sm:$0xff]
        %v724 = vld [vmem:[#allocation5 + $0x60] sm:$0xff]
        %v725 = vld [vmem:[#allocation5 + $0x68] sm:$0xff]
        %v726 = vld [vmem:[#allocation5 + $0x70] sm:$0xff]
        %v727 = vld [vmem:[#allocation5 + $0x78] sm:$0xff]
        %v728 = vpack.c.bf16 %v709, %v709
        %v729 = vld [vmem:[#allocation7] sm:$0xf]
        %v730 = vld [vmem:[#allocation7 + $0x4] sm:$0xf]
        %v731 = vld [vmem:[#allocation7 + $0x8] sm:$0xf]
        %v732 = vld [vmem:[#allocation7 + $0xc] sm:$0xf]
        %v733 = vld [vmem:[#allocation7 + $0x10] sm:$0xf]
        %v734 = vld [vmem:[#allocation7 + $0x14] sm:$0xf]
        %v735 = vld [vmem:[#allocation7 + $0x18] sm:$0xf]
        %v736 = vld [vmem:[#allocation7 + $0x1c] sm:$0xf]
        %v737 = vld [vmem:[#allocation7 + $0x20] sm:$0xf]
        %v738 = vld [vmem:[#allocation7 + $0x24] sm:$0xf]
        %v739 = vld [vmem:[#allocation7 + $0x28] sm:$0xf]
        %v740 = vld [vmem:[#allocation7 + $0x2c] sm:$0xf]
        %v741 = vld [vmem:[#allocation7 + $0x30] sm:$0xf]
        %v742 = vld [vmem:[#allocation7 + $0x34] sm:$0xf]
        %v743 = vld [vmem:[#allocation7 + $0x38] sm:$0xf]
        %v744 = vld [vmem:[#allocation7 + $0x3c] sm:$0xf]
        %v745 = vld [vmem:[%s5] sm:$0x1]
        %v762 = vunpack.c.l.b16 %v729
        %v763 = vunpack.c.l.b16 %v730
        %v764 = vunpack.c.l.b16 %v731
        %v765 = vunpack.c.l.b16 %v732
        %v766 = vunpack.c.l.b16 %v733
        %v767 = vunpack.c.l.b16 %v734
        %v768 = vunpack.c.l.b16 %v735
        %v769 = vunpack.c.l.b16 %v736
        %v770 = vunpack.c.l.b16 %v737
        %v771 = vunpack.c.l.b16 %v738
        %v772 = vunpack.c.l.b16 %v739
        %v773 = vunpack.c.l.b16 %v740
        %v774 = vunpack.c.l.b16 %v741
        %v775 = vunpack.c.l.b16 %v742
        %v776 = vunpack.c.l.b16 %v743
        %v777 = vunpack.c.l.b16 %v744
        %v778 = vpack.c.b16 %v763, %v762
        %v779 = vpack.c.b16 %v765, %v764
        %v780 = vpack.c.b16 %v767, %v766
        %v781 = vpack.c.b16 %v769, %v768
        %v782 = vpack.c.b16 %v771, %v770
        %v783 = vpack.c.b16 %v773, %v772
        %v784 = vpack.c.b16 %v775, %v774
        %v785 = vpack.c.b16 %v777, %v776
        %794 = vmatprep.subr.bf16.mxu0 0
        %795 = vmatpush1.bf16.msra.mxu0 %v778
        %796 = vmatprep.subr.bf16.mxu0 0
        %797 = vmatpush1.bf16.msra.mxu0 %v779
        %798 = vmatprep.subr.bf16.mxu0 0
        %799 = vmatpush1.bf16.msra.mxu0 %v780
        %800 = vmatprep.subr.bf16.mxu0 0
        %801 = vmatpush1.bf16.msra.mxu0 %v781
        %802 = vmatprep.subr.bf16.mxu0 0
        %803 = vmatpush1.bf16.msra.mxu0 %v782
        %804 = vmatprep.subr.bf16.mxu0 0
        %805 = vmatpush1.bf16.msra.mxu0 %v783
        %806 = vmatprep.subr.bf16.mxu0 0
        %807 = vmatpush1.bf16.msra.mxu0 %v784
        %808 = vmatprep.subr.bf16.mxu0 0
        %809 = vmatpush1.bf16.msra.mxu0 %v785
        %810 = vmatprep.subr.bf16.mxu0 0
        %811 = vmatpush1.bf16.msra.mxu0 0
        %812 = vmatprep.subr.bf16.mxu0 0
        %813 = vmatpush1.bf16.msra.mxu0 0
        %814 = vmatprep.subr.bf16.mxu0 0
        %815 = vmatpush1.bf16.msra.mxu0 0
        %816 = vmatprep.subr.bf16.mxu0 0
        %817 = vmatpush1.bf16.msra.mxu0 0
        %818 = vmatprep.subr.bf16.mxu0 0
        %819 = vmatpush1.bf16.msra.mxu0 0
        %820 = vmatprep.subr.bf16.mxu0 0
        %821 = vmatpush1.bf16.msra.mxu0 0
        %822 = vmatprep.subr.bf16.mxu0 0
        %823 = vmatpush1.bf16.msra.mxu0 0
        %824 = vmatprep.subr.bf16.mxu0 0
        %825 = vmatpush1.bf16.msra.mxu0 0
        %826 = vmatprep.mubr.bf16.mxu0 0
        %827 = vmatmul.mubr.bf16.gmra.mrb[0].mxu0 %v728
        %v828 = vpop.f32.mrb[0].mxu0
        %v829 = vadd.f32 %v745, %v828
        %v830 = vpop.f32.mrb[0].mxu0
        %v831 = vpop.f32.mrb[0].mxu0
        %v832 = vpop.f32.mrb[0].mxu0
        %833 = vdwg.mxu0
        %v834 = vld [vmem:[#allocation8] sm:$0xff]
        %v835 = vld [vmem:[#allocation8 + $0x8] sm:$0xff]
        %v836 = vld [vmem:[#allocation8 + $0x10] sm:$0xff]
        %v837 = vld [vmem:[#allocation8 + $0x18] sm:$0xff]
        %v838 = vld [vmem:[#allocation8 + $0x20] sm:$0xff]
        %v839 = vld [vmem:[#allocation8 + $0x28] sm:$0xff]
        %v840 = vld [vmem:[#allocation8 + $0x30] sm:$0xff]
        %v841 = vld [vmem:[#allocation8 + $0x38] sm:$0xff]
        %v842 = vld [vmem:[#allocation8 + $0x40] sm:$0xff]
        %v843 = vld [vmem:[#allocation8 + $0x48] sm:$0xff]
        %v844 = vld [vmem:[#allocation8 + $0x50] sm:$0xff]
        %v845 = vld [vmem:[#allocation8 + $0x58] sm:$0xff]
        %v846 = vld [vmem:[#allocation8 + $0x60] sm:$0xff]
        %v847 = vld [vmem:[#allocation8 + $0x68] sm:$0xff]
        %v848 = vld [vmem:[#allocation8 + $0x70] sm:$0xff]
        %v849 = vld [vmem:[#allocation8 + $0x78] sm:$0xff]
        %v850 = vld [vmem:[%s6] sm:$0x3]
        %v852 = vlaneseq
        %v853 = vshrl.u32 %v852, 7
        %v854 = vsub.s32 0, %v853
        %v855 = vrot.slane %v850, %v854
        %v856 = vlaneseq
        %v857 = vshrl.u32 %v856, 7
        %v858 = vsub.s32 1, %v857
        %v859 = vrot.slane %v850, %v858
        %v878 = vunpack.c.l.b16 %v834
        %v879 = vunpack.c.h.b16 %v834
        %v880 = vunpack.c.l.b16 %v835
        %v881 = vunpack.c.h.b16 %v835
        %v882 = vunpack.c.l.b16 %v836
        %v883 = vunpack.c.h.b16 %v836
        %v884 = vunpack.c.l.b16 %v837
        %v885 = vunpack.c.h.b16 %v837
        %v886 = vunpack.c.l.b16 %v838
        %v887 = vunpack.c.h.b16 %v838
        %v888 = vunpack.c.l.b16 %v839
        %v889 = vunpack.c.h.b16 %v839
        %v890 = vunpack.c.l.b16 %v840
        %v891 = vunpack.c.h.b16 %v840
        %v892 = vunpack.c.l.b16 %v841
        %v893 = vunpack.c.h.b16 %v841
        %v894 = vunpack.c.l.b16 %v842
        %v895 = vunpack.c.h.b16 %v842
        %v896 = vunpack.c.l.b16 %v843
        %v897 = vunpack.c.h.b16 %v843
        %v898 = vunpack.c.l.b16 %v844
        %v899 = vunpack.c.h.b16 %v844
        %v900 = vunpack.c.l.b16 %v845
        %v901 = vunpack.c.h.b16 %v845
        %v902 = vunpack.c.l.b16 %v846
        %v903 = vunpack.c.h.b16 %v846
        %v904 = vunpack.c.l.b16 %v847
        %v905 = vunpack.c.h.b16 %v847
        %v906 = vunpack.c.l.b16 %v848
        %v907 = vunpack.c.h.b16 %v848
        %v908 = vunpack.c.l.b16 %v849
        %v909 = vunpack.c.h.b16 %v849
        %v910 = vpack.c.b16 %v880, %v878
        %v911 = vpack.c.b16 %v881, %v879
        %v912 = vpack.c.b16 %v884, %v882
        %v913 = vpack.c.b16 %v885, %v883
        %v914 = vpack.c.b16 %v888, %v886
        %v915 = vpack.c.b16 %v889, %v887
        %v916 = vpack.c.b16 %v892, %v890
        %v917 = vpack.c.b16 %v893, %v891
        %v918 = vpack.c.b16 %v896, %v894
        %v919 = vpack.c.b16 %v897, %v895
        %v920 = vpack.c.b16 %v900, %v898
        %v921 = vpack.c.b16 %v901, %v899
        %v922 = vpack.c.b16 %v904, %v902
        %v923 = vpack.c.b16 %v905, %v903
        %v924 = vpack.c.b16 %v908, %v906
        %v925 = vpack.c.b16 %v909, %v907
        %942 = vmatprep.subr.bf16.mxu0 %v911
        %943 = vmatpush1.bf16.msra.mxu0 %v910
        %944 = vmatprep.subr.bf16.mxu0 %v913
        %945 = vmatpush1.bf16.msra.mxu0 %v912
        %946 = vmatprep.subr.bf16.mxu0 %v915
        %947 = vmatpush1.bf16.msra.mxu0 %v914
        %948 = vmatprep.subr.bf16.mxu0 %v917
        %949 = vmatpush1.bf16.msra.mxu0 %v916
        %950 = vmatprep.subr.bf16.mxu0 %v919
        %951 = vmatpush1.bf16.msra.mxu0 %v918
        %952 = vmatprep.subr.bf16.mxu0 %v921
        %953 = vmatpush1.bf16.msra.mxu0 %v920
        %954 = vmatprep.subr.bf16.mxu0 %v923
        %955 = vmatpush1.bf16.msra.mxu0 %v922
        %956 = vmatprep.subr.bf16.mxu0 %v925
        %957 = vmatpush1.bf16.msra.mxu0 %v924
        %958 = vmatprep.subr.bf16.mxu0 0
        %959 = vmatpush1.bf16.msra.mxu0 0
        %960 = vmatprep.subr.bf16.mxu0 0
        %961 = vmatpush1.bf16.msra.mxu0 0
        %962 = vmatprep.subr.bf16.mxu0 0
        %963 = vmatpush1.bf16.msra.mxu0 0
        %964 = vmatprep.subr.bf16.mxu0 0
        %965 = vmatpush1.bf16.msra.mxu0 0
        %966 = vmatprep.subr.bf16.mxu0 0
        %967 = vmatpush1.bf16.msra.mxu0 0
        %968 = vmatprep.subr.bf16.mxu0 0
        %969 = vmatpush1.bf16.msra.mxu0 0
        %970 = vmatprep.subr.bf16.mxu0 0
        %971 = vmatpush1.bf16.msra.mxu0 0
        %972 = vmatprep.subr.bf16.mxu0 0
        %973 = vmatpush1.bf16.msra.mxu0 0
        %974 = vmatprep.mubr.bf16.mxu0 0
        %975 = vmatmul.mubr.bf16.gmra.mrb[0].mxu0 %v711
        %v976 = vpop.f32.mrb[0].mxu0
        %v977 = vadd.f32 %v855, %v976
        %v978 = vpop.f32.mrb[0].mxu0
        %v979 = vadd.f32 %v859, %v978
        %v980 = vpop.f32.mrb[0].mxu0
        %v981 = vpop.f32.mrb[0].mxu0
        %982 = vdwg.mxu0
        %v983 = vlaneseq
        %v984 = vshrl.u32 %v983, 7
        %v985 = vsub.s32 0, %v984
        %v986 = vrot.slane %v829, %v985
        %v987 = vmul.f32 %v977, %v986
        %988 = vmatprep.subr.mxu0 0.0
        %989 = vmatpush1.msra.mxu0 %v712
        %990 = vmatprep.subr.mxu0 0.0
        %991 = vmatpush1.msra.mxu0 %v713
        %992 = vmatprep.subr.mxu0 0.0
        %993 = vmatpush1.msra.mxu0 %v714
        %994 = vmatprep.subr.mxu0 0.0
        %995 = vmatpush1.msra.mxu0 %v715
        %996 = vmatprep.subr.mxu0 0.0
        %997 = vmatpush1.msra.mxu0 %v716
        %998 = vmatprep.subr.mxu0 0.0
        %999 = vmatpush1.msra.mxu0 %v717
        %1000 = vmatprep.subr.mxu0 0.0
        %1001 = vmatpush1.msra.mxu0 %v718
        %1002 = vmatprep.subr.mxu0 0.0
        %1003 = vmatpush1.msra.mxu0 %v719
        %1004 = vmatprep.subr.mxu0 0.0
        %1005 = vmatpush1.msra.mxu0 %v720
        %1006 = vmatprep.subr.mxu0 0.0
        %1007 = vmatpush1.msra.mxu0 %v721
        %1008 = vmatprep.subr.mxu0 0.0
        %1009 = vmatpush1.msra.mxu0 %v722
        %1010 = vmatprep.subr.mxu0 0.0
        %1011 = vmatpush1.msra.mxu0 %v723
        %1012 = vmatprep.subr.mxu0 0.0
        %1013 = vmatpush1.msra.mxu0 %v724
        %1014 = vmatprep.subr.mxu0 0.0
        %1015 = vmatpush1.msra.mxu0 %v725
        %1016 = vmatprep.subr.mxu0 0.0
        %1017 = vmatpush1.msra.mxu0 %v726
        %1018 = vmatprep.subr.mxu0 0.0
        %1019 = vmatpush1.msra.mxu0 %v727
        %1020 = vmatprep.subr.mxu0 0.0
        %1021 = vmatpush1.msra.mxu0 0.0
        %1022 = vmatprep.subr.mxu0 0.0
        %1023 = vmatpush1.msra.mxu0 0.0
        %1024 = vmatprep.subr.mxu0 0.0
        %1025 = vmatpush1.msra.mxu0 0.0
        %1026 = vmatprep.subr.mxu0 0.0
        %1027 = vmatpush1.msra.mxu0 0.0
        %1028 = vmatprep.subr.mxu0 0.0
        %1029 = vmatpush1.msra.mxu0 0.0
        %1030 = vmatprep.subr.mxu0 0.0
        %1031 = vmatpush1.msra.mxu0 0.0
        %1032 = vmatprep.subr.mxu0 0.0
        %1033 = vmatpush1.msra.mxu0 0.0
        %1034 = vmatprep.subr.mxu0 0.0
        %1035 = vmatpush1.msra.mxu0 0.0
        %1036 = vmatprep.subr.mxu0 0.0
        %1037 = vmatpush1.msra.mxu0 0.0
        %1038 = vmatprep.subr.mxu0 0.0
        %1039 = vmatpush1.msra.mxu0 0.0
        %1040 = vmatprep.subr.mxu0 0.0
        %1041 = vmatpush1.msra.mxu0 0.0
        %1042 = vmatprep.subr.mxu0 0.0
        %1043 = vmatpush1.msra.mxu0 0.0
        %1044 = vmatprep.subr.mxu0 0.0
        %1045 = vmatpush1.msra.mxu0 0.0
        %1046 = vmatprep.subr.mxu0 0.0
        %1047 = vmatpush1.msra.mxu0 0.0
        %1048 = vmatprep.subr.mxu0 0.0
        %1049 = vmatpush1.msra.mxu0 0.0
        %1050 = vmatprep.subr.mxu0 0.0
        %1051 = vmatpush1.msra.mxu0 0.0
        %1052 = vmatprep.mubr.f32.mxu0 0.0
        %1053 = vmatmul.mubr.f32.gmra.mrb[0].mxu0 %v987
        %v1054 = vpop.f32.mrb[0].mxu0
        %v1055 = vadd.f32 0.0, %v1054
        %v1056 = vpop.f32.mrb[0].mxu0
        %1057 = vdwg.mxu0
        %v1058 = vrot.slane %v1055, 4
        %v1059 = vmax.f32 %v1055, %v1058
        %v1060 = vrot.slane %v1059, 2
        %v1061 = vmax.f32 %v1059, %v1060
        %v1062 = vrot.slane %v1061, 1
        %v1063 = vmax.f32 %v1061, %v1062
        %v1064 = vsub.f32 %v1055, %v1063
        %v1065 = vmul.f32 %v1064, 1.442695
        %v1066 = vpow.pop %v1065
        %v1067 = vrot.slane %v1066, 4
        %v1068 = vadd.f32 %v1066, %v1067
        %v1069 = vrot.slane %v1068, 2
        %v1070 = vadd.f32 %v1068, %v1069
        %v1071 = vrot.slane %v1070, 1
        %v1072 = vadd.f32 %v1070, %v1071
        %v1073 = vrcp.pop %v1072
        %v1074 = vmul.f32 %v1066, %v1073
        %v1075 = vmul.f32 %v1074, %v979
        %v1076 = vrot.slane %v1075, 4
        %v1077 = vadd.f32 %v1075, %v1076
        %v1078 = vrot.slane %v1077, 2
        %v1079 = vadd.f32 %v1077, %v1078
        %v1080 = vrot.slane %v1079, 1
        %v1081 = vadd.f32 %v1079, %v1080
        %v1082 = vpack.c.bf16 %v1081, %v1081
        %v1083 = vld [vmem:[#allocation10] sm:$0xf]
        %v1084 = vld [vmem:[#allocation10 + $0x4] sm:$0xf]
        %v1085 = vld [vmem:[#allocation10 + $0x8] sm:$0xf]
        %v1086 = vld [vmem:[#allocation10 + $0xc] sm:$0xf]
        %v1087 = vld [vmem:[#allocation10 + $0x10] sm:$0xf]
        %v1088 = vld [vmem:[#allocation10 + $0x14] sm:$0xf]
        %v1089 = vld [vmem:[#allocation10 + $0x18] sm:$0xf]
        %v1090 = vld [vmem:[#allocation10 + $0x1c] sm:$0xf]
        %v1091 = vld [vmem:[#allocation10 + $0x20] sm:$0xf]
        %v1092 = vld [vmem:[#allocation10 + $0x24] sm:$0xf]
        %v1093 = vld [vmem:[#allocation10 + $0x28] sm:$0xf]
        %v1094 = vld [vmem:[#allocation10 + $0x2c] sm:$0xf]
        %v1095 = vld [vmem:[#allocation10 + $0x30] sm:$0xf]
        %v1096 = vld [vmem:[#allocation10 + $0x34] sm:$0xf]
        %v1097 = vld [vmem:[#allocation10 + $0x38] sm:$0xf]
        %v1098 = vld [vmem:[#allocation10 + $0x3c] sm:$0xf]
        %v1099 = vld [vmem:[%s8] sm:$0x1]
        %v1116 = vunpack.c.l.b16 %v1083
        %v1117 = vunpack.c.l.b16 %v1084
        %v1118 = vunpack.c.l.b16 %v1085
        %v1119 = vunpack.c.l.b16 %v1086
        %v1120 = vunpack.c.l.b16 %v1087
        %v1121 = vunpack.c.l.b16 %v1088
        %v1122 = vunpack.c.l.b16 %v1089
        %v1123 = vunpack.c.l.b16 %v1090
        %v1124 = vunpack.c.l.b16 %v1091
        %v1125 = vunpack.c.l.b16 %v1092
        %v1126 = vunpack.c.l.b16 %v1093
        %v1127 = vunpack.c.l.b16 %v1094
        %v1128 = vunpack.c.l.b16 %v1095
        %v1129 = vunpack.c.l.b16 %v1096
        %v1130 = vunpack.c.l.b16 %v1097
        %v1131 = vunpack.c.l.b16 %v1098
        %v1132 = vpack.c.b16 %v1117, %v1116
        %v1133 = vpack.c.b16 %v1119, %v1118
        %v1134 = vpack.c.b16 %v1121, %v1120
        %v1135 = vpack.c.b16 %v1123, %v1122
        %v1136 = vpack.c.b16 %v1125, %v1124
        %v1137 = vpack.c.b16 %v1127, %v1126
        %v1138 = vpack.c.b16 %v1129, %v1128
        %v1139 = vpack.c.b16 %v1131, %v1130
        %1148 = vmatprep.subr.bf16.mxu0 0
        %1149 = vmatpush1.bf16.msra.mxu0 %v1132
        %1150 = vmatprep.subr.bf16.mxu0 0
        %1151 = vmatpush1.bf16.msra.mxu0 %v1133
        %1152 = vmatprep.subr.bf16.mxu0 0
        %1153 = vmatpush1.bf16.msra.mxu0 %v1134
        %1154 = vmatprep.subr.bf16.mxu0 0
        %1155 = vmatpush1.bf16.msra.mxu0 %v1135
        %1156 = vmatprep.subr.bf16.mxu0 0
        %1157 = vmatpush1.bf16.msra.mxu0 %v1136
        %1158 = vmatprep.subr.bf16.mxu0 0
        %1159 = vmatpush1.bf16.msra.mxu0 %v1137
        %1160 = vmatprep.subr.bf16.mxu0 0
        %1161 = vmatpush1.bf16.msra.mxu0 %v1138
        %1162 = vmatprep.subr.bf16.mxu0 0
        %1163 = vmatpush1.bf16.msra.mxu0 %v1139
        %1164 = vmatprep.subr.bf16.mxu0 0
        %1165 = vmatpush1.bf16.msra.mxu0 0
        %1166 = vmatprep.subr.bf16.mxu0 0
        %1167 = vmatpush1.bf16.msra.mxu0 0
        %1168 = vmatprep.subr.bf16.mxu0 0
        %1169 = vmatpush1.bf16.msra.mxu0 0
        %1170 = vmatprep.subr.bf16.mxu0 0
        %1171 = vmatpush1.bf16.msra.mxu0 0
        %1172 = vmatprep.subr.bf16.mxu0 0
        %1173 = vmatpush1.bf16.msra.mxu0 0
        %1174 = vmatprep.subr.bf16.mxu0 0
        %1175 = vmatpush1.bf16.msra.mxu0 0
        %1176 = vmatprep.subr.bf16.mxu0 0
        %1177 = vmatpush1.bf16.msra.mxu0 0
        %1178 = vmatprep.subr.bf16.mxu0 0
        %1179 = vmatpush1.bf16.msra.mxu0 0
        %1180 = vmatprep.mubr.bf16.mxu0 0
        %1181 = vmatmul.mubr.bf16.gmra.mrb[0].mxu0 %v1082
        %v1182 = vpop.f32.mrb[0].mxu0
        %v1183 = vadd.f32 %v1099, %v1182
        %v1184 = vpop.f32.mrb[0].mxu0
        %v1185 = vpop.f32.mrb[0].mxu0
        %v1186 = vpop.f32.mrb[0].mxu0
        %1187 = vdwg.mxu0
        %v1188 = vadd.f32 %v709, %v1183
        %v1189 = vld [vmem:[%s9] sm:$0x1]
        %v1190 = vld [vmem:[#allocation11] sm:$0x1]
        %vm1191 = vcmask 1040384
        %v1192 = vsel %vm1191, %v1188, 0.0
        %1193 = vadd.xlane.f32.xlu0 %v1192
        %v1194 = vpop.xlane.xlu0 %1193
        %v1195 = vrcp.pop 128.0
        %v1196 = vmul.f32 %v1194, %v1195
        %v1197 = vsub.f32 %v1188, %v1196
        %v1198 = vmul.f32 %v1197, %v1197
        %v1199 = vsel %vm1191, %v1198, 0.0
        %1200 = vadd.xlane.f32.xlu0 %v1199
        %v1201 = vpop.xlane.xlu0 %1200
        %v1202 = vmul.f32 %v1201, %v1195
        %v1203 = vadd.f32 %v1202, 1e-05
        %v1204 = vrsqrt.pop %v1203
        %v1205 = vmul.f32 %v1197, %v1204
        %v1206 = vmul.f32 %v1205, %v1189
        %v1207 = vadd.f32 %v1206, %v1190
        %v1208 = vpack.c.bf16 %v1207, %v1207
        %v1209 = vld [vmem:[#allocation13] sm:$0xff]
        %v1210 = vld [vmem:[#allocation13 + $0x8] sm:$0xff]
        %v1211 = vld [vmem:[#allocation13 + $0x10] sm:$0xff]
        %v1212 = vld [vmem:[#allocation13 + $0x18] sm:$0xff]
        %v1213 = vld [vmem:[#allocation13 + $0x20] sm:$0xff]
        %v1214 = vld [vmem:[#allocation13 + $0x28] sm:$0xff]
        %v1215 = vld [vmem:[#allocation13 + $0x30] sm:$0xff]
        %v1216 = vld [vmem:[#allocation13 + $0x38] sm:$0xff]
        %v1217 = vld [vmem:[#allocation13 + $0x40] sm:$0xff]
        %v1218 = vld [vmem:[#allocation13 + $0x48] sm:$0xff]
        %v1219 = vld [vmem:[#allocation13 + $0x50] sm:$0xff]
        %v1220 = vld [vmem:[#allocation13 + $0x58] sm:$0xff]
        %v1221 = vld [vmem:[#allocation13 + $0x60] sm:$0xff]
        %v1222 = vld [vmem:[#allocation13 + $0x68] sm:$0xff]
        %v1223 = vld [vmem:[#allocation13 + $0x70] sm:$0xff]
        %v1224 = vld [vmem:[#allocation13 + $0x78] sm:$0xff]
        %v1225 = vld [vmem:[#allocation13 + $0x80] sm:$0xff]
        %v1226 = vld [vmem:[#allocation13 + $0x88] sm:$0xff]
        %v1227 = vld [vmem:[#allocation13 + $0x90] sm:$0xff]
        %v1228 = vld [vmem:[#allocation13 + $0x98] sm:$0xff]
        %v1229 = vld [vmem:[#allocation13 + $0xa0] sm:$0xff]
        %v1230 = vld [vmem:[#allocation13 + $0xa8] sm:$0xff]
        %v1231 = vld [vmem:[#allocation13 + $0xb0] sm:$0xff]
        %v1232 = vld [vmem:[#allocation13 + $0xb8] sm:$0xff]
        %v1233 = vld [vmem:[#allocation13 + $0xc0] sm:$0xff]
        %v1234 = vld [vmem:[#allocation13 + $0xc8] sm:$0xff]
        %v1235 = vld [vmem:[#allocation13 + $0xd0] sm:$0xff]
        %v1236 = vld [vmem:[#allocation13 + $0xd8] sm:$0xff]
        %v1237 = vld [vmem:[#allocation13 + $0xe0] sm:$0xff]
        %v1238 = vld [vmem:[#allocation13 + $0xe8] sm:$0xff]
        %v1239 = vld [vmem:[#allocation13 + $0xf0] sm:$0xff]
        %v1240 = vld [vmem:[#allocation13 + $0xf8] sm:$0xff]
        %v1241 = vld [vmem:[%s12] sm:$0xf]
        %v1274 = vunpack.c.l.b16 %v1209
        %v1275 = vunpack.c.h.b16 %v1209
        %v1276 = vunpack.c.l.b16 %v1210
        %v1277 = vunpack.c.h.b16 %v1210
        %v1278 = vunpack.c.l.b16 %v1211
        %v1279 = vunpack.c.h.b16 %v1211
        %v1280 = vunpack.c.l.b16 %v1212
        %v1281 = vunpack.c.h.b16 %v1212
        %v1282 = vunpack.c.l.b16 %v1213
        %v1283 = vunpack.c.h.b16 %v1213
        %v1284 = vunpack.c.l.b16 %v1214
        %v1285 = vunpack.c.h.b16 %v1214
        %v1286 = vunpack.c.l.b16 %v1215
        %v1287 = vunpack.c.h.b16 %v1215
        %v1288 = vunpack.c.l.b16 %v1216
        %v1289 = vunpack.c.h.b16 %v1216
        %v1290 = vunpack.c.l.b16 %v1217
        %v1291 = vunpack.c.h.b16 %v1217
        %v1292 = vunpack.c.l.b16 %v1218
        %v1293 = vunpack.c.h.b16 %v1218
        %v1294 = vunpack.c.l.b16 %v1219
        %v1295 = vunpack.c.h.b16 %v1219
        %v1296 = vunpack.c.l.b16 %v1220
        %v1297 = vunpack.c.h.b16 %v1220
        %v1298 = vunpack.c.l.b16 %v1221
        %v1299 = vunpack.c.h.b16 %v1221
        %v1300 = vunpack.c.l.b16 %v1222
        %v1301 = vunpack.c.h.b16 %v1222
        %v1302 = vunpack.c.l.b16 %v1223
        %v1303 = vunpack.c.h.b16 %v1223
        %v1304 = vunpack.c.l.b16 %v1224
        %v1305 = vunpack.c.h.b16 %v1224
        %v1306 = vunpack.c.l.b16 %v1225
        %v1307 = vunpack.c.h.b16 %v1225
        %v1308 = vunpack.c.l.b16 %v1226
        %v1309 = vunpack.c.h.b16 %v1226
        %v1310 = vunpack.c.l.b16 %v1227
        %v1311 = vunpack.c.h.b16 %v1227
        %v1312 = vunpack.c.l.b16 %v1228
        %v1313 = vunpack.c.h.b16 %v1228
        %v1314 = vunpack.c.l.b16 %v1229
        %v1315 = vunpack.c.h.b16 %v1229
        %v1316 = vunpack.c.l.b16 %v1230
        %v1317 = vunpack.c.h.b16 %v1230
        %v1318 = vunpack.c.l.b16 %v1231
        %v1319 = vunpack.c.h.b16 %v1231
        %v1320 = vunpack.c.l.b16 %v1232
        %v1321 = vunpack.c.h.b16 %v1232
        %v1322 = vunpack.c.l.b16 %v1233
        %v1323 = vunpack.c.h.b16 %v1233
        %v1324 = vunpack.c.l.b16 %v1234
        %v1325 = vunpack.c.h.b16 %v1234
        %v1326 = vunpack.c.l.b16 %v1235
        %v1327 = vunpack.c.h.b16 %v1235
        %v1328 = vunpack.c.l.b16 %v1236
        %v1329 = vunpack.c.h.b16 %v1236
        %v1330 = vunpack.c.l.b16 %v1237
        %v1331 = vunpack.c.h.b16 %v1237
        %v1332 = vunpack.c.l.b16 %v1238
        %v1333 = vunpack.c.h.b16 %v1238
        %v1334 = vunpack.c.l.b16 %v1239
        %v1335 = vunpack.c.h.b16 %v1239
        %v1336 = vunpack.c.l.b16 %v1240
        %v1337 = vunpack.c.h.b16 %v1240
        %v1338 = vpack.c.b16 %v1278, %v1274
        %v1339 = vpack.c.b16 %v1279, %v1275
        %v1340 = vpack.c.b16 %v1280, %v1276
        %v1341 = vpack.c.b16 %v1281, %v1277
        %v1342 = vpack.c.b16 %v1286, %v1282
        %v1343 = vpack.c.b16 %v1287, %v1283
        %v1344 = vpack.c.b16 %v1288, %v1284
        %v1345 = vpack.c.b16 %v1289, %v1285
        %v1346 = vpack.c.b16 %v1294, %v1290
        %v1347 = vpack.c.b16 %v1295, %v1291
        %v1348 = vpack.c.b16 %v1296, %v1292
        %v1349 = vpack.c.b16 %v1297, %v1293
        %v1350 = vpack.c.b16 %v1302, %v1298
        %v1351 = vpack.c.b16 %v1303, %v1299
        %v1352 = vpack.c.b16 %v1304, %v1300
        %v1353 = vpack.c.b16 %v1305, %v1301
        %v1354 = vpack.c.b16 %v1310, %v1306
        %v1355 = vpack.c.b16 %v1311, %v1307
        %v1356 = vpack.c.b16 %v1312, %v1308
        %v1357 = vpack.c.b16 %v1313, %v1309
        %v1358 = vpack.c.b16 %v1318, %v1314
        %v1359 = vpack.c.b16 %v1319, %v1315
        %v1360 = vpack.c.b16 %v1320, %v1316
        %v1361 = vpack.c.b16 %v1321, %v1317
        %v1362 = vpack.c.b16 %v1326, %v1322
        %v1363 = vpack.c.b16 %v1327, %v1323
        %v1364 = vpack.c.b16 %v1328, %v1324
        %v1365 = vpack.c.b16 %v1329, %v1325
        %v1366 = vpack.c.b16 %v1334, %v1330
        %v1367 = vpack.c.b16 %v1335, %v1331
        %v1368 = vpack.c.b16 %v1336, %v1332
        %v1369 = vpack.c.b16 %v1337, %v1333
        %v1403 = vlaneseq
        %v1404 = vshrl.u32 %v1403, 7
        %v1405 = vsub.s32 0, %v1404
        %v1406 = vrot.slane %v1241, %v1405
        %v1407 = vlaneseq
        %v1408 = vshrl.u32 %v1407, 7
        %v1409 = vsub.s32 1, %v1408
        %v1410 = vrot.slane %v1241, %v1409
        %v1411 = vlaneseq
        %v1412 = vshrl.u32 %v1411, 7
        %v1413 = vsub.s32 2, %v1412
        %v1414 = vrot.slane %v1241, %v1413
        %v1415 = vlaneseq
        %v1416 = vshrl.u32 %v1415, 7
        %v1417 = vsub.s32 3, %v1416
        %v1418 = vrot.slane %v1241, %v1417
        %1423 = vmatprep.subr.bf16.mxu0 %v1339
        %1424 = vmatpush1.bf16.msra.mxu0 %v1338
        %1425 = vmatprep.subr.bf16.mxu0 %v1343
        %1426 = vmatpush1.bf16.msra.mxu0 %v1342
        %1427 = vmatprep.subr.bf16.mxu0 %v1347
        %1428 = vmatpush1.bf16.msra.mxu0 %v1346
        %1429 = vmatprep.subr.bf16.mxu0 %v1351
        %1430 = vmatpush1.bf16.msra.mxu0 %v1350
        %1431 = vmatprep.subr.bf16.mxu0 %v1355
        %1432 = vmatpush1.bf16.msra.mxu0 %v1354
        %1433 = vmatprep.subr.bf16.mxu0 %v1359
        %1434 = vmatpush1.bf16.msra.mxu0 %v1358
        %1435 = vmatprep.subr.bf16.mxu0 %v1363
        %1436 = vmatpush1.bf16.msra.mxu0 %v1362
        %1437 = vmatprep.subr.bf16.mxu0 %v1367
        %1438 = vmatpush1.bf16.msra.mxu0 %v1366
        %1439 = vmatprep.subr.bf16.mxu0 0
        %1440 = vmatpush1.bf16.msra.mxu0 0
        %1441 = vmatprep.subr.bf16.mxu0 0
        %1442 = vmatpush1.bf16.msra.mxu0 0
        %1443 = vmatprep.subr.bf16.mxu0 0
        %1444 = vmatpush1.bf16.msra.mxu0 0
        %1445 = vmatprep.subr.bf16.mxu0 0
        %1446 = vmatpush1.bf16.msra.mxu0 0
        %1447 = vmatprep.subr.bf16.mxu0 0
        %1448 = vmatpush1.bf16.msra.mxu0 0
        %1449 = vmatprep.subr.bf16.mxu0 0
        %1450 = vmatpush1.bf16.msra.mxu0 0
        %1451 = vmatprep.subr.bf16.mxu0 0
        %1452 = vmatpush1.bf16.msra.mxu0 0
        %1453 = vmatprep.subr.bf16.mxu0 0
        %1454 = vmatpush1.bf16.msra.mxu0 0
        %1455 = vmatprep.mubr.bf16.mxu0 0
        %1456 = vmatmul.mubr.bf16.gmra.mrb[0].mxu0 %v1208
        %v1457 = vpop.f32.mrb[0].mxu0
        %v1458 = vadd.f32 %v1406, %v1457
        %v1459 = vpop.f32.mrb[0].mxu0
        %v1460 = vadd.f32 %v1410, %v1459
        %v1461 = vpop.f32.mrb[0].mxu0
        %v1462 = vpop.f32.mrb[0].mxu0
        %1463 = vdwg.mxu0
        %1464 = vmatprep.subr.bf16.mxu0 %v1341
        %1465 = vmatpush1.bf16.msra.mxu0 %v1340
        %1466 = vmatprep.subr.bf16.mxu0 %v1345
        %1467 = vmatpush1.bf16.msra.mxu0 %v1344
        %1468 = vmatprep.subr.bf16.mxu0 %v1349
        %1469 = vmatpush1.bf16.msra.mxu0 %v1348
        %1470 = vmatprep.subr.bf16.mxu0 %v1353
        %1471 = vmatpush1.bf16.msra.mxu0 %v1352
        %1472 = vmatprep.subr.bf16.mxu0 %v1357
        %1473 = vmatpush1.bf16.msra.mxu0 %v1356
        %1474 = vmatprep.subr.bf16.mxu0 %v1361
        %1475 = vmatpush1.bf16.msra.mxu0 %v1360
        %1476 = vmatprep.subr.bf16.mxu0 %v1365
        %1477 = vmatpush1.bf16.msra.mxu0 %v1364
        %1478 = vmatprep.subr.bf16.mxu0 %v1369
        %1479 = vmatpush1.bf16.msra.mxu0 %v1368
        %1480 = vmatprep.subr.bf16.mxu0 0
        %1481 = vmatpush1.bf16.msra.mxu0 0
        %1482 = vmatprep.subr.bf16.mxu0 0
        %1483 = vmatpush1.bf16.msra.mxu0 0
        %1484 = vmatprep.subr.bf16.mxu0 0
        %1485 = vmatpush1.bf16.msra.mxu0 0
        %1486 = vmatprep.subr.bf16.mxu0 0
        %1487 = vmatpush1.bf16.msra.mxu0 0
        %1488 = vmatprep.subr.bf16.mxu0 0
        %1489 = vmatpush1.bf16.msra.mxu0 0
        %1490 = vmatprep.subr.bf16.mxu0 0
        %1491 = vmatpush1.bf16.msra.mxu0 0
        %1492 = vmatprep.subr.bf16.mxu0 0
        %1493 = vmatpush1.bf16.msra.mxu0 0
        %1494 = vmatprep.subr.bf16.mxu0 0
        %1495 = vmatpush1.bf16.msra.mxu0 0
        %1496 = vmatprep.mubr.bf16.mxu0 0
        %1497 = vmatmul.mubr.bf16.gmra.mrb[0].mxu0 %v1208
        %v1498 = vpop.f32.mrb[0].mxu0
        %v1499 = vadd.f32 %v1414, %v1498
        %v1500 = vpop.f32.mrb[0].mxu0
        %v1501 = vadd.f32 %v1418, %v1500
        %v1502 = vpop.f32.mrb[0].mxu0
        %v1503 = vpop.f32.mrb[0].mxu0
        %1504 = vdwg.mxu0
        %v1505 = vmax.f32 %v1458, 0.0
        %v1506 = vmax.f32 %v1460, 0.0
        %v1507 = vmax.f32 %v1499, 0.0
        %v1508 = vmax.f32 %v1501, 0.0
        %v1509 = vpack.c.bf16 %v1505, %v1505
        %v1510 = vpack.c.bf16 %v1506, %v1506
        %v1511 = vpack.c.bf16 %v1507, %v1507
        %v1512 = vpack.c.bf16 %v1508, %v1508
        %v1513 = vld [vmem:[#allocation14] sm:$0xf]
        %v1514 = vld [vmem:[#allocation14 + $0x4] sm:$0xf]
        %v1515 = vld [vmem:[#allocation14 + $0x8] sm:$0xf]
        %v1516 = vld [vmem:[#allocation14 + $0xc] sm:$0xf]
        %v1517 = vld [vmem:[#allocation14 + $0x10] sm:$0xf]
        %v1518 = vld [vmem:[#allocation14 + $0x14] sm:$0xf]
        %v1519 = vld [vmem:[#allocation14 + $0x18] sm:$0xf]
        %v1520 = vld [vmem:[#allocation14 + $0x1c] sm:$0xf]
        %v1521 = vld [vmem:[#allocation14 + $0x20] sm:$0xf]
        %v1522 = vld [vmem:[#allocation14 + $0x24] sm:$0xf]
        %v1523 = vld [vmem:[#allocation14 + $0x28] sm:$0xf]
        %v1524 = vld [vmem:[#allocation14 + $0x2c] sm:$0xf]
        %v1525 = vld [vmem:[#allocation14 + $0x30] sm:$0xf]
        %v1526 = vld [vmem:[#allocation14 + $0x34] sm:$0xf]
        %v1527 = vld [vmem:[#allocation14 + $0x38] sm:$0xf]
        %v1528 = vld [vmem:[#allocation14 + $0x3c] sm:$0xf]
        %v1529 = vld [vmem:[#allocation14 + $0x40] sm:$0xf]
        %v1530 = vld [vmem:[#allocation14 + $0x44] sm:$0xf]
        %v1531 = vld [vmem:[#allocation14 + $0x48] sm:$0xf]
        %v1532 = vld [vmem:[#allocation14 + $0x4c] sm:$0xf]
        %v1533 = vld [vmem:[#allocation14 + $0x50] sm:$0xf]
        %v1534 = vld [vmem:[#allocation14 + $0x54] sm:$0xf]
        %v1535 = vld [vmem:[#allocation14 + $0x58] sm:$0xf]
        %v1536 = vld [vmem:[#allocation14 + $0x5c] sm:$0xf]
        %v1537 = vld [vmem:[#allocation14 + $0x60] sm:$0xf]
        %v1538 = vld [vmem:[#allocation14 + $0x64] sm:$0xf]
        %v1539 = vld [vmem:[#allocation14 + $0x68] sm:$0xf]
        %v1540 = vld [vmem:[#allocation14 + $0x6c] sm:$0xf]
        %v1541 = vld [vmem:[#allocation14 + $0x70] sm:$0xf]
        %v1542 = vld [vmem:[#allocation14 + $0x74] sm:$0xf]
        %v1543 = vld [vmem:[#allocation14 + $0x78] sm:$0xf]
        %v1544 = vld [vmem:[#allocation14 + $0x7c] sm:$0xf]
        %v1545 = vld [vmem:[#allocation14 + $0x80] sm:$0xf]
        %v1546 = vld [vmem:[#allocation14 + $0x84] sm:$0xf]
        %v1547 = vld [vmem:[#allocation14 + $0x88] sm:$0xf]
        %v1548 = vld [vmem:[#allocation14 + $0x8c] sm:$0xf]
        %v1549 = vld [vmem:[#allocation14 + $0x90] sm:$0xf]
        %v1550 = vld [vmem:[#allocation14 + $0x94] sm:$0xf]
        %v1551 = vld [vmem:[#allocation14 + $0x98] sm:$0xf]
        %v1552 = vld [vmem:[#allocation14 + $0x9c] sm:$0xf]
        %v1553 = vld [vmem:[#allocation14 + $0xa0] sm:$0xf]
        %v1554 = vld [vmem:[#allocation14 + $0xa4] sm:$0xf]
        %v1555 = vld [vmem:[#allocation14 + $0xa8] sm:$0xf]
        %v1556 = vld [vmem:[#allocation14 + $0xac] sm:$0xf]
        %v1557 = vld [vmem:[#allocation14 + $0xb0] sm:$0xf]
        %v1558 = vld [vmem:[#allocation14 + $0xb4] sm:$0xf]
        %v1559 = vld [vmem:[#allocation14 + $0xb8] sm:$0xf]
        %v1560 = vld [vmem:[#allocation14 + $0xbc] sm:$0xf]
        %v1561 = vld [vmem:[#allocation14 + $0xc0] sm:$0xf]
        %v1562 = vld [vmem:[#allocation14 + $0xc4] sm:$0xf]
        %v1563 = vld [vmem:[#allocation14 + $0xc8] sm:$0xf]
        %v1564 = vld [vmem:[#allocation14 + $0xcc] sm:$0xf]
        %v1565 = vld [vmem:[#allocation14 + $0xd0] sm:$0xf]
        %v1566 = vld [vmem:[#allocation14 + $0xd4] sm:$0xf]
        %v1567 = vld [vmem:[#allocation14 + $0xd8] sm:$0xf]
        %v1568 = vld [vmem:[#allocation14 + $0xdc] sm:$0xf]
        %v1569 = vld [vmem:[#allocation14 + $0xe0] sm:$0xf]
        %v1570 = vld [vmem:[#allocation14 + $0xe4] sm:$0xf]
        %v1571 = vld [vmem:[#allocation14 + $0xe8] sm:$0xf]
        %v1572 = vld [vmem:[#allocation14 + $0xec] sm:$0xf]
        %v1573 = vld [vmem:[#allocation14 + $0xf0] sm:$0xf]
        %v1574 = vld [vmem:[#allocation14 + $0xf4] sm:$0xf]
        %v1575 = vld [vmem:[#allocation14 + $0xf8] sm:$0xf]
        %v1576 = vld [vmem:[#allocation14 + $0xfc] sm:$0xf]
        %v1577 = vld [vmem:[#allocation16] sm:$0x1]
        %v1642 = vunpack.c.l.b16 %v1513
        %v1643 = vunpack.c.l.b16 %v1514
        %v1644 = vunpack.c.l.b16 %v1515
        %v1645 = vunpack.c.l.b16 %v1516
        %v1646 = vunpack.c.l.b16 %v1517
        %v1647 = vunpack.c.l.b16 %v1518
        %v1648 = vunpack.c.l.b16 %v1519
        %v1649 = vunpack.c.l.b16 %v1520
        %v1650 = vunpack.c.l.b16 %v1521
        %v1651 = vunpack.c.l.b16 %v1522
        %v1652 = vunpack.c.l.b16 %v1523
        %v1653 = vunpack.c.l.b16 %v1524
        %v1654 = vunpack.c.l.b16 %v1525
        %v1655 = vunpack.c.l.b16 %v1526
        %v1656 = vunpack.c.l.b16 %v1527
        %v1657 = vunpack.c.l.b16 %v1528
        %v1658 = vunpack.c.l.b16 %v1529
        %v1659 = vunpack.c.l.b16 %v1530
        %v1660 = vunpack.c.l.b16 %v1531
        %v1661 = vunpack.c.l.b16 %v1532
        %v1662 = vunpack.c.l.b16 %v1533
        %v1663 = vunpack.c.l.b16 %v1534
        %v1664 = vunpack.c.l.b16 %v1535
        %v1665 = vunpack.c.l.b16 %v1536
        %v1666 = vunpack.c.l.b16 %v1537
        %v1667 = vunpack.c.l.b16 %v1538
        %v1668 = vunpack.c.l.b16 %v1539
        %v1669 = vunpack.c.l.b16 %v1540
        %v1670 = vunpack.c.l.b16 %v1541
        %v1671 = vunpack.c.l.b16 %v1542
        %v1672 = vunpack.c.l.b16 %v1543
        %v1673 = vunpack.c.l.b16 %v1544
        %v1674 = vunpack.c.l.b16 %v1545
        %v1675 = vunpack.c.l.b16 %v1546
        %v1676 = vunpack.c.l.b16 %v1547
        %v1677 = vunpack.c.l.b16 %v1548
        %v1678 = vunpack.c.l.b16 %v1549
        %v1679 = vunpack.c.l.b16 %v1550
        %v1680 = vunpack.c.l.b16 %v1551
        %v1681 = vunpack.c.l.b16 %v1552
        %v1682 = vunpack.c.l.b16 %v1553
        %v1683 = vunpack.c.l.b16 %v1554
        %v1684 = vunpack.c.l.b16 %v1555
        %v1685 = vunpack.c.l.b16 %v1556
        %v1686 = vunpack.c.l.b16 %v1557
        %v1687 = vunpack.c.l.b16 %v1558
        %v1688 = vunpack.c.l.b16 %v1559
        %v1689 = vunpack.c.l.b16 %v1560
        %v1690 = vunpack.c.l.b16 %v1561
        %v1691 = vunpack.c.l.b16 %v1562
        %v1692 = vunpack.c.l.b16 %v1563
        %v1693 = vunpack.c.l.b16 %v1564
        %v1694 = vunpack.c.l.b16 %v1565
        %v1695 = vunpack.c.l.b16 %v1566
        %v1696 = vunpack.c.l.b16 %v1567
        %v1697 = vunpack.c.l.b16 %v1568
        %v1698 = vunpack.c.l.b16 %v1569
        %v1699 = vunpack.c.l.b16 %v1570
        %v1700 = vunpack.c.l.b16 %v1571
        %v1701 = vunpack.c.l.b16 %v1572
        %v1702 = vunpack.c.l.b16 %v1573
        %v1703 = vunpack.c.l.b16 %v1574
        %v1704 = vunpack.c.l.b16 %v1575
        %v1705 = vunpack.c.l.b16 %v1576
        %v1706 = vpack.c.b16 %v1643, %v1642
        %v1707 = vpack.c.b16 %v1645, %v1644
        %v1708 = vpack.c.b16 %v1647, %v1646
        %v1709 = vpack.c.b16 %v1649, %v1648
        %v1710 = vpack.c.b16 %v1651, %v1650
        %v1711 = vpack.c.b16 %v1653, %v1652
        %v1712 = vpack.c.b16 %v1655, %v1654
        %v1713 = vpack.c.b16 %v1657, %v1656
        %v1714 = vpack.c.b16 %v1659, %v1658
        %v1715 = vpack.c.b16 %v1661, %v1660
        %v1716 = vpack.c.b16 %v1663, %v1662
        %v1717 = vpack.c.b16 %v1665, %v1664
        %v1718 = vpack.c.b16 %v1667, %v1666
        %v1719 = vpack.c.b16 %v1669, %v1668
        %v1720 = vpack.c.b16 %v1671, %v1670
        %v1721 = vpack.c.b16 %v1673, %v1672
        %v1722 = vpack.c.b16 %v1675, %v1674
        %v1723 = vpack.c.b16 %v1677, %v1676
        %v1724 = vpack.c.b16 %v1679, %v1678
        %v1725 = vpack.c.b16 %v1681, %v1680
        %v1726 = vpack.c.b16 %v1683, %v1682
        %v1727 = vpack.c.b16 %v1685, %v1684
        %v1728 = vpack.c.b16 %v1687, %v1686
        %v1729 = vpack.c.b16 %v1689, %v1688
        %v1730 = vpack.c.b16 %v1691, %v1690
        %v1731 = vpack.c.b16 %v1693, %v1692
        %v1732 = vpack.c.b16 %v1695, %v1694
        %v1733 = vpack.c.b16 %v1697, %v1696
        %v1734 = vpack.c.b16 %v1699, %v1698
        %v1735 = vpack.c.b16 %v1701, %v1700
        %v1736 = vpack.c.b16 %v1703, %v1702
        %v1737 = vpack.c.b16 %v1705, %v1704
        %1770 = vmatprep.subr.bf16.mxu0 0
        %1771 = vmatpush1.bf16.msra.mxu0 %v1706
        %1772 = vmatprep.subr.bf16.mxu0 0
        %1773 = vmatpush1.bf16.msra.mxu0 %v1707
        %1774 = vmatprep.subr.bf16.mxu0 0
        %1775 = vmatpush1.bf16.msra.mxu0 %v1708
        %1776 = vmatprep.subr.bf16.mxu0 0
        %1777 = vmatpush1.bf16.msra.mxu0 %v1709
        %1778 = vmatprep.subr.bf16.mxu0 0
        %1779 = vmatpush1.bf16.msra.mxu0 %v1710
        %1780 = vmatprep.subr.bf16.mxu0 0
        %1781 = vmatpush1.bf16.msra.mxu0 %v1711
        %1782 = vmatprep.subr.bf16.mxu0 0
        %1783 = vmatpush1.bf16.msra.mxu0 %v1712
        %1784 = vmatprep.subr.bf16.mxu0 0
        %1785 = vmatpush1.bf16.msra.mxu0 %v1713
        %1786 = vmatprep.subr.bf16.mxu0 0
        %1787 = vmatpush1.bf16.msra.mxu0 %v1714
        %1788 = vmatprep.subr.bf16.mxu0 0
        %1789 = vmatpush1.bf16.msra.mxu0 %v1715
        %1790 = vmatprep.subr.bf16.mxu0 0
        %1791 = vmatpush1.bf16.msra.mxu0 %v1716
        %1792 = vmatprep.subr.bf16.mxu0 0
        %1793 = vmatpush1.bf16.msra.mxu0 %v1717
        %1794 = vmatprep.subr.bf16.mxu0 0
        %1795 = vmatpush1.bf16.msra.mxu0 %v1718
        %1796 = vmatprep.subr.bf16.mxu0 0
        %1797 = vmatpush1.bf16.msra.mxu0 %v1719
        %1798 = vmatprep.subr.bf16.mxu0 0
        %1799 = vmatpush1.bf16.msra.mxu0 %v1720
        %1800 = vmatprep.subr.bf16.mxu0 0
        %1801 = vmatpush1.bf16.msra.mxu0 %v1721
        %1802 = vmatprep.mubr.bf16.mxu0 %v1510
        %1803 = vmatmul.mubr.bf16.gmra.mrb[0].mxu0 %v1509
        %v1804 = vpop.f32.mrb[0].mxu0
        %v1805 = vadd.f32 %v1577, %v1804
        %v1806 = vpop.f32.mrb[0].mxu0
        %v1807 = vpop.f32.mrb[0].mxu0
        %v1808 = vpop.f32.mrb[0].mxu0
        %1809 = vdwg.mxu0
        %1810 = vmatprep.subr.bf16.mxu0 0
        %1811 = vmatpush1.bf16.msra.mxu0 %v1722
        %1812 = vmatprep.subr.bf16.mxu0 0
        %1813 = vmatpush1.bf16.msra.mxu0 %v1723
        %1814 = vmatprep.subr.bf16.mxu0 0
        %1815 = vmatpush1.bf16.msra.mxu0 %v1724
        %1816 = vmatprep.subr.bf16.mxu0 0
        %1817 = vmatpush1.bf16.msra.mxu0 %v1725
        %1818 = vmatprep.subr.bf16.mxu0 0
        %1819 = vmatpush1.bf16.msra.mxu0 %v1726
        %1820 = vmatprep.subr.bf16.mxu0 0
        %1821 = vmatpush1.bf16.msra.mxu0 %v1727
        %1822 = vmatprep.subr.bf16.mxu0 0
        %1823 = vmatpush1.bf16.msra.mxu0 %v1728
        %1824 = vmatprep.subr.bf16.mxu0 0
        %1825 = vmatpush1.bf16.msra.mxu0 %v1729
        %1826 = vmatprep.subr.bf16.mxu0 0
        %1827 = vmatpush1.bf16.msra.mxu0 %v1730
        %1828 = vmatprep.subr.bf16.mxu0 0
        %1829 = vmatpush1.bf16.msra.mxu0 %v1731
        %1830 = vmatprep.subr.bf16.mxu0 0
        %1831 = vmatpush1.bf16.msra.mxu0 %v1732
        %1832 = vmatprep.subr.bf16.mxu0 0
        %1833 = vmatpush1.bf16.msra.mxu0 %v1733
        %1834 = vmatprep.subr.bf16.mxu0 0
        %1835 = vmatpush1.bf16.msra.mxu0 %v1734
        %1836 = vmatprep.subr.bf16.mxu0 0
        %1837 = vmatpush1.bf16.msra.mxu0 %v1735
        %1838 = vmatprep.subr.bf16.mxu0 0
        %1839 = vmatpush1.bf16.msra.mxu0 %v1736
        %1840 = vmatprep.subr.bf16.mxu0 0
        %1841 = vmatpush1.bf16.msra.mxu0 %v1737
        %1842 = vmatprep.mubr.bf16.mxu0 %v1512
        %1843 = vmatmul.mubr.bf16.gmra.mrb[0].mxu0 %v1511
        %v1844 = vpop.f32.mrb[0].mxu0
        %v1845 = vadd.f32 %v1805, %v1844
        %v1846 = vpop.f32.mrb[0].mxu0
        %v1847 = vpop.f32.mrb[0].mxu0
        %v1848 = vpop.f32.mrb[0].mxu0
        %1849 = vdwg.mxu0
        %v1850 = vadd.f32 %v1207, %v1845
        %v1851 = vld [vmem:[%s15] sm:$0x1]
        %v1852 = vld [vmem:[#allocation17] sm:$0x1]
        %v1853 = vsel %vm1191, %v1850, 0.0
        %1854 = vadd.xlane.f32.xlu0 %v1853
        %v1855 = vpop.xlane.xlu0 %1854
        %v1856 = vmul.f32 %v1855, %v1195
        %v1857 = vsub.f32 %v1850, %v1856
        %v1858 = vmul.f32 %v1857, %v1857
        %v1859 = vsel %vm1191, %v1858, 0.0
        %1860 = vadd.xlane.f32.xlu0 %v1859
        %v1861 = vpop.xlane.xlu0 %1860
        %v1862 = vmul.f32 %v1861, %v1195
        %v1863 = vadd.f32 %v1862, 1e-05
        %v1864 = vrsqrt.pop %v1863
        %v1865 = vmul.f32 %v1857, %v1864
        %v1866 = vmul.f32 %v1865, %v1851
        %v1867 = vadd.f32 %v1866, %v1852
        %v1868 = vpack.c.bf16 %v1867, %v1867
        %s1869 = scalar_lea.vmem [#allocation7], 64
        %v1870 = vld [vmem:[%s1869] sm:$0xf]
        %v1871 = vld [vmem:[%s1869 + $0x4] sm:$0xf]
        %v1872 = vld [vmem:[%s1869 + $0x8] sm:$0xf]
        %v1873 = vld [vmem:[%s1869 + $0xc] sm:$0xf]
        %v1874 = vld [vmem:[%s1869 + $0x10] sm:$0xf]
        %v1875 = vld [vmem:[%s1869 + $0x14] sm:$0xf]
        %v1876 = vld [vmem:[%s1869 + $0x18] sm:$0xf]
        %v1877 = vld [vmem:[%s1869 + $0x1c] sm:$0xf]
        %v1878 = vld [vmem:[%s1869 + $0x20] sm:$0xf]
        %v1879 = vld [vmem:[%s1869 + $0x24] sm:$0xf]
        %v1880 = vld [vmem:[%s1869 + $0x28] sm:$0xf]
        %v1881 = vld [vmem:[%s1869 + $0x2c] sm:$0xf]
        %v1882 = vld [vmem:[%s1869 + $0x30] sm:$0xf]
        %v1883 = vld [vmem:[%s1869 + $0x34] sm:$0xf]
        %v1884 = vld [vmem:[%s1869 + $0x38] sm:$0xf]
        %v1885 = vld [vmem:[%s1869 + $0x3c] sm:$0xf]
        %s1886 = scalar_lea.vmem %s5, 1
        %v1887 = vld [vmem:[%s1886] sm:$0x1]
        %v1904 = vunpack.c.l.b16 %v1870
        %v1905 = vunpack.c.l.b16 %v1871
        %v1906 = vunpack.c.l.b16 %v1872
        %v1907 = vunpack.c.l.b16 %v1873
        %v1908 = vunpack.c.l.b16 %v1874
        %v1909 = vunpack.c.l.b16 %v1875
        %v1910 = vunpack.c.l.b16 %v1876
        %v1911 = vunpack.c.l.b16 %v1877
        %v1912 = vunpack.c.l.b16 %v1878
        %v1913 = vunpack.c.l.b16 %v1879
        %v1914 = vunpack.c.l.b16 %v1880
        %v1915 = vunpack.c.l.b16 %v1881
        %v1916 = vunpack.c.l.b16 %v1882
        %v1917 = vunpack.c.l.b16 %v1883
        %v1918 = vunpack.c.l.b16 %v1884
        %v1919 = vunpack.c.l.b16 %v1885
        %v1920 = vpack.c.b16 %v1905, %v1904
        %v1921 = vpack.c.b16 %v1907, %v1906
        %v1922 = vpack.c.b16 %v1909, %v1908
        %v1923 = vpack.c.b16 %v1911, %v1910
        %v1924 = vpack.c.b16 %v1913, %v1912
        %v1925 = vpack.c.b16 %v1915, %v1914
        %v1926 = vpack.c.b16 %v1917, %v1916
        %v1927 = vpack.c.b16 %v1919, %v1918
        %1936 = vmatprep.subr.bf16.mxu0 0
        %1937 = vmatpush1.bf16.msra.mxu0 %v1920
        %1938 = vmatprep.subr.bf16.mxu0 0
        %1939 = vmatpush1.bf16.msra.mxu0 %v1921
        %1940 = vmatprep.subr.bf16.mxu0 0
        %1941 = vmatpush1.bf16.msra.mxu0 %v1922
        %1942 = vmatprep.subr.bf16.mxu0 0
        %1943 = vmatpush1.bf16.msra.mxu0 %v1923
        %1944 = vmatprep.subr.bf16.mxu0 0
        %1945 = vmatpush1.bf16.msra.mxu0 %v1924
        %1946 = vmatprep.subr.bf16.mxu0 0
        %1947 = vmatpush1.bf16.msra.mxu0 %v1925
        %1948 = vmatprep.subr.bf16.mxu0 0
        %1949 = vmatpush1.bf16.msra.mxu0 %v1926
        %1950 = vmatprep.subr.bf16.mxu0 0
        %1951 = vmatpush1.bf16.msra.mxu0 %v1927
        %1952 = vmatprep.subr.bf16.mxu0 0
        %1953 = vmatpush1.bf16.msra.mxu0 0
        %1954 = vmatprep.subr.bf16.mxu0 0
        %1955 = vmatpush1.bf16.msra.mxu0 0
        %1956 = vmatprep.subr.bf16.mxu0 0
        %1957 = vmatpush1.bf16.msra.mxu0 0
        %1958 = vmatprep.subr.bf16.mxu0 0
        %1959 = vmatpush1.bf16.msra.mxu0 0
        %1960 = vmatprep.subr.bf16.mxu0 0
        %1961 = vmatpush1.bf16.msra.mxu0 0
        %1962 = vmatprep.subr.bf16.mxu0 0
        %1963 = vmatpush1.bf16.msra.mxu0 0
        %1964 = vmatprep.subr.bf16.mxu0 0
        %1965 = vmatpush1.bf16.msra.mxu0 0
        %1966 = vmatprep.subr.bf16.mxu0 0
        %1967 = vmatpush1.bf16.msra.mxu0 0
        %1968 = vmatprep.mubr.bf16.mxu0 0
        %1969 = vmatmul.mubr.bf16.gmra.mrb[0].mxu0 %v1868
        %v1970 = vpop.f32.mrb[0].mxu0
        %v1971 = vadd.f32 %v1887, %v1970
        %v1972 = vpop.f32.mrb[0].mxu0
        %v1973 = vpop.f32.mrb[0].mxu0
        %v1974 = vpop.f32.mrb[0].mxu0
        %1975 = vdwg.mxu0
        %s1976 = scalar_lea.vmem [#allocation8], 128
        %v1977 = vld [vmem:[%s1976] sm:$0xff]
        %v1978 = vld [vmem:[%s1976 + $0x8] sm:$0xff]
        %v1979 = vld [vmem:[%s1976 + $0x10] sm:$0xff]
        %v1980 = vld [vmem:[%s1976 + $0x18] sm:$0xff]
        %v1981 = vld [vmem:[%s1976 + $0x20] sm:$0xff]
        %v1982 = vld [vmem:[%s1976 + $0x28] sm:$0xff]
        %v1983 = vld [vmem:[%s1976 + $0x30] sm:$0xff]
        %v1984 = vld [vmem:[%s1976 + $0x38] sm:$0xff]
        %v1985 = vld [vmem:[%s1976 + $0x40] sm:$0xff]
        %v1986 = vld [vmem:[%s1976 + $0x48] sm:$0xff]
        %v1987 = vld [vmem:[%s1976 + $0x50] sm:$0xff]
        %v1988 = vld [vmem:[%s1976 + $0x58] sm:$0xff]
        %v1989 = vld [vmem:[%s1976 + $0x60] sm:$0xff]
        %v1990 = vld [vmem:[%s1976 + $0x68] sm:$0xff]
        %v1991 = vld [vmem:[%s1976 + $0x70] sm:$0xff]
        %v1992 = vld [vmem:[%s1976 + $0x78] sm:$0xff]
        %s1993 = scalar_lea.vmem %s6, 2
        %v1994 = vld [vmem:[%s1993] sm:$0x3]
        %v1996 = vlaneseq
        %v1997 = vshrl.u32 %v1996, 7
        %v1998 = vsub.s32 0, %v1997
        %v1999 = vrot.slane %v1994, %v1998
        %v2000 = vlaneseq
        %v2001 = vshrl.u32 %v2000, 7
        %v2002 = vsub.s32 1, %v2001
        %v2003 = vrot.slane %v1994, %v2002
        %v2022 = vunpack.c.l.b16 %v1977
        %v2023 = vunpack.c.h.b16 %v1977
        %v2024 = vunpack.c.l.b16 %v1978
        %v2025 = vunpack.c.h.b16 %v1978
        %v2026 = vunpack.c.l.b16 %v1979
        %v2027 = vunpack.c.h.b16 %v1979
        %v2028 = vunpack.c.l.b16 %v1980
        %v2029 = vunpack.c.h.b16 %v1980
        %v2030 = vunpack.c.l.b16 %v1981
        %v2031 = vunpack.c.h.b16 %v1981
        %v2032 = vunpack.c.l.b16 %v1982
        %v2033 = vunpack.c.h.b16 %v1982
        %v2034 = vunpack.c.l.b16 %v1983
        %v2035 = vunpack.c.h.b16 %v1983
        %v2036 = vunpack.c.l.b16 %v1984
        %v2037 = vunpack.c.h.b16 %v1984
        %v2038 = vunpack.c.l.b16 %v1985
        %v2039 = vunpack.c.h.b16 %v1985
        %v2040 = vunpack.c.l.b16 %v1986
        %v2041 = vunpack.c.h.b16 %v1986
        %v2042 = vunpack.c.l.b16 %v1987
        %v2043 = vunpack.c.h.b16 %v1987
        %v2044 = vunpack.c.l.b16 %v1988
        %v2045 = vunpack.c.h.b16 %v1988
        %v2046 = vunpack.c.l.b16 %v1989
        %v2047 = vunpack.c.h.b16 %v1989
        %v2048 = vunpack.c.l.b16 %v1990
        %v2049 = vunpack.c.h.b16 %v1990
        %v2050 = vunpack.c.l.b16 %v1991
        %v2051 = vunpack.c.h.b16 %v1991
        %v2052 = vunpack.c.l.b16 %v1992
        %v2053 = vunpack.c.h.b16 %v1992
        %v2054 = vpack.c.b16 %v2024, %v2022
        %v2055 = vpack.c.b16 %v2025, %v2023
        %v2056 = vpack.c.b16 %v2028, %v2026
        %v2057 = vpack.c.b16 %v2029, %v2027
        %v2058 = vpack.c.b16 %v2032, %v2030
        %v2059 = vpack.c.b16 %v2033, %v2031
        %v2060 = vpack.c.b16 %v2036, %v2034
        %v2061 = vpack.c.b16 %v2037, %v2035
        %v2062 = vpack.c.b16 %v2040, %v2038
        %v2063 = vpack.c.b16 %v2041, %v2039
        %v2064 = vpack.c.b16 %v2044, %v2042
        %v2065 = vpack.c.b16 %v2045, %v2043
        %v2066 = vpack.c.b16 %v2048, %v2046
        %v2067 = vpack.c.b16 %v2049, %v2047
        %v2068 = vpack.c.b16 %v2052, %v2050
        %v2069 = vpack.c.b16 %v2053, %v2051
        %2086 = vmatprep.subr.bf16.mxu0 %v2055
        %2087 = vmatpush1.bf16.msra.mxu0 %v2054
        %2088 = vmatprep.subr.bf16.mxu0 %v2057
        %2089 = vmatpush1.bf16.msra.mxu0 %v2056
        %2090 = vmatprep.subr.bf16.mxu0 %v2059
        %2091 = vmatpush1.bf16.msra.mxu0 %v2058
        %2092 = vmatprep.subr.bf16.mxu0 %v2061
        %2093 = vmatpush1.bf16.msra.mxu0 %v2060
        %2094 = vmatprep.subr.bf16.mxu0 %v2063
        %2095 = vmatpush1.bf16.msra.mxu0 %v2062
        %2096 = vmatprep.subr.bf16.mxu0 %v2065
        %2097 = vmatpush1.bf16.msra.mxu0 %v2064
        %2098 = vmatprep.subr.bf16.mxu0 %v2067
        %2099 = vmatpush1.bf16.msra.mxu0 %v2066
        %2100 = vmatprep.subr.bf16.mxu0 %v2069
        %2101 = vmatpush1.bf16.msra.mxu0 %v2068
        %2102 = vmatprep.subr.bf16.mxu0 0
        %2103 = vmatpush1.bf16.msra.mxu0 0
        %2104 = vmatprep.subr.bf16.mxu0 0
        %2105 = vmatpush1.bf16.msra.mxu0 0
        %2106 = vmatprep.subr.bf16.mxu0 0
        %2107 = vmatpush1.bf16.msra.mxu0 0
        %2108 = vmatprep.subr.bf16.mxu0 0
        %2109 = vmatpush1.bf16.msra.mxu0 0
        %2110 = vmatprep.subr.bf16.mxu0 0
        %2111 = vmatpush1.bf16.msra.mxu0 0
        %2112 = vmatprep.subr.bf16.mxu0 0
        %2113 = vmatpush1.bf16.msra.mxu0 0
        %2114 = vmatprep.subr.bf16.mxu0 0
        %2115 = vmatpush1.bf16.msra.mxu0 0
        %2116 = vmatprep.subr.bf16.mxu0 0
        %2117 = vmatpush1.bf16.msra.mxu0 0
        %2118 = vmatprep.mubr.bf16.mxu0 0
        %2119 = vmatmul.mubr.bf16.gmra.mrb[0].mxu0 %v711
        %v2120 = vpop.f32.mrb[0].mxu0
        %v2121 = vadd.f32 %v1999, %v2120
        %v2122 = vpop.f32.mrb[0].mxu0
        %v2123 = vadd.f32 %v2003, %v2122
        %v2124 = vpop.f32.mrb[0].mxu0
        %v2125 = vpop.f32.mrb[0].mxu0
        %2126 = vdwg.mxu0
        %v2127 = vlaneseq
        %v2128 = vshrl.u32 %v2127, 7
        %v2129 = vsub.s32 0, %v2128
        %v2130 = vrot.slane %v1971, %v2129
        %v2131 = vmul.f32 %v2121, %v2130
        %2132 = vmatprep.subr.mxu0 0.0
        %2133 = vmatpush1.msra.mxu0 %v712
        %2134 = vmatprep.subr.mxu0 0.0
        %2135 = vmatpush1.msra.mxu0 %v713
        %2136 = vmatprep.subr.mxu0 0.0
        %2137 = vmatpush1.msra.mxu0 %v714
        %2138 = vmatprep.subr.mxu0 0.0
        %2139 = vmatpush1.msra.mxu0 %v715
        %2140 = vmatprep.subr.mxu0 0.0
        %2141 = vmatpush1.msra.mxu0 %v716
        %2142 = vmatprep.subr.mxu0 0.0
        %2143 = vmatpush1.msra.mxu0 %v717
        %2144 = vmatprep.subr.mxu0 0.0
        %2145 = vmatpush1.msra.mxu0 %v718
        %2146 = vmatprep.subr.mxu0 0.0
        %2147 = vmatpush1.msra.mxu0 %v719
        %2148 = vmatprep.subr.mxu0 0.0
        %2149 = vmatpush1.msra.mxu0 %v720
        %2150 = vmatprep.subr.mxu0 0.0
        %2151 = vmatpush1.msra.mxu0 %v721
        %2152 = vmatprep.subr.mxu0 0.0
        %2153 = vmatpush1.msra.mxu0 %v722
        %2154 = vmatprep.subr.mxu0 0.0
        %2155 = vmatpush1.msra.mxu0 %v723
        %2156 = vmatprep.subr.mxu0 0.0
        %2157 = vmatpush1.msra.mxu0 %v724
        %2158 = vmatprep.subr.mxu0 0.0
        %2159 = vmatpush1.msra.mxu0 %v725
        %2160 = vmatprep.subr.mxu0 0.0
        %2161 = vmatpush1.msra.mxu0 %v726
        %2162 = vmatprep.subr.mxu0 0.0
        %2163 = vmatpush1.msra.mxu0 %v727
        %2164 = vmatprep.subr.mxu0 0.0
        %2165 = vmatpush1.msra.mxu0 0.0
        %2166 = vmatprep.subr.mxu0 0.0
        %2167 = vmatpush1.msra.mxu0 0.0
        %2168 = vmatprep.subr.mxu0 0.0
        %2169 = vmatpush1.msra.mxu0 0.0
        %2170 = vmatprep.subr.mxu0 0.0
        %2171 = vmatpush1.msra.mxu0 0.0
        %2172 = vmatprep.subr.mxu0 0.0
        %2173 = vmatpush1.msra.mxu0 0.0
        %2174 = vmatprep.subr.mxu0 0.0
        %2175 = vmatpush1.msra.mxu0 0.0
        %2176 = vmatprep.subr.mxu0 0.0
        %2177 = vmatpush1.msra.mxu0 0.0
        %2178 = vmatprep.subr.mxu0 0.0
        %2179 = vmatpush1.msra.mxu0 0.0
        %2180 = vmatprep.subr.mxu0 0.0
        %2181 = vmatpush1.msra.mxu0 0.0
        %2182 = vmatprep.subr.mxu0 0.0
        %2183 = vmatpush1.msra.mxu0 0.0
        %2184 = vmatprep.subr.mxu0 0.0
        %2185 = vmatpush1.msra.mxu0 0.0
        %2186 = vmatprep.subr.mxu0 0.0
        %2187 = vmatpush1.msra.mxu0 0.0
        %2188 = vmatprep.subr.mxu0 0.0
        %2189 = vmatpush1.msra.mxu0 0.0
        %2190 = vmatprep.subr.mxu0 0.0
        %2191 = vmatpush1.msra.mxu0 0.0
        %2192 = vmatprep.subr.mxu0 0.0
        %2193 = vmatpush1.msra.mxu0 0.0
        %2194 = vmatprep.subr.mxu0 0.0
        %2195 = vmatpush1.msra.mxu0 0.0
        %2196 = vmatprep.mubr.f32.mxu0 0.0
        %2197 = vmatmul.mubr.f32.gmra.mrb[0].mxu0 %v2131
        %v2198 = vpop.f32.mrb[0].mxu0
        %v2199 = vadd.f32 0.0, %v2198
        %v2200 = vpop.f32.mrb[0].mxu0
        %2201 = vdwg.mxu0
        %v2202 = vrot.slane %v2199, 4
        %v2203 = vmax.f32 %v2199, %v2202
        %v2204 = vrot.slane %v2203, 2
        %v2205 = vmax.f32 %v2203, %v2204
        %v2206 = vrot.slane %v2205, 1
        %v2207 = vmax.f32 %v2205, %v2206
        %v2208 = vsub.f32 %v2199, %v2207
        %v2209 = vmul.f32 %v2208, 1.442695
        %v2210 = vpow.pop %v2209
        %v2211 = vrot.slane %v2210, 4
        %v2212 = vadd.f32 %v2210, %v2211
        %v2213 = vrot.slane %v2212, 2
        %v2214 = vadd.f32 %v2212, %v2213
        %v2215 = vrot.slane %v2214, 1
        %v2216 = vadd.f32 %v2214, %v2215
        %v2217 = vrcp.pop %v2216
        %v2218 = vmul.f32 %v2210, %v2217
        %v2219 = vmul.f32 %v2218, %v2123
        %v2220 = vrot.slane %v2219, 4
        %v2221 = vadd.f32 %v2219, %v2220
        %v2222 = vrot.slane %v2221, 2
        %v2223 = vadd.f32 %v2221, %v2222
        %v2224 = vrot.slane %v2223, 1
        %v2225 = vadd.f32 %v2223, %v2224
        %v2226 = vpack.c.bf16 %v2225, %v2225
        %s2227 = scalar_lea.vmem [#allocation10], 64
        %v2228 = vld [vmem:[%s2227] sm:$0xf]
        %v2229 = vld [vmem:[%s2227 + $0x4] sm:$0xf]
        %v2230 = vld [vmem:[%s2227 + $0x8] sm:$0xf]
        %v2231 = vld [vmem:[%s2227 + $0xc] sm:$0xf]
        %v2232 = vld [vmem:[%s2227 + $0x10] sm:$0xf]
        %v2233 = vld [vmem:[%s2227 + $0x14] sm:$0xf]
        %v2234 = vld [vmem:[%s2227 + $0x18] sm:$0xf]
        %v2235 = vld [vmem:[%s2227 + $0x1c] sm:$0xf]
        %v2236 = vld [vmem:[%s2227 + $0x20] sm:$0xf]
        %v2237 = vld [vmem:[%s2227 + $0x24] sm:$0xf]
        %v2238 = vld [vmem:[%s2227 + $0x28] sm:$0xf]
        %v2239 = vld [vmem:[%s2227 + $0x2c] sm:$0xf]
        %v2240 = vld [vmem:[%s2227 + $0x30] sm:$0xf]
        %v2241 = vld [vmem:[%s2227 + $0x34] sm:$0xf]
        %v2242 = vld [vmem:[%s2227 + $0x38] sm:$0xf]
        %v2243 = vld [vmem:[%s2227 + $0x3c] sm:$0xf]
        %s2244 = scalar_lea.vmem %s8, 1
        %v2245 = vld [vmem:[%s2244] sm:$0x1]
        %v2262 = vunpack.c.l.b16 %v2228
        %v2263 = vunpack.c.l.b16 %v2229
        %v2264 = vunpack.c.l.b16 %v2230
        %v2265 = vunpack.c.l.b16 %v2231
        %v2266 = vunpack.c.l.b16 %v2232
        %v2267 = vunpack.c.l.b16 %v2233
        %v2268 = vunpack.c.l.b16 %v2234
        %v2269 = vunpack.c.l.b16 %v2235
        %v2270 = vunpack.c.l.b16 %v2236
        %v2271 = vunpack.c.l.b16 %v2237
        %v2272 = vunpack.c.l.b16 %v2238
        %v2273 = vunpack.c.l.b16 %v2239
        %v2274 = vunpack.c.l.b16 %v2240
        %v2275 = vunpack.c.l.b16 %v2241
        %v2276 = vunpack.c.l.b16 %v2242
        %v2277 = vunpack.c.l.b16 %v2243
        %v2278 = vpack.c.b16 %v2263, %v2262
        %v2279 = vpack.c.b16 %v2265, %v2264
        %v2280 = vpack.c.b16 %v2267, %v2266
        %v2281 = vpack.c.b16 %v2269, %v2268
        %v2282 = vpack.c.b16 %v2271, %v2270
        %v2283 = vpack.c.b16 %v2273, %v2272
        %v2284 = vpack.c.b16 %v2275, %v2274
        %v2285 = vpack.c.b16 %v2277, %v2276
        %2294 = vmatprep.subr.bf16.mxu0 0
        %2295 = vmatpush1.bf16.msra.mxu0 %v2278
        %2296 = vmatprep.subr.bf16.mxu0 0
        %2297 = vmatpush1.bf16.msra.mxu0 %v2279
        %2298 = vmatprep.subr.bf16.mxu0 0
        %2299 = vmatpush1.bf16.msra.mxu0 %v2280
        %2300 = vmatprep.subr.bf16.mxu0 0
        %2301 = vmatpush1.bf16.msra.mxu0 %v2281
        %2302 = vmatprep.subr.bf16.mxu0 0
        %2303 = vmatpush1.bf16.msra.mxu0 %v2282
        %2304 = vmatprep.subr.bf16.mxu0 0
        %2305 = vmatpush1.bf16.msra.mxu0 %v2283
        %2306 = vmatprep.subr.bf16.mxu0 0
        %2307 = vmatpush1.bf16.msra.mxu0 %v2284
        %2308 = vmatprep.subr.bf16.mxu0 0
        %2309 = vmatpush1.bf16.msra.mxu0 %v2285
        %2310 = vmatprep.subr.bf16.mxu0 0
        %2311 = vmatpush1.bf16.msra.mxu0 0
        %2312 = vmatprep.subr.bf16.mxu0 0
        %2313 = vmatpush1.bf16.msra.mxu0 0
        %2314 = vmatprep.subr.bf16.mxu0 0
        %2315 = vmatpush1.bf16.msra.mxu0 0
        %2316 = vmatprep.subr.bf16.mxu0 0
        %2317 = vmatpush1.bf16.msra.mxu0 0
        %2318 = vmatprep.subr.bf16.mxu0 0
        %2319 = vmatpush1.bf16.msra.mxu0 0
        %2320 = vmatprep.subr.bf16.mxu0 0
        %2321 = vmatpush1.bf16.msra.mxu0 0
        %2322 = vmatprep.subr.bf16.mxu0 0
        %2323 = vmatpush1.bf16.msra.mxu0 0
        %2324 = vmatprep.subr.bf16.mxu0 0
        %2325 = vmatpush1.bf16.msra.mxu0 0
        %2326 = vmatprep.mubr.bf16.mxu0 0
        %2327 = vmatmul.mubr.bf16.gmra.mrb[0].mxu0 %v2226
        %v2328 = vpop.f32.mrb[0].mxu0
        %v2329 = vadd.f32 %v2245, %v2328
        %v2330 = vpop.f32.mrb[0].mxu0
        %v2331 = vpop.f32.mrb[0].mxu0
        %v2332 = vpop.f32.mrb[0].mxu0
        %2333 = vdwg.mxu0
        %v2334 = vadd.f32 %v1867, %v2329
        %s2335 = scalar_lea.vmem %s9, 1
        %v2336 = vld [vmem:[%s2335] sm:$0x1]
        %s2337 = scalar_lea.vmem [#allocation11], 1
        %v2338 = vld [vmem:[%s2337] sm:$0x1]
        %v2339 = vsel %vm1191, %v2334, 0.0
        %2340 = vadd.xlane.f32.xlu0 %v2339
        %v2341 = vpop.xlane.xlu0 %2340
        %v2342 = vmul.f32 %v2341, %v1195
        %v2343 = vsub.f32 %v2334, %v2342
        %v2344 = vmul.f32 %v2343, %v2343
        %v2345 = vsel %vm1191, %v2344, 0.0
        %2346 = vadd.xlane.f32.xlu0 %v2345
        %v2347 = vpop.xlane.xlu0 %2346
        %v2348 = vmul.f32 %v2347, %v1195
        %v2349 = vadd.f32 %v2348, 1e-05
        %v2350 = vrsqrt.pop %v2349
        %v2351 = vmul.f32 %v2343, %v2350
        %v2352 = vmul.f32 %v2351, %v2336
        %v2353 = vadd.f32 %v2352, %v2338
        %v2354 = vpack.c.bf16 %v2353, %v2353
        %s2355 = scalar_lea.vmem [#allocation13], 256
        %v2356 = vld [vmem:[%s2355] sm:$0xff]
        %v2357 = vld [vmem:[%s2355 + $0x8] sm:$0xff]
        %v2358 = vld [vmem:[%s2355 + $0x10] sm:$0xff]
        %v2359 = vld [vmem:[%s2355 + $0x18] sm:$0xff]
        %v2360 = vld [vmem:[%s2355 + $0x20] sm:$0xff]
        %v2361 = vld [vmem:[%s2355 + $0x28] sm:$0xff]
        %v2362 = vld [vmem:[%s2355 + $0x30] sm:$0xff]
        %v2363 = vld [vmem:[%s2355 + $0x38] sm:$0xff]
        %v2364 = vld [vmem:[%s2355 + $0x40] sm:$0xff]
        %v2365 = vld [vmem:[%s2355 + $0x48] sm:$0xff]
        %v2366 = vld [vmem:[%s2355 + $0x50] sm:$0xff]
        %v2367 = vld [vmem:[%s2355 + $0x58] sm:$0xff]
        %v2368 = vld [vmem:[%s2355 + $0x60] sm:$0xff]
        %v2369 = vld [vmem:[%s2355 + $0x68] sm:$0xff]
        %v2370 = vld [vmem:[%s2355 + $0x70] sm:$0xff]
        %v2371 = vld [vmem:[%s2355 + $0x78] sm:$0xff]
        %v2372 = vld [vmem:[%s2355 + $0x80] sm:$0xff]
        %v2373 = vld [vmem:[%s2355 + $0x88] sm:$0xff]
        %v2374 = vld [vmem:[%s2355 + $0x90] sm:$0xff]
        %v2375 = vld [vmem:[%s2355 + $0x98] sm:$0xff]
        %v2376 = vld [vmem:[%s2355 + $0xa0] sm:$0xff]
        %v2377 = vld [vmem:[%s2355 + $0xa8] sm:$0xff]
        %v2378 = vld [vmem:[%s2355 + $0xb0] sm:$0xff]
        %v2379 = vld [vmem:[%s2355 + $0xb8] sm:$0xff]
        %v2380 = vld [vmem:[%s2355 + $0xc0] sm:$0xff]
        %v2381 = vld [vmem:[%s2355 + $0xc8] sm:$0xff]
        %v2382 = vld [vmem:[%s2355 + $0xd0] sm:$0xff]
        %v2383 = vld [vmem:[%s2355 + $0xd8] sm:$0xff]
        %v2384 = vld [vmem:[%s2355 + $0xe0] sm:$0xff]
        %v2385 = vld [vmem:[%s2355 + $0xe8] sm:$0xff]
        %v2386 = vld [vmem:[%s2355 + $0xf0] sm:$0xff]
        %v2387 = vld [vmem:[%s2355 + $0xf8] sm:$0xff]
        %s2388 = scalar_lea.vmem %s12, 4
        %v2389 = vld [vmem:[%s2388] sm:$0xf]
        %v2422 = vunpack.c.l.b16 %v2356
        %v2423 = vunpack.c.h.b16 %v2356
        %v2424 = vunpack.c.l.b16 %v2357
        %v2425 = vunpack.c.h.b16 %v2357
        %v2426 = vunpack.c.l.b16 %v2358
        %v2427 = vunpack.c.h.b16 %v2358
        %v2428 = vunpack.c.l.b16 %v2359
        %v2429 = vunpack.c.h.b16 %v2359
        %v2430 = vunpack.c.l.b16 %v2360
        %v2431 = vunpack.c.h.b16 %v2360
        %v2432 = vunpack.c.l.b16 %v2361
        %v2433 = vunpack.c.h.b16 %v2361
        %v2434 = vunpack.c.l.b16 %v2362
        %v2435 = vunpack.c.h.b16 %v2362
        %v2436 = vunpack.c.l.b16 %v2363
        %v2437 = vunpack.c.h.b16 %v2363
        %v2438 = vunpack.c.l.b16 %v2364
        %v2439 = vunpack.c.h.b16 %v2364
        %v2440 = vunpack.c.l.b16 %v2365
        %v2441 = vunpack.c.h.b16 %v2365
        %v2442 = vunpack.c.l.b16 %v2366
        %v2443 = vunpack.c.h.b16 %v2366
        %v2444 = vunpack.c.l.b16 %v2367
        %v2445 = vunpack.c.h.b16 %v2367
        %v2446 = vunpack.c.l.b16 %v2368
        %v2447 = vunpack.c.h.b16 %v2368
        %v2448 = vunpack.c.l.b16 %v2369
        %v2449 = vunpack.c.h.b16 %v2369
        %v2450 = vunpack.c.l.b16 %v2370
        %v2451 = vunpack.c.h.b16 %v2370
        %v2452 = vunpack.c.l.b16 %v2371
        %v2453 = vunpack.c.h.b16 %v2371
        %v2454 = vunpack.c.l.b16 %v2372
        %v2455 = vunpack.c.h.b16 %v2372
        %v2456 = vunpack.c.l.b16 %v2373
        %v2457 = vunpack.c.h.b16 %v2373
        %v2458 = vunpack.c.l.b16 %v2374
        %v2459 = vunpack.c.h.b16 %v2374
        %v2460 = vunpack.c.l.b16 %v2375
        %v2461 = vunpack.c.h.b16 %v2375
        %v2462 = vunpack.c.l.b16 %v2376
        %v2463 = vunpack.c.h.b16 %v2376
        %v2464 = vunpack.c.l.b16 %v2377
        %v2465 = vunpack.c.h.b16 %v2377
        %v2466 = vunpack.c.l.b16 %v2378
        %v2467 = vunpack.c.h.b16 %v2378
        %v2468 = vunpack.c.l.b16 %v2379
        %v2469 = vunpack.c.h.b16 %v2379
        %v2470 = vunpack.c.l.b16 %v2380
        %v2471 = vunpack.c.h.b16 %v2380
        %v2472 = vunpack.c.l.b16 %v2381
        %v2473 = vunpack.c.h.b16 %v2381
        %v2474 = vunpack.c.l.b16 %v2382
        %v2475 = vunpack.c.h.b16 %v2382
        %v2476 = vunpack.c.l.b16 %v2383
        %v2477 = vunpack.c.h.b16 %v2383
        %v2478 = vunpack.c.l.b16 %v2384
        %v2479 = vunpack.c.h.b16 %v2384
        %v2480 = vunpack.c.l.b16 %v2385
        %v2481 = vunpack.c.h.b16 %v2385
        %v2482 = vunpack.c.l.b16 %v2386
        %v2483 = vunpack.c.h.b16 %v2386
        %v2484 = vunpack.c.l.b16 %v2387
        %v2485 = vunpack.c.h.b16 %v2387
        %v2486 = vpack.c.b16 %v2426, %v2422
        %v2487 = vpack.c.b16 %v2427, %v2423
        %v2488 = vpack.c.b16 %v2428, %v2424
        %v2489 = vpack.c.b16 %v2429, %v2425
        %v2490 = vpack.c.b16 %v2434, %v2430
        %v2491 = vpack.c.b16 %v2435, %v2431
        %v2492 = vpack.c.b16 %v2436, %v2432
        %v2493 = vpack.c.b16 %v2437, %v2433
        %v2494 = vpack.c.b16 %v2442, %v2438
        %v2495 = vpack.c.b16 %v2443, %v2439
        %v2496 = vpack.c.b16 %v2444, %v2440
        %v2497 = vpack.c.b16 %v2445, %v2441
        %v2498 = vpack.c.b16 %v2450, %v2446
        %v2499 = vpack.c.b16 %v2451, %v2447
        %v2500 = vpack.c.b16 %v2452, %v2448
        %v2501 = vpack.c.b16 %v2453, %v2449
        %v2502 = vpack.c.b16 %v2458, %v2454
        %v2503 = vpack.c.b16 %v2459, %v2455
        %v2504 = vpack.c.b16 %v2460, %v2456
        %v2505 = vpack.c.b16 %v2461, %v2457
        %v2506 = vpack.c.b16 %v2466, %v2462
        %v2507 = vpack.c.b16 %v2467, %v2463
        %v2508 = vpack.c.b16 %v2468, %v2464
        %v2509 = vpack.c.b16 %v2469, %v2465
        %v2510 = vpack.c.b16 %v2474, %v2470
        %v2511 = vpack.c.b16 %v2475, %v2471
        %v2512 = vpack.c.b16 %v2476, %v2472
        %v2513 = vpack.c.b16 %v2477, %v2473
        %v2514 = vpack.c.b16 %v2482, %v2478
        %v2515 = vpack.c.b16 %v2483, %v2479
        %v2516 = vpack.c.b16 %v2484, %v2480
        %v2517 = vpack.c.b16 %v2485, %v2481
        %v2551 = vlaneseq
        %v2552 = vshrl.u32 %v2551, 7
        %v2553 = vsub.s32 0, %v2552
        %v2554 = vrot.slane %v2389, %v2553
        %v2555 = vlaneseq
        %v2556 = vshrl.u32 %v2555, 7
        %v2557 = vsub.s32 1, %v2556
        %v2558 = vrot.slane %v2389, %v2557
        %v2559 = vlaneseq
        %v2560 = vshrl.u32 %v2559, 7
        %v2561 = vsub.s32 2, %v2560
        %v2562 = vrot.slane %v2389, %v2561
        %v2563 = vlaneseq
        %v2564 = vshrl.u32 %v2563, 7
        %v2565 = vsub.s32 3, %v2564
        %v2566 = vrot.slane %v2389, %v2565
        %2571 = vmatprep.subr.bf16.mxu0 %v2487
        %2572 = vmatpush1.bf16.msra.mxu0 %v2486
        %2573 = vmatprep.subr.bf16.mxu0 %v2491
        %2574 = vmatpush1.bf16.msra.mxu0 %v2490
        %2575 = vmatprep.subr.bf16.mxu0 %v2495
        %2576 = vmatpush1.bf16.msra.mxu0 %v2494
        %2577 = vmatprep.subr.bf16.mxu0 %v2499
        %2578 = vmatpush1.bf16.msra.mxu0 %v2498
        %2579 = vmatprep.subr.bf16.mxu0 %v2503
        %2580 = vmatpush1.bf16.msra.mxu0 %v2502
        %2581 = vmatprep.subr.bf16.mxu0 %v2507
        %2582 = vmatpush1.bf16.msra.mxu0 %v2506
        %2583 = vmatprep.subr.bf16.mxu0 %v2511
        %2584 = vmatpush1.bf16.msra.mxu0 %v2510
        %2585 = vmatprep.subr.bf16.mxu0 %v2515
        %2586 = vmatpush1.bf16.msra.mxu0 %v2514
        %2587 = vmatprep.subr.bf16.mxu0 0
        %2588 = vmatpush1.bf16.msra.mxu0 0
        %2589 = vmatprep.subr.bf16.mxu0 0
        %2590 = vmatpush1.bf16.msra.mxu0 0
        %2591 = vmatprep.subr.bf16.mxu0 0
        %2592 = vmatpush1.bf16.msra.mxu0 0
        %2593 = vmatprep.subr.bf16.mxu0 0
        %2594 = vmatpush1.bf16.msra.mxu0 0
        %2595 = vmatprep.subr.bf16.mxu0 0
        %2596 = vmatpush1.bf16.msra.mxu0 0
        %2597 = vmatprep.subr.bf16.mxu0 0
        %2598 = vmatpush1.bf16.msra.mxu0 0
        %2599 = vmatprep.subr.bf16.mxu0 0
        %2600 = vmatpush1.bf16.msra.mxu0 0
        %2601 = vmatprep.subr.bf16.mxu0 0
        %2602 = vmatpush1.bf16.msra.mxu0 0
        %2603 = vmatprep.mubr.bf16.mxu0 0
        %2604 = vmatmul.mubr.bf16.gmra.mrb[0].mxu0 %v2354
        %v2605 = vpop.f32.mrb[0].mxu0
        %v2606 = vadd.f32 %v2554, %v2605
        %v2607 = vpop.f32.mrb[0].mxu0
        %v2608 = vadd.f32 %v2558, %v2607
        %v2609 = vpop.f32.mrb[0].mxu0
        %v2610 = vpop.f32.mrb[0].mxu0
        %2611 = vdwg.mxu0
        %2612 = vmatprep.subr.bf16.mxu0 %v2489
        %2613 = vmatpush1.bf16.msra.mxu0 %v2488
        %2614 = vmatprep.subr.bf16.mxu0 %v2493
        %2615 = vmatpush1.bf16.msra.mxu0 %v2492
        %2616 = vmatprep.subr.bf16.mxu0 %v2497
        %2617 = vmatpush1.bf16.msra.mxu0 %v2496
        %2618 = vmatprep.subr.bf16.mxu0 %v2501
        %2619 = vmatpush1.bf16.msra.mxu0 %v2500
        %2620 = vmatprep.subr.bf16.mxu0 %v2505
        %2621 = vmatpush1.bf16.msra.mxu0 %v2504
        %2622 = vmatprep.subr.bf16.mxu0 %v2509
        %2623 = vmatpush1.bf16.msra.mxu0 %v2508
        %2624 = vmatprep.subr.bf16.mxu0 %v2513
        %2625 = vmatpush1.bf16.msra.mxu0 %v2512
        %2626 = vmatprep.subr.bf16.mxu0 %v2517
        %2627 = vmatpush1.bf16.msra.mxu0 %v2516
        %2628 = vmatprep.subr.bf16.mxu0 0
        %2629 = vmatpush1.bf16.msra.mxu0 0
        %2630 = vmatprep.subr.bf16.mxu0 0
        %2631 = vmatpush1.bf16.msra.mxu0 0
        %2632 = vmatprep.subr.bf16.mxu0 0
        %2633 = vmatpush1.bf16.msra.mxu0 0
        %2634 = vmatprep.subr.bf16.mxu0 0
        %2635 = vmatpush1.bf16.msra.mxu0 0
        %2636 = vmatprep.subr.bf16.mxu0 0
        %2637 = vmatpush1.bf16.msra.mxu0 0
        %2638 = vmatprep.subr.bf16.mxu0 0
        %2639 = vmatpush1.bf16.msra.mxu0 0
        %2640 = vmatprep.subr.bf16.mxu0 0
        %2641 = vmatpush1.bf16.msra.mxu0 0
        %2642 = vmatprep.subr.bf16.mxu0 0
        %2643 = vmatpush1.bf16.msra.mxu0 0
        %2644 = vmatprep.mubr.bf16.mxu0 0
        %2645 = vmatmul.mubr.bf16.gmra.mrb[0].mxu0 %v2354
        %v2646 = vpop.f32.mrb[0].mxu0
        %v2647 = vadd.f32 %v2562, %v2646
        %v2648 = vpop.f32.mrb[0].mxu0
        %v2649 = vadd.f32 %v2566, %v2648
        %v2650 = vpop.f32.mrb[0].mxu0
        %v2651 = vpop.f32.mrb[0].mxu0
        %2652 = vdwg.mxu0
        %v2653 = vmax.f32 %v2606, 0.0
        %v2654 = vmax.f32 %v2608, 0.0
        %v2655 = vmax.f32 %v2647, 0.0
        %v2656 = vmax.f32 %v2649, 0.0
        %v2657 = vpack.c.bf16 %v2653, %v2653
        %v2658 = vpack.c.bf16 %v2654, %v2654
        %v2659 = vpack.c.bf16 %v2655, %v2655
        %v2660 = vpack.c.bf16 %v2656, %v2656
        %s2661 = scalar_lea.vmem [#allocation14], 256
        %v2662 = vld [vmem:[%s2661] sm:$0xf]
        %v2663 = vld [vmem:[%s2661 + $0x4] sm:$0xf]
        %v2664 = vld [vmem:[%s2661 + $0x8] sm:$0xf]
        %v2665 = vld [vmem:[%s2661 + $0xc] sm:$0xf]
        %v2666 = vld [vmem:[%s2661 + $0x10] sm:$0xf]
        %v2667 = vld [vmem:[%s2661 + $0x14] sm:$0xf]
        %v2668 = vld [vmem:[%s2661 + $0x18] sm:$0xf]
        %v2669 = vld [vmem:[%s2661 + $0x1c] sm:$0xf]
        %v2670 = vld [vmem:[%s2661 + $0x20] sm:$0xf]
        %v2671 = vld [vmem:[%s2661 + $0x24] sm:$0xf]
        %v2672 = vld [vmem:[%s2661 + $0x28] sm:$0xf]
        %v2673 = vld [vmem:[%s2661 + $0x2c] sm:$0xf]
        %v2674 = vld [vmem:[%s2661 + $0x30] sm:$0xf]
        %v2675 = vld [vmem:[%s2661 + $0x34] sm:$0xf]
        %v2676 = vld [vmem:[%s2661 + $0x38] sm:$0xf]
        %v2677 = vld [vmem:[%s2661 + $0x3c] sm:$0xf]
        %v2678 = vld [vmem:[%s2661 + $0x40] sm:$0xf]
        %v2679 = vld [vmem:[%s2661 + $0x44] sm:$0xf]
        %v2680 = vld [vmem:[%s2661 + $0x48] sm:$0xf]
        %v2681 = vld [vmem:[%s2661 + $0x4c] sm:$0xf]
        %v2682 = vld [vmem:[%s2661 + $0x50] sm:$0xf]
        %v2683 = vld [vmem:[%s2661 + $0x54] sm:$0xf]
        %v2684 = vld [vmem:[%s2661 + $0x58] sm:$0xf]
        %v2685 = vld [vmem:[%s2661 + $0x5c] sm:$0xf]
        %v2686 = vld [vmem:[%s2661 + $0x60] sm:$0xf]
        %v2687 = vld [vmem:[%s2661 + $0x64] sm:$0xf]
        %v2688 = vld [vmem:[%s2661 + $0x68] sm:$0xf]
        %v2689 = vld [vmem:[%s2661 + $0x6c] sm:$0xf]
        %v2690 = vld [vmem:[%s2661 + $0x70] sm:$0xf]
        %v2691 = vld [vmem:[%s2661 + $0x74] sm:$0xf]
        %v2692 = vld [vmem:[%s2661 + $0x78] sm:$0xf]
        %v2693 = vld [vmem:[%s2661 + $0x7c] sm:$0xf]
        %v2694 = vld [vmem:[%s2661 + $0x80] sm:$0xf]
        %v2695 = vld [vmem:[%s2661 + $0x84] sm:$0xf]
        %v2696 = vld [vmem:[%s2661 + $0x88] sm:$0xf]
        %v2697 = vld [vmem:[%s2661 + $0x8c] sm:$0xf]
        %v2698 = vld [vmem:[%s2661 + $0x90] sm:$0xf]
        %v2699 = vld [vmem:[%s2661 + $0x94] sm:$0xf]
        %v2700 = vld [vmem:[%s2661 + $0x98] sm:$0xf]
        %v2701 = vld [vmem:[%s2661 + $0x9c] sm:$0xf]
        %v2702 = vld [vmem:[%s2661 + $0xa0] sm:$0xf]
        %v2703 = vld [vmem:[%s2661 + $0xa4] sm:$0xf]
        %v2704 = vld [vmem:[%s2661 + $0xa8] sm:$0xf]
        %v2705 = vld [vmem:[%s2661 + $0xac] sm:$0xf]
        %v2706 = vld [vmem:[%s2661 + $0xb0] sm:$0xf]
        %v2707 = vld [vmem:[%s2661 + $0xb4] sm:$0xf]
        %v2708 = vld [vmem:[%s2661 + $0xb8] sm:$0xf]
        %v2709 = vld [vmem:[%s2661 + $0xbc] sm:$0xf]
        %v2710 = vld [vmem:[%s2661 + $0xc0] sm:$0xf]
        %v2711 = vld [vmem:[%s2661 + $0xc4] sm:$0xf]
        %v2712 = vld [vmem:[%s2661 + $0xc8] sm:$0xf]
        %v2713 = vld [vmem:[%s2661 + $0xcc] sm:$0xf]
        %v2714 = vld [vmem:[%s2661 + $0xd0] sm:$0xf]
        %v2715 = vld [vmem:[%s2661 + $0xd4] sm:$0xf]
        %v2716 = vld [vmem:[%s2661 + $0xd8] sm:$0xf]
        %v2717 = vld [vmem:[%s2661 + $0xdc] sm:$0xf]
        %v2718 = vld [vmem:[%s2661 + $0xe0] sm:$0xf]
        %v2719 = vld [vmem:[%s2661 + $0xe4] sm:$0xf]
        %v2720 = vld [vmem:[%s2661 + $0xe8] sm:$0xf]
        %v2721 = vld [vmem:[%s2661 + $0xec] sm:$0xf]
        %v2722 = vld [vmem:[%s2661 + $0xf0] sm:$0xf]
        %v2723 = vld [vmem:[%s2661 + $0xf4] sm:$0xf]
        %v2724 = vld [vmem:[%s2661 + $0xf8] sm:$0xf]
        %v2725 = vld [vmem:[%s2661 + $0xfc] sm:$0xf]
        %s2726 = scalar_lea.vmem [#allocation16], 1
        %v2727 = vld [vmem:[%s2726] sm:$0x1]
        %v2792 = vunpack.c.l.b16 %v2662
        %v2793 = vunpack.c.l.b16 %v2663
        %v2794 = vunpack.c.l.b16 %v2664
        %v2795 = vunpack.c.l.b16 %v2665
        %v2796 = vunpack.c.l.b16 %v2666
        %v2797 = vunpack.c.l.b16 %v2667
        %v2798 = vunpack.c.l.b16 %v2668
        %v2799 = vunpack.c.l.b16 %v2669
        %v2800 = vunpack.c.l.b16 %v2670
        %v2801 = vunpack.c.l.b16 %v2671
        %v2802 = vunpack.c.l.b16 %v2672
        %v2803 = vunpack.c.l.b16 %v2673
        %v2804 = vunpack.c.l.b16 %v2674
        %v2805 = vunpack.c.l.b16 %v2675
        %v2806 = vunpack.c.l.b16 %v2676
        %v2807 = vunpack.c.l.b16 %v2677
        %v2808 = vunpack.c.l.b16 %v2678
        %v2809 = vunpack.c.l.b16 %v2679
        %v2810 = vunpack.c.l.b16 %v2680
        %v2811 = vunpack.c.l.b16 %v2681
        %v2812 = vunpack.c.l.b16 %v2682
        %v2813 = vunpack.c.l.b16 %v2683
        %v2814 = vunpack.c.l.b16 %v2684
        %v2815 = vunpack.c.l.b16 %v2685
        %v2816 = vunpack.c.l.b16 %v2686
        %v2817 = vunpack.c.l.b16 %v2687
        %v2818 = vunpack.c.l.b16 %v2688
        %v2819 = vunpack.c.l.b16 %v2689
        %v2820 = vunpack.c.l.b16 %v2690
        %v2821 = vunpack.c.l.b16 %v2691
        %v2822 = vunpack.c.l.b16 %v2692
        %v2823 = vunpack.c.l.b16 %v2693
        %v2824 = vunpack.c.l.b16 %v2694
        %v2825 = vunpack.c.l.b16 %v2695
        %v2826 = vunpack.c.l.b16 %v2696
        %v2827 = vunpack.c.l.b16 %v2697
        %v2828 = vunpack.c.l.b16 %v2698
        %v2829 = vunpack.c.l.b16 %v2699
        %v2830 = vunpack.c.l.b16 %v2700
        %v2831 = vunpack.c.l.b16 %v2701
        %v2832 = vunpack.c.l.b16 %v2702
        %v2833 = vunpack.c.l.b16 %v2703
        %v2834 = vunpack.c.l.b16 %v2704
        %v2835 = vunpack.c.l.b16 %v2705
        %v2836 = vunpack.c.l.b16 %v2706
        %v2837 = vunpack.c.l.b16 %v2707
        %v2838 = vunpack.c.l.b16 %v2708
        %v2839 = vunpack.c.l.b16 %v2709
        %v2840 = vunpack.c.l.b16 %v2710
        %v2841 = vunpack.c.l.b16 %v2711
        %v2842 = vunpack.c.l.b16 %v2712
        %v2843 = vunpack.c.l.b16 %v2713
        %v2844 = vunpack.c.l.b16 %v2714
        %v2845 = vunpack.c.l.b16 %v2715
        %v2846 = vunpack.c.l.b16 %v2716
        %v2847 = vunpack.c.l.b16 %v2717
        %v2848 = vunpack.c.l.b16 %v2718
        %v2849 = vunpack.c.l.b16 %v2719
        %v2850 = vunpack.c.l.b16 %v2720
        %v2851 = vunpack.c.l.b16 %v2721
        %v2852 = vunpack.c.l.b16 %v2722
        %v2853 = vunpack.c.l.b16 %v2723
        %v2854 = vunpack.c.l.b16 %v2724
        %v2855 = vunpack.c.l.b16 %v2725
        %v2856 = vpack.c.b16 %v2793, %v2792
        %v2857 = vpack.c.b16 %v2795, %v2794
        %v2858 = vpack.c.b16 %v2797, %v2796
        %v2859 = vpack.c.b16 %v2799, %v2798
        %v2860 = vpack.c.b16 %v2801, %v2800
        %v2861 = vpack.c.b16 %v2803, %v2802
        %v2862 = vpack.c.b16 %v2805, %v2804
        %v2863 = vpack.c.b16 %v2807, %v2806
        %v2864 = vpack.c.b16 %v2809, %v2808
        %v2865 = vpack.c.b16 %v2811, %v2810
        %v2866 = vpack.c.b16 %v2813, %v2812
        %v2867 = vpack.c.b16 %v2815, %v2814
        %v2868 = vpack.c.b16 %v2817, %v2816
        %v2869 = vpack.c.b16 %v2819, %v2818
        %v2870 = vpack.c.b16 %v2821, %v2820
        %v2871 = vpack.c.b16 %v2823, %v2822
        %v2872 = vpack.c.b16 %v2825, %v2824
        %v2873 = vpack.c.b16 %v2827, %v2826
        %v2874 = vpack.c.b16 %v2829, %v2828
        %v2875 = vpack.c.b16 %v2831, %v2830
        %v2876 = vpack.c.b16 %v2833, %v2832
        %v2877 = vpack.c.b16 %v2835, %v2834
        %v2878 = vpack.c.b16 %v2837, %v2836
        %v2879 = vpack.c.b16 %v2839, %v2838
        %v2880 = vpack.c.b16 %v2841, %v2840
        %v2881 = vpack.c.b16 %v2843, %v2842
        %v2882 = vpack.c.b16 %v2845, %v2844
        %v2883 = vpack.c.b16 %v2847, %v2846
        %v2884 = vpack.c.b16 %v2849, %v2848
        %v2885 = vpack.c.b16 %v2851, %v2850
        %v2886 = vpack.c.b16 %v2853, %v2852
        %v2887 = vpack.c.b16 %v2855, %v2854
        %2920 = vmatprep.subr.bf16.mxu0 0
        %2921 = vmatpush1.bf16.msra.mxu0 %v2856
        %2922 = vmatprep.subr.bf16.mxu0 0
        %2923 = vmatpush1.bf16.msra.mxu0 %v2857
        %2924 = vmatprep.subr.bf16.mxu0 0
        %2925 = vmatpush1.bf16.msra.mxu0 %v2858
        %2926 = vmatprep.subr.bf16.mxu0 0
        %2927 = vmatpush1.bf16.msra.mxu0 %v2859
        %2928 = vmatprep.subr.bf16.mxu0 0
        %2929 = vmatpush1.bf16.msra.mxu0 %v2860
        %2930 = vmatprep.subr.bf16.mxu0 0
        %2931 = vmatpush1.bf16.msra.mxu0 %v2861
        %2932 = vmatprep.subr.bf16.mxu0 0
        %2933 = vmatpush1.bf16.msra.mxu0 %v2862
        %2934 = vmatprep.subr.bf16.mxu0 0
        %2935 = vmatpush1.bf16.msra.mxu0 %v2863
        %2936 = vmatprep.subr.bf16.mxu0 0
        %2937 = vmatpush1.bf16.msra.mxu0 %v2864
        %2938 = vmatprep.subr.bf16.mxu0 0
        %2939 = vmatpush1.bf16.msra.mxu0 %v2865
        %2940 = vmatprep.subr.bf16.mxu0 0
        %2941 = vmatpush1.bf16.msra.mxu0 %v2866
        %2942 = vmatprep.subr.bf16.mxu0 0
        %2943 = vmatpush1.bf16.msra.mxu0 %v2867
        %2944 = vmatprep.subr.bf16.mxu0 0
        %2945 = vmatpush1.bf16.msra.mxu0 %v2868
        %2946 = vmatprep.subr.bf16.mxu0 0
        %2947 = vmatpush1.bf16.msra.mxu0 %v2869
        %2948 = vmatprep.subr.bf16.mxu0 0
        %2949 = vmatpush1.bf16.msra.mxu0 %v2870
        %2950 = vmatprep.subr.bf16.mxu0 0
        %2951 = vmatpush1.bf16.msra.mxu0 %v2871
        %2952 = vmatprep.mubr.bf16.mxu0 %v2658
        %2953 = vmatmul.mubr.bf16.gmra.mrb[0].mxu0 %v2657
        %v2954 = vpop.f32.mrb[0].mxu0
        %v2955 = vadd.f32 %v2727, %v2954
        %v2956 = vpop.f32.mrb[0].mxu0
        %v2957 = vpop.f32.mrb[0].mxu0
        %v2958 = vpop.f32.mrb[0].mxu0
        %2959 = vdwg.mxu0
        %2960 = vmatprep.subr.bf16.mxu0 0
        %2961 = vmatpush1.bf16.msra.mxu0 %v2872
        %2962 = vmatprep.subr.bf16.mxu0 0
        %2963 = vmatpush1.bf16.msra.mxu0 %v2873
        %2964 = vmatprep.subr.bf16.mxu0 0
        %2965 = vmatpush1.bf16.msra.mxu0 %v2874
        %2966 = vmatprep.subr.bf16.mxu0 0
        %2967 = vmatpush1.bf16.msra.mxu0 %v2875
        %2968 = vmatprep.subr.bf16.mxu0 0
        %2969 = vmatpush1.bf16.msra.mxu0 %v2876
        %2970 = vmatprep.subr.bf16.mxu0 0
        %2971 = vmatpush1.bf16.msra.mxu0 %v2877
        %2972 = vmatprep.subr.bf16.mxu0 0
        %2973 = vmatpush1.bf16.msra.mxu0 %v2878
        %2974 = vmatprep.subr.bf16.mxu0 0
        %2975 = vmatpush1.bf16.msra.mxu0 %v2879
        %2976 = vmatprep.subr.bf16.mxu0 0
        %2977 = vmatpush1.bf16.msra.mxu0 %v2880
        %2978 = vmatprep.subr.bf16.mxu0 0
        %2979 = vmatpush1.bf16.msra.mxu0 %v2881
        %2980 = vmatprep.subr.bf16.mxu0 0
        %2981 = vmatpush1.bf16.msra.mxu0 %v2882
        %2982 = vmatprep.subr.bf16.mxu0 0
        %2983 = vmatpush1.bf16.msra.mxu0 %v2883
        %2984 = vmatprep.subr.bf16.mxu0 0
        %2985 = vmatpush1.bf16.msra.mxu0 %v2884
        %2986 = vmatprep.subr.bf16.mxu0 0
        %2987 = vmatpush1.bf16.msra.mxu0 %v2885
        %2988 = vmatprep.subr.bf16.mxu0 0
        %2989 = vmatpush1.bf16.msra.mxu0 %v2886
        %2990 = vmatprep.subr.bf16.mxu0 0
        %2991 = vmatpush1.bf16.msra.mxu0 %v2887
        %2992 = vmatprep.mubr.bf16.mxu0 %v2660
        %2993 = vmatmul.mubr.bf16.gmra.mrb[0].mxu0 %v2659
        %v2994 = vpop.f32.mrb[0].mxu0
        %v2995 = vadd.f32 %v2955, %v2994
        %v2996 = vpop.f32.mrb[0].mxu0
        %v2997 = vpop.f32.mrb[0].mxu0
        %v2998 = vpop.f32.mrb[0].mxu0
        %2999 = vdwg.mxu0
        %v3000 = vadd.f32 %v2353, %v2995
        %s3001 = scalar_lea.vmem %s15, 1
        %v3002 = vld [vmem:[%s3001] sm:$0x1]
        %s3003 = scalar_lea.vmem [#allocation17], 1
        %v3004 = vld [vmem:[%s3003] sm:$0x1]
        %v3005 = vsel %vm1191, %v3000, 0.0
        %3006 = vadd.xlane.f32.xlu0 %v3005
        %v3007 = vpop.xlane.xlu0 %3006
        %v3008 = vmul.f32 %v3007, %v1195
        %v3009 = vsub.f32 %v3000, %v3008
        %v3010 = vmul.f32 %v3009, %v3009
        %v3011 = vsel %vm1191, %v3010, 0.0
        %3012 = vadd.xlane.f32.xlu0 %v3011
        %v3013 = vpop.xlane.xlu0 %3012
        %v3014 = vmul.f32 %v3013, %v1195
        %v3015 = vadd.f32 %v3014, 1e-05
        %v3016 = vrsqrt.pop %v3015
        %v3017 = vmul.f32 %v3009, %v3016
        %v3018 = vmul.f32 %v3017, %v3002
        %v3019 = vadd.f32 %v3018, %v3004
        %3020 = vst [vmem:[%s704] sm:$0x1] %v3019
        %s3021 = sand.u32 %s414, 1
        %s3022 = scalar_lea.sflag [#allocation4], %s3021
        %s3023 = sand.u32 %s414, 1
        %s3024 = scalar_lea.vmem [#allocation19], %s3023
        // Predicated region
        $region129: #{multimodal_interaction.1} parent=87 // pred_check
          %p3025 = pneg %p424
        $region130: #{multimodal_interaction.1} parent=87 // pred_check_branch
          %3027 = sbr.rel (%p3025) target = $region132
        $region131: #{multimodal_interaction.1} parent=87 // pred_region
          %s3029 = ssub.s32 16, 16
          %3030 = vsyncadd %s3022, %s3029
          %s3031 = smul.addr %s39, 16
          %s3032 = scalar_lea.hbm %s17, %s3031
          %s3034 = sshll.u32 %s3024, 4
          %s3035 = int_to_ptr.vmem [resolvable:$true] %s3034
          %3037 = dma.vmem_to_hbm [thread:$0]  %s3035, 16, %s3032, %s3022
        $region132: #{multimodal_interaction.1} parent=87 // pred_fallthru
          _
      $region88: #{multimodal_interaction.1} parent=5 // pred_fallthru
        _
      %p3038 = scmp.le.s32.totalorder 2, %s34
      // Predicated region
      $region133: #{multimodal_interaction.1} parent=5 // pred_check
        %p3039 = pneg %p3038
      $region134: #{multimodal_interaction.1} parent=5 // pred_check_branch
        %3041 = sbr.rel (%p3039) target = $region136
      $region135: #{multimodal_interaction.1} parent=5 // pred_region
        %s3042 = ssub.s32 %s34, 2
        // Predicated region
        $region137: #{multimodal_interaction.1} parent=135 // pred_check
          %p3043 = pneg %p430
        $region138: #{multimodal_interaction.1} parent=135 // pred_check_branch
          %3045 = sbr.rel (%p3043) target = $region140
        $region139: #{multimodal_interaction.1} parent=135 // pred_region
          %s3046 = sand.u32 %s415, 1
          %s3047 = scalar_lea.sflag [#allocation4], %s3046
          %s3048 = sand.u32 %s415, 1
          %s3049 = scalar_lea.vmem [#allocation19], %s3048
          %3050 = dma.done %s3047, 16
        $region140: #{multimodal_interaction.1} parent=135 // pred_fallthru
          _
      $region136: #{multimodal_interaction.1} parent=5 // pred_fallthru
        _
    $region6: #{multimodal_interaction.1} parent=1 // loop_footer
      %s38 = sadd.s32 1, %s34
    $region7: #{multimodal_interaction.1} parent=1 // loop_footer_branch
      %33 = sbr.rel target = $region3
    $region8: #{multimodal_interaction.1} parent=1 // loop_exit
      _
    %3051 = vsyncpa [#allocation3], 1
    %s3052 = scalar_lea.sflag [#allocation3], 1
    %3053 = vsyncpa %s3052, 1
    %3054 = vsyncpa [#allocation6], 1
    %3055 = vsyncpa [#allocation9], 1
    %3056 = vsyncpa [#allocation12], 1
    %3057 = vsyncpa [#allocation15], 1
    %3058 = vsyncpa [#allocation18], 1
    %3059 = vsyncpa [#allocation4], 1
    %s3060 = scalar_lea.sflag [#allocation4], 1
    %3061 = vsyncpa %s3060, 1

</llo_original>
